<compile_context>
chip_gen: v7x
topology: tpu7x:2x2x1
jax: 0.10.0
libtpu: 0.0.40
codegen_flags: <defaults>
</compile_context>

<pallas_src>
import jax
import jax.numpy as jnp
import numpy as np
from jax import lax
from jax.experimental import pallas as pl
from jax.experimental.pallas import tpu as pltpu

LANES = 128
BLK = 8          # images per grid step
NEG_INF = -1e30


# ------------------------------ fused kernel --------------------------------
def _net_kernel(x_ref, w1_ref, b1_ref, w2_ref, b2_ref,
                wf1_ref, bf1_ref, wf2_ref, bf2_ref, o_ref, a1_s):
    f32 = jnp.float32
    bf16 = jnp.bfloat16

    # ---- conv1 (5x5, 1->10) + 2x2 maxpool + relu ----------------------------
    # x_ref: [1, 28*8, 32] rows = (h, img), lanes = input column (28 real).
    # w1_ref[di]: [32, 256] banded; result lane n = parity*128 + pw*10 + c,
    # i.e. output column ow = 2*pw + parity, so width pooling = max of halves.
    # Processed in 3 chunks of 8 conv rows -> accumulator is only 16 vregs.
    b1 = b1_ref[...]                                            # [1, 128]
    for c in range(3):
        acc = jnp.zeros((8 * BLK, 256), f32)
        for di in range(5):
            r = (8 * c + di) * BLK
            lhs = x_ref[0, r:r + 8 * BLK, :].astype(bf16)       # [64, 32]
            acc = acc + jnp.dot(lhs, w1_ref[di], preferred_element_type=f32)
        wpool = jnp.maximum(acc[:, :LANES], acc[:, LANES:])     # width pool [64,128]
        for i in range(4):                                      # height pool + bias + relu
            r0 = 16 * i
            row = jnp.maximum(wpool[r0:r0 + 8, :], wpool[r0 + 8:r0 + 16, :]) + b1
            a1_s[32 * c + 8 * i: 32 * c + 8 * i + 8, :] = jnp.maximum(row, 0.0)

    # ---- conv2 (5x5, 10->20): 5 banded matmuls over kernel row di -----------
    # LHS_di = a1 rows (oh+di, img): a contiguous aligned [64, 128] slice.
    # K lanes pack (input col pw, cin) (120 real); result lanes pack
    # (parity, output col pwf, cout) so width pooling is again max of halves.
    acc2 = jnp.zeros((8 * BLK, 256), f32)
    for di in range(5):
        lhs = a1_s[BLK * di: BLK * di + 8 * BLK, :].astype(bf16)   # [64, 128]
        acc2 = acc2 + jnp.dot(lhs, w2_ref[di], preferred_element_type=f32)

    # ---- pool2 + bias + relu fused with the fc1 accumulation ----------------
    wpool2 = jnp.maximum(acc2[:, :LANES], acc2[:, LANES:])      # [64, 128]
    b2 = b2_ref[...]
    accf = jnp.zeros((BLK, LANES), f32)
    for ph in range(4):
        r0 = 16 * ph
        p = jnp.maximum(wpool2[r0:r0 + 8, :], wpool2[r0 + 8:r0 + 16, :]) + b2
        p = jnp.maximum(p, 0.0)                                 # [8(img), 128]
        accf = accf + jnp.dot(p.astype(bf16), wf1_ref[ph],
                              preferred_element_type=f32)

    # ---- fc1 relu -> fc2 -> log_softmax (one row per image) -----------------
    h = jnp.maximum(accf + bf1_ref[...], 0.0)                   # [8, 128]
    logits = jnp.dot(h.astype(bf16), wf2_ref[...],
                     preferred_element_type=f32) + bf2_ref[...]
    m = jnp.max(logits, axis=-1, keepdims=True)
    s = logits - m
    lse = jnp.log(jnp.sum(jnp.exp(s), axis=-1, keepdims=True))
    o_ref[0] = s - lse


# ------------------------------ weight packing -------------------------------
def pack_params(p):
    """One-time repack of PyTorch-layout weights into banded, lane-dense bf16
    MXU layouts.  All 5x5 tap / output-column structure is folded into
    zero-padded weight columns so the kernel never builds im2col buffers."""
    f32 = np.float32
    w1 = np.asarray(p["conv1_w"], f32)          # [10, 1, 5, 5]
    w2 = np.asarray(p["conv2_w"], f32)          # [20, 10, 5, 5]
    f1 = np.asarray(p["fc1_w"], f32)            # [50, 320]
    f2 = np.asarray(p["fc2_w"], f32)            # [10, 50]

    # conv1: k = input column w_in (28 real of 32),
    #        n = parity*128 + pw*10 + c   (output column ow = 2*pw + parity).
    w1band = np.zeros((5, 32, 256), f32)
    for di in range(5):
        for dj in range(5):
            for parity in range(2):
                for pw in range(12):
                    ow = 2 * pw + parity
                    n0 = parity * 128 + pw * 10
                    w1band[di, ow + dj, n0:n0 + 10] = w1[:, 0, di, dj]

    # conv2: k = pw*10 + cin (pooled conv1 lane layout),
    #        n = parity*128 + pwf*20 + cout (output column owc = 2*pwf+parity).
    w2band = np.zeros((5, 128, 256), f32)
    for di in range(5):
        for dj in range(5):
            for parity in range(2):
                for pwf in range(4):
                    owc = 2 * pwf + parity
                    pw = owc + dj
                    n0 = parity * 128 + pwf * 20
                    w2band[di, pw * 10:pw * 10 + 10, n0:n0 + 20] = w2[:, :, di, dj].T

    # fc1: 4 matmuls (one per pooled row ph); k = pwf*20 + cout, n = hidden.
    # PyTorch flatten order of [20, 4, 4] is f = cout*16 + ph*4 + pwf.
    wf1band = np.zeros((4, 128, 128), f32)
    for ph in range(4):
        for pwf in range(4):
            for co in range(20):
                wf1band[ph, pwf * 20 + co, 0:50] = f1[:, co * 16 + ph * 4 + pwf]

    wf2p = np.zeros((128, 128), f32)
    wf2p[:50, :10] = f2.T

    b1p = np.zeros((1, 128), f32)
    b1p[0, :120] = np.tile(np.asarray(p["conv1_b"], f32), 12)
    b2p = np.zeros((1, 128), f32)
    b2p[0, :80] = np.tile(np.asarray(p["conv2_b"], f32), 4)
    bf1p = np.zeros((1, 128), f32)
    bf1p[0, :50] = np.asarray(p["fc1_b"], f32)
    bf2p = np.full((1, 128), NEG_INF, f32)      # -inf on padded class lanes
    bf2p[0, :10] = np.asarray(p["fc2_b"], f32)

    bf16 = jnp.bfloat16
    return dict(
        w1=jnp.asarray(w1band, bf16), b1=jnp.asarray(b1p),
        w2=jnp.asarray(w2band, bf16), b2=jnp.asarray(b2p),
        wf1=jnp.asarray(wf1band, bf16), bf1=jnp.asarray(bf1p),
        wf2=jnp.asarray(wf2p, bf16), bf2=jnp.asarray(bf2p))


# ------------------------------ wrapper --------------------------------------
@jax.jit
def net_forward(packed, x):
    """Eval-mode forward. x: [B, 1, 28, 28] float32 -> log-probs [B, 10]."""
    # TODO(synk): Dropout2d / F.dropout are identity here (eval mode);
    # training-mode RNG dropout not implemented.
    B = x.shape[0]
    nblk = (B + BLK - 1) // BLK
    Bp = nblk * BLK
    xs = x.reshape(B, 28, 28)
    if Bp != B:
        xs = jnp.concatenate([xs, jnp.zeros((Bp - B, 28, 28), xs.dtype)], 0)
    # [blk, h*img, w]: image index packed under each row, width dense in lanes.
    xs = xs.reshape(nblk, BLK, 28, 28).transpose(0, 2, 1, 3)
    xs = xs.reshape(nblk, 28 * BLK, 28)
    xs = jnp.pad(xs, ((0, 0), (0, 0), (0, 4)))                  # w: 28 -> 32

    grid_spec = pltpu.PrefetchScalarGridSpec(
        num_scalar_prefetch=0,
        grid=(nblk,),
        in_specs=[
            pl.BlockSpec((1, 28 * BLK, 32), lambda b: (b, 0, 0)),
            # Constant-index weight blocks (fetched once, stay resident).
            pl.BlockSpec((5, 32, 256), lambda b: (0, 0, 0)),
            pl.BlockSpec((1, LANES), lambda b: (0, 0)),
            pl.BlockSpec((5, 128, 256), lambda b: (0, 0, 0)),
            pl.BlockSpec((1, LANES), lambda b: (0, 0)),
            pl.BlockSpec((4, 128, 128), lambda b: (0, 0, 0)),
            pl.BlockSpec((1, LANES), lambda b: (0, 0)),
            pl.BlockSpec((LANES, LANES), lambda b: (0, 0)),
            pl.BlockSpec((1, LANES), lambda b: (0, 0)),
        ],
        out_specs=pl.BlockSpec((1, BLK, LANES), lambda b: (b, 0, 0)),
        scratch_shapes=[pltpu.VMEM((12 * BLK, LANES), jnp.float32)],  # pooled conv1
    )
    out = pl.pallas_call(
        _net_kernel,
        out_shape=jax.ShapeDtypeStruct((nblk, BLK, LANES), jnp.float32),
        grid_spec=grid_spec,
        compiler_params=pltpu.CompilerParams(
            dimension_semantics=("parallel",),
            vmem_limit_bytes=32 * 1024 * 1024),
    )(xs, packed["w1"], packed["b1"], packed["w2"], packed["b2"],
      packed["wf1"], packed["bf1"], packed["wf2"], packed["bf2"])
    return out.reshape(Bp, LANES)[:B, :10]


# ------------------------------ reference / init -----------------------------
def init_params(key):
    ks = jax.random.split(key, 8)

    def uniform(k, shape, fan_in):
        bound = 1.0 / jnp.sqrt(jnp.float32(fan_in))
        return jax.random.uniform(k, shape, jnp.float32, -bound, bound)

    return {
        "conv1_w": uniform(ks[0], (10, 1, 5, 5), 1 * 5 * 5),
        "conv1_b": uniform(ks[1], (10,), 1 * 5 * 5),
        "conv2_w": uniform(ks[2], (20, 10, 5, 5), 10 * 5 * 5),
        "conv2_b": uniform(ks[3], (20,), 10 * 5 * 5),
        "fc1_w": uniform(ks[4], (50, 320), 320),
        "fc1_b": uniform(ks[5], (50,), 320),
        "fc2_w": uniform(ks[6], (10, 50), 50),
        "fc2_b": uniform(ks[7], (10,), 50),
    }


def ref_forward(params, x):
    """Pure-JAX reference matching the PyTorch module (eval mode)."""
    hp = lax.Precision.HIGHEST
    B = x.shape[0]

    def conv(v, w, b):
        o = lax.conv_general_dilated(v, w, (1, 1), "VALID",
                                     dimension_numbers=("NCHW", "OIHW", "NCHW"),
                                     precision=hp)
        return o + b[None, :, None, None]

    v = conv(x, params["conv1_w"], params["conv1_b"])              # [B,10,24,24]
    v = jnp.maximum(jnp.max(v.reshape(B, 10, 12, 2, 12, 2), axis=(3, 5)), 0.0)
    v = conv(v, params["conv2_w"], params["conv2_b"])              # [B,20,8,8]
    v = jnp.maximum(jnp.max(v.reshape(B, 20, 4, 2, 4, 2), axis=(3, 5)), 0.0)
    v = v.reshape(B, 320)
    v = jnp.maximum(jnp.dot(v, params["fc1_w"].T, precision=hp) + params["fc1_b"], 0.0)
    v = jnp.dot(v, params["fc2_w"].T, precision=hp) + params["fc2_b"]
    return jax.nn.log_softmax(v, axis=-1)


if __name__ == "__main__":
    key = jax.random.PRNGKey(0)
    k_in, k_par = jax.random.split(key)
    B = 16                                   # two 8-image blocks -> grid of 2
    x = jax.random.normal(k_in, (B, 1, 28, 28), dtype=jnp.float32)
    params = init_params(k_par)
    packed = pack_params(params)

    out = net_forward(packed, x)
    out = jax.block_until_ready(out)

    assert out.shape == (B, 10), out.shape
    row_sums = jnp.exp(out).sum(axis=-1)
    assert jnp.allclose(row_sums, 1.0, atol=1e-4), row_sums

    ref = ref_forward(params, x)
    max_err = float(jnp.max(jnp.abs(out - ref)))
    assert max_err < 5e-2, f"mismatch vs reference: {max_err}"
    print("KERNEL_OK")
</pallas_src>

<mosaic_0001>
module attributes {stable_mosaic.version = 11 : i64} {
  func.func @_net_kernel(%arg0: i32, %arg1: memref<1x224x32xf32, #tpu.memory_space<vmem>>, %arg2: memref<5x32x256xbf16, #tpu.memory_space<vmem>>, %arg3: memref<1x128xf32, #tpu.memory_space<vmem>>, %arg4: memref<5x128x256xbf16, #tpu.memory_space<vmem>>, %arg5: memref<1x128xf32, #tpu.memory_space<vmem>>, %arg6: memref<4x128x128xbf16, #tpu.memory_space<vmem>>, %arg7: memref<1x128xf32, #tpu.memory_space<vmem>>, %arg8: memref<128x128xbf16, #tpu.memory_space<vmem>>, %arg9: memref<1x128xf32, #tpu.memory_space<vmem>>, %arg10: memref<1x8x128xf32, #tpu.memory_space<vmem>>, %arg11: memref<96x128xf32, #tpu.memory_space<vmem>>) attributes {dimension_semantics = [#tpu.dimension_semantics<parallel>], iteration_bounds = array<i64: 2>, scalar_prefetch = 0 : i64, scratch_operands = 1 : i64, tpu.core_type = #tpu.core_type<tc>, window_params = [{transform_indices = @transform_0, window_bounds = array<i64: 1, 224, 32>}, {pipeline_mode = #tpu.pipeline_mode<synchronous>, transform_indices = @transform_1, window_bounds = array<i64: 5, 32, 256>}, {pipeline_mode = #tpu.pipeline_mode<synchronous>, transform_indices = @transform_2, window_bounds = array<i64: 1, 128>}, {pipeline_mode = #tpu.pipeline_mode<synchronous>, transform_indices = @transform_3, window_bounds = array<i64: 5, 128, 256>}, {pipeline_mode = #tpu.pipeline_mode<synchronous>, transform_indices = @transform_4, window_bounds = array<i64: 1, 128>}, {pipeline_mode = #tpu.pipeline_mode<synchronous>, transform_indices = @transform_5, window_bounds = array<i64: 4, 128, 128>}, {pipeline_mode = #tpu.pipeline_mode<synchronous>, transform_indices = @transform_6, window_bounds = array<i64: 1, 128>}, {pipeline_mode = #tpu.pipeline_mode<synchronous>, transform_indices = @transform_7, window_bounds = array<i64: 128, 128>}, {pipeline_mode = #tpu.pipeline_mode<synchronous>, transform_indices = @transform_8, window_bounds = array<i64: 1, 128>}, {transform_indices = @transform_9, window_bounds = array<i64: 1, 8, 128>}]} {
    %c0 = arith.constant 0 : index
    %c0_0 = arith.constant 0 : index
    %0 = vector.load %arg3[%c0, %c0_0] : memref<1x128xf32, #tpu.memory_space<vmem>>, vector<1x128xf32>
    %cst = arith.constant 0.000000e+00 : f32
    %1 = vector.broadcast %cst : f32 to vector<64x256xf32>
    %c0_1 = arith.constant 0 : index
    %c0_2 = arith.constant 0 : index
    %c0_3 = arith.constant 0 : index
    %2 = vector.load %arg1[%c0_1, %c0_2, %c0_3] : memref<1x224x32xf32, #tpu.memory_space<vmem>>, vector<1x64x32xf32>
    %3 = vector.shape_cast %2 : vector<1x64x32xf32> to vector<64x32xf32>
    %4 = arith.truncf %3 : vector<64x32xf32> to vector<64x32xbf16>
    %c0_4 = arith.constant 0 : index
    %c0_5 = arith.constant 0 : index
    %c0_6 = arith.constant 0 : index
    %5 = vector.load %arg2[%c0_4, %c0_5, %c0_6] : memref<5x32x256xbf16, #tpu.memory_space<vmem>>, vector<1x32x256xbf16>
    %6 = vector.shape_cast %5 : vector<1x32x256xbf16> to vector<32x256xbf16>
    %cst_7 = arith.constant dense<0.000000e+00> : vector<64x256xf32>
    %7 = tpu.matmul %4, %6, %cst_7 {dimension_numbers = #tpu.dot_dimension_numbers<[1], [0], [0], [1], [0, 0, 1, 1], [], []>} : vector<64x32xbf16>, vector<32x256xbf16>, vector<64x256xf32> -> vector<64x256xf32>
    %8 = arith.addf %1, %7 : vector<64x256xf32>
    %c0_8 = arith.constant 0 : index
    %c8 = arith.constant 8 : index
    %c0_9 = arith.constant 0 : index
    %9 = vector.load %arg1[%c0_8, %c8, %c0_9] : memref<1x224x32xf32, #tpu.memory_space<vmem>>, vector<1x64x32xf32>
    %10 = vector.shape_cast %9 : vector<1x64x32xf32> to vector<64x32xf32>
    %11 = arith.truncf %10 : vector<64x32xf32> to vector<64x32xbf16>
    %c1 = arith.constant 1 : index
    %c0_10 = arith.constant 0 : index
    %c0_11 = arith.constant 0 : index
    %12 = vector.load %arg2[%c1, %c0_10, %c0_11] : memref<5x32x256xbf16, #tpu.memory_space<vmem>>, vector<1x32x256xbf16>
    %13 = vector.shape_cast %12 : vector<1x32x256xbf16> to vector<32x256xbf16>
    %cst_12 = arith.constant dense<0.000000e+00> : vector<64x256xf32>
    %14 = tpu.matmul %11, %13, %cst_12 {dimension_numbers = #tpu.dot_dimension_numbers<[1], [0], [0], [1], [0, 0, 1, 1], [], []>} : vector<64x32xbf16>, vector<32x256xbf16>, vector<64x256xf32> -> vector<64x256xf32>
    %15 = arith.addf %8, %14 : vector<64x256xf32>
    %c0_13 = arith.constant 0 : index
    %c16 = arith.constant 16 : index
    %c0_14 = arith.constant 0 : index
    %16 = vector.load %arg1[%c0_13, %c16, %c0_14] : memref<1x224x32xf32, #tpu.memory_space<vmem>>, vector<1x64x32xf32>
    %17 = vector.shape_cast %16 : vector<1x64x32xf32> to vector<64x32xf32>
    %18 = arith.truncf %17 : vector<64x32xf32> to vector<64x32xbf16>
    %c2 = arith.constant 2 : index
    %c0_15 = arith.constant 0 : index
    %c0_16 = arith.constant 0 : index
    %19 = vector.load %arg2[%c2, %c0_15, %c0_16] : memref<5x32x256xbf16, #tpu.memory_space<vmem>>, vector<1x32x256xbf16>
    %20 = vector.shape_cast %19 : vector<1x32x256xbf16> to vector<32x256xbf16>
    %cst_17 = arith.constant dense<0.000000e+00> : vector<64x256xf32>
    %21 = tpu.matmul %18, %20, %cst_17 {dimension_numbers = #tpu.dot_dimension_numbers<[1], [0], [0], [1], [0, 0, 1, 1], [], []>} : vector<64x32xbf16>, vector<32x256xbf16>, vector<64x256xf32> -> vector<64x256xf32>
    %22 = arith.addf %15, %21 : vector<64x256xf32>
    %c0_18 = arith.constant 0 : index
    %c24 = arith.constant 24 : index
    %c0_19 = arith.constant 0 : index
    %23 = vector.load %arg1[%c0_18, %c24, %c0_19] : memref<1x224x32xf32, #tpu.memory_space<vmem>>, vector<1x64x32xf32>
    %24 = vector.shape_cast %23 : vector<1x64x32xf32> to vector<64x32xf32>
    %25 = arith.truncf %24 : vector<64x32xf32> to vector<64x32xbf16>
    %c3 = arith.constant 3 : index
    %c0_20 = arith.constant 0 : index
    %c0_21 = arith.constant 0 : index
    %26 = vector.load %arg2[%c3, %c0_20, %c0_21] : memref<5x32x256xbf16, #tpu.memory_space<vmem>>, vector<1x32x256xbf16>
    %27 = vector.shape_cast %26 : vector<1x32x256xbf16> to vector<32x256xbf16>
    %cst_22 = arith.constant dense<0.000000e+00> : vector<64x256xf32>
    %28 = tpu.matmul %25, %27, %cst_22 {dimension_numbers = #tpu.dot_dimension_numbers<[1], [0], [0], [1], [0, 0, 1, 1], [], []>} : vector<64x32xbf16>, vector<32x256xbf16>, vector<64x256xf32> -> vector<64x256xf32>
    %29 = arith.addf %22, %28 : vector<64x256xf32>
    %c0_23 = arith.constant 0 : index
    %c32 = arith.constant 32 : index
    %c0_24 = arith.constant 0 : index
    %30 = vector.load %arg1[%c0_23, %c32, %c0_24] : memref<1x224x32xf32, #tpu.memory_space<vmem>>, vector<1x64x32xf32>
    %31 = vector.shape_cast %30 : vector<1x64x32xf32> to vector<64x32xf32>
    %32 = arith.truncf %31 : vector<64x32xf32> to vector<64x32xbf16>
    %c4 = arith.constant 4 : index
    %c0_25 = arith.constant 0 : index
    %c0_26 = arith.constant 0 : index
    %33 = vector.load %arg2[%c4, %c0_25, %c0_26] : memref<5x32x256xbf16, #tpu.memory_space<vmem>>, vector<1x32x256xbf16>
    %34 = vector.shape_cast %33 : vector<1x32x256xbf16> to vector<32x256xbf16>
    %cst_27 = arith.constant dense<0.000000e+00> : vector<64x256xf32>
    %35 = tpu.matmul %32, %34, %cst_27 {dimension_numbers = #tpu.dot_dimension_numbers<[1], [0], [0], [1], [0, 0, 1, 1], [], []>} : vector<64x32xbf16>, vector<32x256xbf16>, vector<64x256xf32> -> vector<64x256xf32>
    %36 = arith.addf %29, %35 : vector<64x256xf32>
    %37 = vector.extract_strided_slice %36 {offsets = [0, 0], sizes = [64, 128], strides = [1, 1]} : vector<64x256xf32> to vector<64x128xf32>
    %38 = vector.extract_strided_slice %36 {offsets = [0, 128], sizes = [64, 128], strides = [1, 1]} : vector<64x256xf32> to vector<64x128xf32>
    %39 = arith.maximumf %37, %38 : vector<64x128xf32>
    %40 = vector.extract_strided_slice %39 {offsets = [0, 0], sizes = [8, 128], strides = [1, 1]} : vector<64x128xf32> to vector<8x128xf32>
    %41 = vector.extract_strided_slice %39 {offsets = [8, 0], sizes = [8, 128], strides = [1, 1]} : vector<64x128xf32> to vector<8x128xf32>
    %42 = arith.maximumf %40, %41 : vector<8x128xf32>
    %43 = vector.broadcast %0 : vector<1x128xf32> to vector<8x128xf32>
    %44 = arith.addf %42, %43 : vector<8x128xf32>
    %cst_28 = arith.constant 0.000000e+00 : f32
    %45 = vector.broadcast %cst_28 : f32 to vector<8x128xf32>
    %46 = arith.maximumf %44, %45 : vector<8x128xf32>
    %c0_29 = arith.constant 0 : index
    %c0_30 = arith.constant 0 : index
    %47 = vector.load %arg11[%c0_29, %c0_30] : memref<96x128xf32, #tpu.memory_space<vmem>>, vector<8x128xf32>
    tpu.vector_store %arg11[%c0_29, %c0_30], %46 {strides = array<i32>} : memref<96x128xf32, #tpu.memory_space<vmem>>, vector<8x128xf32>,
    %48 = vector.extract_strided_slice %39 {offsets = [16, 0], sizes = [8, 128], strides = [1, 1]} : vector<64x128xf32> to vector<8x128xf32>
    %49 = vector.extract_strided_slice %39 {offsets = [24, 0], sizes = [8, 128], strides = [1, 1]} : vector<64x128xf32> to vector<8x128xf32>
    %50 = arith.maximumf %48, %49 : vector<8x128xf32>
    %51 = vector.broadcast %0 : vector<1x128xf32> to vector<8x128xf32>
    %52 = arith.addf %50, %51 : vector<8x128xf32>
    %cst_31 = arith.constant 0.000000e+00 : f32
    %53 = vector.broadcast %cst_31 : f32 to vector<8x128xf32>
    %54 = arith.maximumf %52, %53 : vector<8x128xf32>
    %c8_32 = arith.constant 8 : index
    %c0_33 = arith.constant 0 : index
    %55 = vector.load %arg11[%c8_32, %c0_33] : memref<96x128xf32, #tpu.memory_space<vmem>>, vector<8x128xf32>
    tpu.vector_store %arg11[%c8_32, %c0_33], %54 {strides = array<i32>} : memref<96x128xf32, #tpu.memory_space<vmem>>, vector<8x128xf32>,
    %56 = vector.extract_strided_slice %39 {offsets = [32, 0], sizes = [8, 128], strides = [1, 1]} : vector<64x128xf32> to vector<8x128xf32>
    %57 = vector.extract_strided_slice %39 {offsets = [40, 0], sizes = [8, 128], strides = [1, 1]} : vector<64x128xf32> to vector<8x128xf32>
    %58 = arith.maximumf %56, %57 : vector<8x128xf32>
    %59 = vector.broadcast %0 : vector<1x128xf32> to vector<8x128xf32>
    %60 = arith.addf %58, %59 : vector<8x128xf32>
    %cst_34 = arith.constant 0.000000e+00 : f32
    %61 = vector.broadcast %cst_34 : f32 to vector<8x128xf32>
    %62 = arith.maximumf %60, %61 : vector<8x128xf32>
    %c16_35 = arith.constant 16 : index
    %c0_36 = arith.constant 0 : index
    %63 = vector.load %arg11[%c16_35, %c0_36] : memref<96x128xf32, #tpu.memory_space<vmem>>, vector<8x128xf32>
    tpu.vector_store %arg11[%c16_35, %c0_36], %62 {strides = array<i32>} : memref<96x128xf32, #tpu.memory_space<vmem>>, vector<8x128xf32>,
    %64 = vector.extract_strided_slice %39 {offsets = [48, 0], sizes = [8, 128], strides = [1, 1]} : vector<64x128xf32> to vector<8x128xf32>
    %65 = vector.extract_strided_slice %39 {offsets = [56, 0], sizes = [8, 128], strides = [1, 1]} : vector<64x128xf32> to vector<8x128xf32>
    %66 = arith.maximumf %64, %65 : vector<8x128xf32>
    %67 = vector.broadcast %0 : vector<1x128xf32> to vector<8x128xf32>
    %68 = arith.addf %66, %67 : vector<8x128xf32>
    %cst_37 = arith.constant 0.000000e+00 : f32
    %69 = vector.broadcast %cst_37 : f32 to vector<8x128xf32>
    %70 = arith.maximumf %68, %69 : vector<8x128xf32>
    %c24_38 = arith.constant 24 : index
    %c0_39 = arith.constant 0 : index
    %71 = vector.load %arg11[%c24_38, %c0_39] : memref<96x128xf32, #tpu.memory_space<vmem>>, vector<8x128xf32>
    tpu.vector_store %arg11[%c24_38, %c0_39], %70 {strides = array<i32>} : memref<96x128xf32, #tpu.memory_space<vmem>>, vector<8x128xf32>,
    %cst_40 = arith.constant 0.000000e+00 : f32
    %72 = vector.broadcast %cst_40 : f32 to vector<64x256xf32>
    %c0_41 = arith.constant 0 : index
    %c64 = arith.constant 64 : index
    %c0_42 = arith.constant 0 : index
    %73 = vector.load %arg1[%c0_41, %c64, %c0_42] : memref<1x224x32xf32, #tpu.memory_space<vmem>>, vector<1x64x32xf32>
    %74 = vector.shape_cast %73 : vector<1x64x32xf32> to vector<64x32xf32>
    %75 = arith.truncf %74 : vector<64x32xf32> to vector<64x32xbf16>
    %c0_43 = arith.constant 0 : index
    %c0_44 = arith.constant 0 : index
    %c0_45 = arith.constant 0 : index
    %76 = vector.load %arg2[%c0_43, %c0_44, %c0_45] : memref<5x32x256xbf16, #tpu.memory_space<vmem>>, vector<1x32x256xbf16>
    %77 = vector.shape_cast %76 : vector<1x32x256xbf16> to vector<32x256xbf16>
    %cst_46 = arith.constant dense<0.000000e+00> : vector<64x256xf32>
    %78 = tpu.matmul %75, %77, %cst_46 {dimension_numbers = #tpu.dot_dimension_numbers<[1], [0], [0], [1], [0, 0, 1, 1], [], []>} : vector<64x32xbf16>, vector<32x256xbf16>, vector<64x256xf32> -> vector<64x256xf32>
    %79 = arith.addf %72, %78 : vector<64x256xf32>
    %c0_47 = arith.constant 0 : index
    %c72 = arith.constant 72 : index
    %c0_48 = arith.constant 0 : index
    %80 = vector.load %arg1[%c0_47, %c72, %c0_48] : memref<1x224x32xf32, #tpu.memory_space<vmem>>, vector<1x64x32xf32>
    %81 = vector.shape_cast %80 : vector<1x64x32xf32> to vector<64x32xf32>
    %82 = arith.truncf %81 : vector<64x32xf32> to vector<64x32xbf16>
    %c1_49 = arith.constant 1 : index
    %c0_50 = arith.constant 0 : index
    %c0_51 = arith.constant 0 : index
    %83 = vector.load %arg2[%c1_49, %c0_50, %c0_51] : memref<5x32x256xbf16, #tpu.memory_space<vmem>>, vector<1x32x256xbf16>
    %84 = vector.shape_cast %83 : vector<1x32x256xbf16> to vector<32x256xbf16>
    %cst_52 = arith.constant dense<0.000000e+00> : vector<64x256xf32>
    %85 = tpu.matmul %82, %84, %cst_52 {dimension_numbers = #tpu.dot_dimension_numbers<[1], [0], [0], [1], [0, 0, 1, 1], [], []>} : vector<64x32xbf16>, vector<32x256xbf16>, vector<64x256xf32> -> vector<64x256xf32>
    %86 = arith.addf %79, %85 : vector<64x256xf32>
    %c0_53 = arith.constant 0 : index
    %c80 = arith.constant 80 : index
    %c0_54 = arith.constant 0 : index
    %87 = vector.load %arg1[%c0_53, %c80, %c0_54] : memref<1x224x32xf32, #tpu.memory_space<vmem>>, vector<1x64x32xf32>
    %88 = vector.shape_cast %87 : vector<1x64x32xf32> to vector<64x32xf32>
    %89 = arith.truncf %88 : vector<64x32xf32> to vector<64x32xbf16>
    %c2_55 = arith.constant 2 : index
    %c0_56 = arith.constant 0 : index
    %c0_57 = arith.constant 0 : index
    %90 = vector.load %arg2[%c2_55, %c0_56, %c0_57] : memref<5x32x256xbf16, #tpu.memory_space<vmem>>, vector<1x32x256xbf16>
    %91 = vector.shape_cast %90 : vector<1x32x256xbf16> to vector<32x256xbf16>
    %cst_58 = arith.constant dense<0.000000e+00> : vector<64x256xf32>
    %92 = tpu.matmul %89, %91, %cst_58 {dimension_numbers = #tpu.dot_dimension_numbers<[1], [0], [0], [1], [0, 0, 1, 1], [], []>} : vector<64x32xbf16>, vector<32x256xbf16>, vector<64x256xf32> -> vector<64x256xf32>
    %93 = arith.addf %86, %92 : vector<64x256xf32>
    %c0_59 = arith.constant 0 : index
    %c88 = arith.constant 88 : index
    %c0_60 = arith.constant 0 : index
    %94 = vector.load %arg1[%c0_59, %c88, %c0_60] : memref<1x224x32xf32, #tpu.memory_space<vmem>>, vector<1x64x32xf32>
    %95 = vector.shape_cast %94 : vector<1x64x32xf32> to vector<64x32xf32>
    %96 = arith.truncf %95 : vector<64x32xf32> to vector<64x32xbf16>
    %c3_61 = arith.constant 3 : index
    %c0_62 = arith.constant 0 : index
    %c0_63 = arith.constant 0 : index
    %97 = vector.load %arg2[%c3_61, %c0_62, %c0_63] : memref<5x32x256xbf16, #tpu.memory_space<vmem>>, vector<1x32x256xbf16>
    %98 = vector.shape_cast %97 : vector<1x32x256xbf16> to vector<32x256xbf16>
    %cst_64 = arith.constant dense<0.000000e+00> : vector<64x256xf32>
    %99 = tpu.matmul %96, %98, %cst_64 {dimension_numbers = #tpu.dot_dimension_numbers<[1], [0], [0], [1], [0, 0, 1, 1], [], []>} : vector<64x32xbf16>, vector<32x256xbf16>, vector<64x256xf32> -> vector<64x256xf32>
    %100 = arith.addf %93, %99 : vector<64x256xf32>
    %c0_65 = arith.constant 0 : index
    %c96 = arith.constant 96 : index
    %c0_66 = arith.constant 0 : index
    %101 = vector.load %arg1[%c0_65, %c96, %c0_66] : memref<1x224x32xf32, #tpu.memory_space<vmem>>, vector<1x64x32xf32>
    %102 = vector.shape_cast %101 : vector<1x64x32xf32> to vector<64x32xf32>
    %103 = arith.truncf %102 : vector<64x32xf32> to vector<64x32xbf16>
    %c4_67 = arith.constant 4 : index
    %c0_68 = arith.constant 0 : index
    %c0_69 = arith.constant 0 : index
    %104 = vector.load %arg2[%c4_67, %c0_68, %c0_69] : memref<5x32x256xbf16, #tpu.memory_space<vmem>>, vector<1x32x256xbf16>
    %105 = vector.shape_cast %104 : vector<1x32x256xbf16> to vector<32x256xbf16>
    %cst_70 = arith.constant dense<0.000000e+00> : vector<64x256xf32>
    %106 = tpu.matmul %103, %105, %cst_70 {dimension_numbers = #tpu.dot_dimension_numbers<[1], [0], [0], [1], [0, 0, 1, 1], [], []>} : vector<64x32xbf16>, vector<32x256xbf16>, vector<64x256xf32> -> vector<64x256xf32>
    %107 = arith.addf %100, %106 : vector<64x256xf32>
    %108 = vector.extract_strided_slice %107 {offsets = [0, 0], sizes = [64, 128], strides = [1, 1]} : vector<64x256xf32> to vector<64x128xf32>
    %109 = vector.extract_strided_slice %107 {offsets = [0, 128], sizes = [64, 128], strides = [1, 1]} : vector<64x256xf32> to vector<64x128xf32>
    %110 = arith.maximumf %108, %109 : vector<64x128xf32>
    %111 = vector.extract_strided_slice %110 {offsets = [0, 0], sizes = [8, 128], strides = [1, 1]} : vector<64x128xf32> to vector<8x128xf32>
    %112 = vector.extract_strided_slice %110 {offsets = [8, 0], sizes = [8, 128], strides = [1, 1]} : vector<64x128xf32> to vector<8x128xf32>
    %113 = arith.maximumf %111, %112 : vector<8x128xf32>
    %114 = vector.broadcast %0 : vector<1x128xf32> to vector<8x128xf32>
    %115 = arith.addf %113, %114 : vector<8x128xf32>
    %cst_71 = arith.constant 0.000000e+00 : f32
    %116 = vector.broadcast %cst_71 : f32 to vector<8x128xf32>
    %117 = arith.maximumf %115, %116 : vector<8x128xf32>
    %c32_72 = arith.constant 32 : index
    %c0_73 = arith.constant 0 : index
    %118 = vector.load %arg11[%c32_72, %c0_73] : memref<96x128xf32, #tpu.memory_space<vmem>>, vector<8x128xf32>
    tpu.vector_store %arg11[%c32_72, %c0_73], %117 {strides = array<i32>} : memref<96x128xf32, #tpu.memory_space<vmem>>, vector<8x128xf32>,
    %119 = vector.extract_strided_slice %110 {offsets = [16, 0], sizes = [8, 128], strides = [1, 1]} : vector<64x128xf32> to vector<8x128xf32>
    %120 = vector.extract_strided_slice %110 {offsets = [24, 0], sizes = [8, 128], strides = [1, 1]} : vector<64x128xf32> to vector<8x128xf32>
    %121 = arith.maximumf %119, %120 : vector<8x128xf32>
    %122 = vector.broadcast %0 : vector<1x128xf32> to vector<8x128xf32>
    %123 = arith.addf %121, %122 : vector<8x128xf32>
    %cst_74 = arith.constant 0.000000e+00 : f32
    %124 = vector.broadcast %cst_74 : f32 to vector<8x128xf32>
    %125 = arith.maximumf %123, %124 : vector<8x128xf32>
    %c40 = arith.constant 40 : index
    %c0_75 = arith.constant 0 : index
    %126 = vector.load %arg11[%c40, %c0_75] : memref<96x128xf32, #tpu.memory_space<vmem>>, vector<8x128xf32>
    tpu.vector_store %arg11[%c40, %c0_75], %125 {strides = array<i32>} : memref<96x128xf32, #tpu.memory_space<vmem>>, vector<8x128xf32>,
    %127 = vector.extract_strided_slice %110 {offsets = [32, 0], sizes = [8, 128], strides = [1, 1]} : vector<64x128xf32> to vector<8x128xf32>
    %128 = vector.extract_strided_slice %110 {offsets = [40, 0], sizes = [8, 128], strides = [1, 1]} : vector<64x128xf32> to vector<8x128xf32>
    %129 = arith.maximumf %127, %128 : vector<8x128xf32>
    %130 = vector.broadcast %0 : vector<1x128xf32> to vector<8x128xf32>
    %131 = arith.addf %129, %130 : vector<8x128xf32>
    %cst_76 = arith.constant 0.000000e+00 : f32
    %132 = vector.broadcast %cst_76 : f32 to vector<8x128xf32>
    %133 = arith.maximumf %131, %132 : vector<8x128xf32>
    %c48 = arith.constant 48 : index
    %c0_77 = arith.constant 0 : index
    %134 = vector.load %arg11[%c48, %c0_77] : memref<96x128xf32, #tpu.memory_space<vmem>>, vector<8x128xf32>
    tpu.vector_store %arg11[%c48, %c0_77], %133 {strides = array<i32>} : memref<96x128xf32, #tpu.memory_space<vmem>>, vector<8x128xf32>,
    %135 = vector.extract_strided_slice %110 {offsets = [48, 0], sizes = [8, 128], strides = [1, 1]} : vector<64x128xf32> to vector<8x128xf32>
    %136 = vector.extract_strided_slice %110 {offsets = [56, 0], sizes = [8, 128], strides = [1, 1]} : vector<64x128xf32> to vector<8x128xf32>
    %137 = arith.maximumf %135, %136 : vector<8x128xf32>
    %138 = vector.broadcast %0 : vector<1x128xf32> to vector<8x128xf32>
    %139 = arith.addf %137, %138 : vector<8x128xf32>
    %cst_78 = arith.constant 0.000000e+00 : f32
    %140 = vector.broadcast %cst_78 : f32 to vector<8x128xf32>
    %141 = arith.maximumf %139, %140 : vector<8x128xf32>
    %c56 = arith.constant 56 : index
    %c0_79 = arith.constant 0 : index
    %142 = vector.load %arg11[%c56, %c0_79] : memref<96x128xf32, #tpu.memory_space<vmem>>, vector<8x128xf32>
    tpu.vector_store %arg11[%c56, %c0_79], %141 {strides = array<i32>} : memref<96x128xf32, #tpu.memory_space<vmem>>, vector<8x128xf32>,
    %cst_80 = arith.constant 0.000000e+00 : f32
    %143 = vector.broadcast %cst_80 : f32 to vector<64x256xf32>
    %c0_81 = arith.constant 0 : index
    %c128 = arith.constant 128 : index
    %c0_82 = arith.constant 0 : index
    %144 = vector.load %arg1[%c0_81, %c128, %c0_82] : memref<1x224x32xf32, #tpu.memory_space<vmem>>, vector<1x64x32xf32>
    %145 = vector.shape_cast %144 : vector<1x64x32xf32> to vector<64x32xf32>
    %146 = arith.truncf %145 : vector<64x32xf32> to vector<64x32xbf16>
    %c0_83 = arith.constant 0 : index
    %c0_84 = arith.constant 0 : index
    %c0_85 = arith.constant 0 : index
    %147 = vector.load %arg2[%c0_83, %c0_84, %c0_85] : memref<5x32x256xbf16, #tpu.memory_space<vmem>>, vector<1x32x256xbf16>
    %148 = vector.shape_cast %147 : vector<1x32x256xbf16> to vector<32x256xbf16>
    %cst_86 = arith.constant dense<0.000000e+00> : vector<64x256xf32>
    %149 = tpu.matmul %146, %148, %cst_86 {dimension_numbers = #tpu.dot_dimension_numbers<[1], [0], [0], [1], [0, 0, 1, 1], [], []>} : vector<64x32xbf16>, vector<32x256xbf16>, vector<64x256xf32> -> vector<64x256xf32>
    %150 = arith.addf %143, %149 : vector<64x256xf32>
    %c0_87 = arith.constant 0 : index
    %c136 = arith.constant 136 : index
    %c0_88 = arith.constant 0 : index
    %151 = vector.load %arg1[%c0_87, %c136, %c0_88] : memref<1x224x32xf32, #tpu.memory_space<vmem>>, vector<1x64x32xf32>
    %152 = vector.shape_cast %151 : vector<1x64x32xf32> to vector<64x32xf32>
    %153 = arith.truncf %152 : vector<64x32xf32> to vector<64x32xbf16>
    %c1_89 = arith.constant 1 : index
    %c0_90 = arith.constant 0 : index
    %c0_91 = arith.constant 0 : index
    %154 = vector.load %arg2[%c1_89, %c0_90, %c0_91] : memref<5x32x256xbf16, #tpu.memory_space<vmem>>, vector<1x32x256xbf16>
    %155 = vector.shape_cast %154 : vector<1x32x256xbf16> to vector<32x256xbf16>
    %cst_92 = arith.constant dense<0.000000e+00> : vector<64x256xf32>
    %156 = tpu.matmul %153, %155, %cst_92 {dimension_numbers = #tpu.dot_dimension_numbers<[1], [0], [0], [1], [0, 0, 1, 1], [], []>} : vector<64x32xbf16>, vector<32x256xbf16>, vector<64x256xf32> -> vector<64x256xf32>
    %157 = arith.addf %150, %156 : vector<64x256xf32>
    %c0_93 = arith.constant 0 : index
    %c144 = arith.constant 144 : index
    %c0_94 = arith.constant 0 : index
    %158 = vector.load %arg1[%c0_93, %c144, %c0_94] : memref<1x224x32xf32, #tpu.memory_space<vmem>>, vector<1x64x32xf32>
    %159 = vector.shape_cast %158 : vector<1x64x32xf32> to vector<64x32xf32>
    %160 = arith.truncf %159 : vector<64x32xf32> to vector<64x32xbf16>
    %c2_95 = arith.constant 2 : index
    %c0_96 = arith.constant 0 : index
    %c0_97 = arith.constant 0 : index
    %161 = vector.load %arg2[%c2_95, %c0_96, %c0_97] : memref<5x32x256xbf16, #tpu.memory_space<vmem>>, vector<1x32x256xbf16>
    %162 = vector.shape_cast %161 : vector<1x32x256xbf16> to vector<32x256xbf16>
    %cst_98 = arith.constant dense<0.000000e+00> : vector<64x256xf32>
    %163 = tpu.matmul %160, %162, %cst_98 {dimension_numbers = #tpu.dot_dimension_numbers<[1], [0], [0], [1], [0, 0, 1, 1], [], []>} : vector<64x32xbf16>, vector<32x256xbf16>, vector<64x256xf32> -> vector<64x256xf32>
    %164 = arith.addf %157, %163 : vector<64x256xf32>
    %c0_99 = arith.constant 0 : index
    %c152 = arith.constant 152 : index
    %c0_100 = arith.constant 0 : index
    %165 = vector.load %arg1[%c0_99, %c152, %c0_100] : memref<1x224x32xf32, #tpu.memory_space<vmem>>, vector<1x64x32xf32>
    %166 = vector.shape_cast %165 : vector<1x64x32xf32> to vector<64x32xf32>
    %167 = arith.truncf %166 : vector<64x32xf32> to vector<64x32xbf16>
    %c3_101 = arith.constant 3 : index
    %c0_102 = arith.constant 0 : index
    %c0_103 = arith.constant 0 : index
    %168 = vector.load %arg2[%c3_101, %c0_102, %c0_103] : memref<5x32x256xbf16, #tpu.memory_space<vmem>>, vector<1x32x256xbf16>
    %169 = vector.shape_cast %168 : vector<1x32x256xbf16> to vector<32x256xbf16>
    %cst_104 = arith.constant dense<0.000000e+00> : vector<64x256xf32>
    %170 = tpu.matmul %167, %169, %cst_104 {dimension_numbers = #tpu.dot_dimension_numbers<[1], [0], [0], [1], [0, 0, 1, 1], [], []>} : vector<64x32xbf16>, vector<32x256xbf16>, vector<64x256xf32> -> vector<64x256xf32>
    %171 = arith.addf %164, %170 : vector<64x256xf32>
    %c0_105 = arith.constant 0 : index
    %c160 = arith.constant 160 : index
    %c0_106 = arith.constant 0 : index
    %172 = vector.load %arg1[%c0_105, %c160, %c0_106] : memref<1x224x32xf32, #tpu.memory_space<vmem>>, vector<1x64x32xf32>
    %173 = vector.shape_cast %172 : vector<1x64x32xf32> to vector<64x32xf32>
    %174 = arith.truncf %173 : vector<64x32xf32> to vector<64x32xbf16>
    %c4_107 = arith.constant 4 : index
    %c0_108 = arith.constant 0 : index
    %c0_109 = arith.constant 0 : index
    %175 = vector.load %arg2[%c4_107, %c0_108, %c0_109] : memref<5x32x256xbf16, #tpu.memory_space<vmem>>, vector<1x32x256xbf16>
    %176 = vector.shape_cast %175 : vector<1x32x256xbf16> to vector<32x256xbf16>
    %cst_110 = arith.constant dense<0.000000e+00> : vector<64x256xf32>
    %177 = tpu.matmul %174, %176, %cst_110 {dimension_numbers = #tpu.dot_dimension_numbers<[1], [0], [0], [1], [0, 0, 1, 1], [], []>} : vector<64x32xbf16>, vector<32x256xbf16>, vector<64x256xf32> -> vector<64x256xf32>
    %178 = arith.addf %171, %177 : vector<64x256xf32>
    %179 = vector.extract_strided_slice %178 {offsets = [0, 0], sizes = [64, 128], strides = [1, 1]} : vector<64x256xf32> to vector<64x128xf32>
    %180 = vector.extract_strided_slice %178 {offsets = [0, 128], sizes = [64, 128], strides = [1, 1]} : vector<64x256xf32> to vector<64x128xf32>
    %181 = arith.maximumf %179, %180 : vector<64x128xf32>
    %182 = vector.extract_strided_slice %181 {offsets = [0, 0], sizes = [8, 128], strides = [1, 1]} : vector<64x128xf32> to vector<8x128xf32>
    %183 = vector.extract_strided_slice %181 {offsets = [8, 0], sizes = [8, 128], strides = [1, 1]} : vector<64x128xf32> to vector<8x128xf32>
    %184 = arith.maximumf %182, %183 : vector<8x128xf32>
    %185 = vector.broadcast %0 : vector<1x128xf32> to vector<8x128xf32>
    %186 = arith.addf %184, %185 : vector<8x128xf32>
    %cst_111 = arith.constant 0.000000e+00 : f32
    %187 = vector.broadcast %cst_111 : f32 to vector<8x128xf32>
    %188 = arith.maximumf %186, %187 : vector<8x128xf32>
    %c64_112 = arith.constant 64 : index
    %c0_113 = arith.constant 0 : index
    %189 = vector.load %arg11[%c64_112, %c0_113] : memref<96x128xf32, #tpu.memory_space<vmem>>, vector<8x128xf32>
    tpu.vector_store %arg11[%c64_112, %c0_113], %188 {strides = array<i32>} : memref<96x128xf32, #tpu.memory_space<vmem>>, vector<8x128xf32>,
    %190 = vector.extract_strided_slice %181 {offsets = [16, 0], sizes = [8, 128], strides = [1, 1]} : vector<64x128xf32> to vector<8x128xf32>
    %191 = vector.extract_strided_slice %181 {offsets = [24, 0], sizes = [8, 128], strides = [1, 1]} : vector<64x128xf32> to vector<8x128xf32>
    %192 = arith.maximumf %190, %191 : vector<8x128xf32>
    %193 = vector.broadcast %0 : vector<1x128xf32> to vector<8x128xf32>
    %194 = arith.addf %192, %193 : vector<8x128xf32>
    %cst_114 = arith.constant 0.000000e+00 : f32
    %195 = vector.broadcast %cst_114 : f32 to vector<8x128xf32>
    %196 = arith.maximumf %194, %195 : vector<8x128xf32>
    %c72_115 = arith.constant 72 : index
    %c0_116 = arith.constant 0 : index
    %197 = vector.load %arg11[%c72_115, %c0_116] : memref<96x128xf32, #tpu.memory_space<vmem>>, vector<8x128xf32>
    tpu.vector_store %arg11[%c72_115, %c0_116], %196 {strides = array<i32>} : memref<96x128xf32, #tpu.memory_space<vmem>>, vector<8x128xf32>,
    %198 = vector.extract_strided_slice %181 {offsets = [32, 0], sizes = [8, 128], strides = [1, 1]} : vector<64x128xf32> to vector<8x128xf32>
    %199 = vector.extract_strided_slice %181 {offsets = [40, 0], sizes = [8, 128], strides = [1, 1]} : vector<64x128xf32> to vector<8x128xf32>
    %200 = arith.maximumf %198, %199 : vector<8x128xf32>
    %201 = vector.broadcast %0 : vector<1x128xf32> to vector<8x128xf32>
    %202 = arith.addf %200, %201 : vector<8x128xf32>
    %cst_117 = arith.constant 0.000000e+00 : f32
    %203 = vector.broadcast %cst_117 : f32 to vector<8x128xf32>
    %204 = arith.maximumf %202, %203 : vector<8x128xf32>
    %c80_118 = arith.constant 80 : index
    %c0_119 = arith.constant 0 : index
    %205 = vector.load %arg11[%c80_118, %c0_119] : memref<96x128xf32, #tpu.memory_space<vmem>>, vector<8x128xf32>
    tpu.vector_store %arg11[%c80_118, %c0_119], %204 {strides = array<i32>} : memref<96x128xf32, #tpu.memory_space<vmem>>, vector<8x128xf32>,
    %206 = vector.extract_strided_slice %181 {offsets = [48, 0], sizes = [8, 128], strides = [1, 1]} : vector<64x128xf32> to vector<8x128xf32>
    %207 = vector.extract_strided_slice %181 {offsets = [56, 0], sizes = [8, 128], strides = [1, 1]} : vector<64x128xf32> to vector<8x128xf32>
    %208 = arith.maximumf %206, %207 : vector<8x128xf32>
    %209 = vector.broadcast %0 : vector<1x128xf32> to vector<8x128xf32>
    %210 = arith.addf %208, %209 : vector<8x128xf32>
    %cst_120 = arith.constant 0.000000e+00 : f32
    %211 = vector.broadcast %cst_120 : f32 to vector<8x128xf32>
    %212 = arith.maximumf %210, %211 : vector<8x128xf32>
    %c88_121 = arith.constant 88 : index
    %c0_122 = arith.constant 0 : index
    %213 = vector.load %arg11[%c88_121, %c0_122] : memref<96x128xf32, #tpu.memory_space<vmem>>, vector<8x128xf32>
    tpu.vector_store %arg11[%c88_121, %c0_122], %212 {strides = array<i32>} : memref<96x128xf32, #tpu.memory_space<vmem>>, vector<8x128xf32>,
    %cst_123 = arith.constant 0.000000e+00 : f32
    %214 = vector.broadcast %cst_123 : f32 to vector<64x256xf32>
    %c0_124 = arith.constant 0 : index
    %c0_125 = arith.constant 0 : index
    %215 = vector.load %arg11[%c0_124, %c0_125] : memref<96x128xf32, #tpu.memory_space<vmem>>, vector<64x128xf32>
    %216 = arith.truncf %215 : vector<64x128xf32> to vector<64x128xbf16>
    %c0_126 = arith.constant 0 : index
    %c0_127 = arith.constant 0 : index
    %c0_128 = arith.constant 0 : index
    %217 = vector.load %arg4[%c0_126, %c0_127, %c0_128] : memref<5x128x256xbf16, #tpu.memory_space<vmem>>, vector<1x128x256xbf16>
    %218 = vector.shape_cast %217 : vector<1x128x256xbf16> to vector<128x256xbf16>
    %cst_129 = arith.constant dense<0.000000e+00> : vector<64x256xf32>
    %219 = tpu.matmul %216, %218, %cst_129 {dimension_numbers = #tpu.dot_dimension_numbers<[1], [0], [0], [1], [0, 0, 1, 1], [], []>} : vector<64x128xbf16>, vector<128x256xbf16>, vector<64x256xf32> -> vector<64x256xf32>
    %220 = arith.addf %214, %219 : vector<64x256xf32>
    %c8_130 = arith.constant 8 : index
    %c0_131 = arith.constant 0 : index
    %221 = vector.load %arg11[%c8_130, %c0_131] : memref<96x128xf32, #tpu.memory_space<vmem>>, vector<64x128xf32>
    %222 = arith.truncf %221 : vector<64x128xf32> to vector<64x128xbf16>
    %c1_132 = arith.constant 1 : index
    %c0_133 = arith.constant 0 : index
    %c0_134 = arith.constant 0 : index
    %223 = vector.load %arg4[%c1_132, %c0_133, %c0_134] : memref<5x128x256xbf16, #tpu.memory_space<vmem>>, vector<1x128x256xbf16>
    %224 = vector.shape_cast %223 : vector<1x128x256xbf16> to vector<128x256xbf16>
    %cst_135 = arith.constant dense<0.000000e+00> : vector<64x256xf32>
    %225 = tpu.matmul %222, %224, %cst_135 {dimension_numbers = #tpu.dot_dimension_numbers<[1], [0], [0], [1], [0, 0, 1, 1], [], []>} : vector<64x128xbf16>, vector<128x256xbf16>, vector<64x256xf32> -> vector<64x256xf32>
    %226 = arith.addf %220, %225 : vector<64x256xf32>
    %c16_136 = arith.constant 16 : index
    %c0_137 = arith.constant 0 : index
    %227 = vector.load %arg11[%c16_136, %c0_137] : memref<96x128xf32, #tpu.memory_space<vmem>>, vector<64x128xf32>
    %228 = arith.truncf %227 : vector<64x128xf32> to vector<64x128xbf16>
    %c2_138 = arith.constant 2 : index
    %c0_139 = arith.constant 0 : index
    %c0_140 = arith.constant 0 : index
    %229 = vector.load %arg4[%c2_138, %c0_139, %c0_140] : memref<5x128x256xbf16, #tpu.memory_space<vmem>>, vector<1x128x256xbf16>
    %230 = vector.shape_cast %229 : vector<1x128x256xbf16> to vector<128x256xbf16>
    %cst_141 = arith.constant dense<0.000000e+00> : vector<64x256xf32>
    %231 = tpu.matmul %228, %230, %cst_141 {dimension_numbers = #tpu.dot_dimension_numbers<[1], [0], [0], [1], [0, 0, 1, 1], [], []>} : vector<64x128xbf16>, vector<128x256xbf16>, vector<64x256xf32> -> vector<64x256xf32>
    %232 = arith.addf %226, %231 : vector<64x256xf32>
    %c24_142 = arith.constant 24 : index
    %c0_143 = arith.constant 0 : index
    %233 = vector.load %arg11[%c24_142, %c0_143] : memref<96x128xf32, #tpu.memory_space<vmem>>, vector<64x128xf32>
    %234 = arith.truncf %233 : vector<64x128xf32> to vector<64x128xbf16>
    %c3_144 = arith.constant 3 : index
    %c0_145 = arith.constant 0 : index
    %c0_146 = arith.constant 0 : index
    %235 = vector.load %arg4[%c3_144, %c0_145, %c0_146] : memref<5x128x256xbf16, #tpu.memory_space<vmem>>, vector<1x128x256xbf16>
    %236 = vector.shape_cast %235 : vector<1x128x256xbf16> to vector<128x256xbf16>
    %cst_147 = arith.constant dense<0.000000e+00> : vector<64x256xf32>
    %237 = tpu.matmul %234, %236, %cst_147 {dimension_numbers = #tpu.dot_dimension_numbers<[1], [0], [0], [1], [0, 0, 1, 1], [], []>} : vector<64x128xbf16>, vector<128x256xbf16>, vector<64x256xf32> -> vector<64x256xf32>
    %238 = arith.addf %232, %237 : vector<64x256xf32>
    %c32_148 = arith.constant 32 : index
    %c0_149 = arith.constant 0 : index
    %239 = vector.load %arg11[%c32_148, %c0_149] : memref<96x128xf32, #tpu.memory_space<vmem>>, vector<64x128xf32>
    %240 = arith.truncf %239 : vector<64x128xf32> to vector<64x128xbf16>
    %c4_150 = arith.constant 4 : index
    %c0_151 = arith.constant 0 : index
    %c0_152 = arith.constant 0 : index
    %241 = vector.load %arg4[%c4_150, %c0_151, %c0_152] : memref<5x128x256xbf16, #tpu.memory_space<vmem>>, vector<1x128x256xbf16>
    %242 = vector.shape_cast %241 : vector<1x128x256xbf16> to vector<128x256xbf16>
    %cst_153 = arith.constant dense<0.000000e+00> : vector<64x256xf32>
    %243 = tpu.matmul %240, %242, %cst_153 {dimension_numbers = #tpu.dot_dimension_numbers<[1], [0], [0], [1], [0, 0, 1, 1], [], []>} : vector<64x128xbf16>, vector<128x256xbf16>, vector<64x256xf32> -> vector<64x256xf32>
    %244 = arith.addf %238, %243 : vector<64x256xf32>
    %245 = vector.extract_strided_slice %244 {offsets = [0, 0], sizes = [64, 128], strides = [1, 1]} : vector<64x256xf32> to vector<64x128xf32>
    %246 = vector.extract_strided_slice %244 {offsets = [0, 128], sizes = [64, 128], strides = [1, 1]} : vector<64x256xf32> to vector<64x128xf32>
    %247 = arith.maximumf %245, %246 : vector<64x128xf32>
    %c0_154 = arith.constant 0 : index
    %c0_155 = arith.constant 0 : index
    %248 = vector.load %arg5[%c0_154, %c0_155] : memref<1x128xf32, #tpu.memory_space<vmem>>, vector<1x128xf32>
    %cst_156 = arith.constant 0.000000e+00 : f32
    %249 = vector.broadcast %cst_156 : f32 to vector<8x128xf32>
    %250 = vector.extract_strided_slice %247 {offsets = [0, 0], sizes = [8, 128], strides = [1, 1]} : vector<64x128xf32> to vector<8x128xf32>
    %251 = vector.extract_strided_slice %247 {offsets = [8, 0], sizes = [8, 128], strides = [1, 1]} : vector<64x128xf32> to vector<8x128xf32>
    %252 = arith.maximumf %250, %251 : vector<8x128xf32>
    %253 = vector.broadcast %248 : vector<1x128xf32> to vector<8x128xf32>
    %254 = arith.addf %252, %253 : vector<8x128xf32>
    %cst_157 = arith.constant 0.000000e+00 : f32
    %255 = vector.broadcast %cst_157 : f32 to vector<8x128xf32>
    %256 = arith.maximumf %254, %255 : vector<8x128xf32>
    %257 = arith.truncf %256 : vector<8x128xf32> to vector<8x128xbf16>
    %c0_158 = arith.constant 0 : index
    %c0_159 = arith.constant 0 : index
    %c0_160 = arith.constant 0 : index
    %258 = vector.load %arg6[%c0_158, %c0_159, %c0_160] : memref<4x128x128xbf16, #tpu.memory_space<vmem>>, vector<1x128x128xbf16>
    %259 = vector.shape_cast %258 : vector<1x128x128xbf16> to vector<128x128xbf16>
    %cst_161 = arith.constant dense<0.000000e+00> : vector<8x128xf32>
    %260 = tpu.matmul %257, %259, %cst_161 {dimension_numbers = #tpu.dot_dimension_numbers<[1], [0], [0], [1], [0, 0, 1, 1], [], []>} : vector<8x128xbf16>, vector<128x128xbf16>, vector<8x128xf32> -> vector<8x128xf32>
    %261 = arith.addf %249, %260 : vector<8x128xf32>
    %262 = vector.extract_strided_slice %247 {offsets = [16, 0], sizes = [8, 128], strides = [1, 1]} : vector<64x128xf32> to vector<8x128xf32>
    %263 = vector.extract_strided_slice %247 {offsets = [24, 0], sizes = [8, 128], strides = [1, 1]} : vector<64x128xf32> to vector<8x128xf32>
    %264 = arith.maximumf %262, %263 : vector<8x128xf32>
    %265 = vector.broadcast %248 : vector<1x128xf32> to vector<8x128xf32>
    %266 = arith.addf %264, %265 : vector<8x128xf32>
    %cst_162 = arith.constant 0.000000e+00 : f32
    %267 = vector.broadcast %cst_162 : f32 to vector<8x128xf32>
    %268 = arith.maximumf %266, %267 : vector<8x128xf32>
    %269 = arith.truncf %268 : vector<8x128xf32> to vector<8x128xbf16>
    %c1_163 = arith.constant 1 : index
    %c0_164 = arith.constant 0 : index
    %c0_165 = arith.constant 0 : index
    %270 = vector.load %arg6[%c1_163, %c0_164, %c0_165] : memref<4x128x128xbf16, #tpu.memory_space<vmem>>, vector<1x128x128xbf16>
    %271 = vector.shape_cast %270 : vector<1x128x128xbf16> to vector<128x128xbf16>
    %cst_166 = arith.constant dense<0.000000e+00> : vector<8x128xf32>
    %272 = tpu.matmul %269, %271, %cst_166 {dimension_numbers = #tpu.dot_dimension_numbers<[1], [0], [0], [1], [0, 0, 1, 1], [], []>} : vector<8x128xbf16>, vector<128x128xbf16>, vector<8x128xf32> -> vector<8x128xf32>
    %273 = arith.addf %261, %272 : vector<8x128xf32>
    %274 = vector.extract_strided_slice %247 {offsets = [32, 0], sizes = [8, 128], strides = [1, 1]} : vector<64x128xf32> to vector<8x128xf32>
    %275 = vector.extract_strided_slice %247 {offsets = [40, 0], sizes = [8, 128], strides = [1, 1]} : vector<64x128xf32> to vector<8x128xf32>
    %276 = arith.maximumf %274, %275 : vector<8x128xf32>
    %277 = vector.broadcast %248 : vector<1x128xf32> to vector<8x128xf32>
    %278 = arith.addf %276, %277 : vector<8x128xf32>
    %cst_167 = arith.constant 0.000000e+00 : f32
    %279 = vector.broadcast %cst_167 : f32 to vector<8x128xf32>
    %280 = arith.maximumf %278, %279 : vector<8x128xf32>
    %281 = arith.truncf %280 : vector<8x128xf32> to vector<8x128xbf16>
    %c2_168 = arith.constant 2 : index
    %c0_169 = arith.constant 0 : index
    %c0_170 = arith.constant 0 : index
    %282 = vector.load %arg6[%c2_168, %c0_169, %c0_170] : memref<4x128x128xbf16, #tpu.memory_space<vmem>>, vector<1x128x128xbf16>
    %283 = vector.shape_cast %282 : vector<1x128x128xbf16> to vector<128x128xbf16>
    %cst_171 = arith.constant dense<0.000000e+00> : vector<8x128xf32>
    %284 = tpu.matmul %281, %283, %cst_171 {dimension_numbers = #tpu.dot_dimension_numbers<[1], [0], [0], [1], [0, 0, 1, 1], [], []>} : vector<8x128xbf16>, vector<128x128xbf16>, vector<8x128xf32> -> vector<8x128xf32>
    %285 = arith.addf %273, %284 : vector<8x128xf32>
    %286 = vector.extract_strided_slice %247 {offsets = [48, 0], sizes = [8, 128], strides = [1, 1]} : vector<64x128xf32> to vector<8x128xf32>
    %287 = vector.extract_strided_slice %247 {offsets = [56, 0], sizes = [8, 128], strides = [1, 1]} : vector<64x128xf32> to vector<8x128xf32>
    %288 = arith.maximumf %286, %287 : vector<8x128xf32>
    %289 = vector.broadcast %248 : vector<1x128xf32> to vector<8x128xf32>
    %290 = arith.addf %288, %289 : vector<8x128xf32>
    %cst_172 = arith.constant 0.000000e+00 : f32
    %291 = vector.broadcast %cst_172 : f32 to vector<8x128xf32>
    %292 = arith.maximumf %290, %291 : vector<8x128xf32>
    %293 = arith.truncf %292 : vector<8x128xf32> to vector<8x128xbf16>
    %c3_173 = arith.constant 3 : index
    %c0_174 = arith.constant 0 : index
    %c0_175 = arith.constant 0 : index
    %294 = vector.load %arg6[%c3_173, %c0_174, %c0_175] : memref<4x128x128xbf16, #tpu.memory_space<vmem>>, vector<1x128x128xbf16>
    %295 = vector.shape_cast %294 : vector<1x128x128xbf16> to vector<128x128xbf16>
    %cst_176 = arith.constant dense<0.000000e+00> : vector<8x128xf32>
    %296 = tpu.matmul %293, %295, %cst_176 {dimension_numbers = #tpu.dot_dimension_numbers<[1], [0], [0], [1], [0, 0, 1, 1], [], []>} : vector<8x128xbf16>, vector<128x128xbf16>, vector<8x128xf32> -> vector<8x128xf32>
    %297 = arith.addf %285, %296 : vector<8x128xf32>
    %c0_177 = arith.constant 0 : index
    %c0_178 = arith.constant 0 : index
    %298 = vector.load %arg7[%c0_177, %c0_178] : memref<1x128xf32, #tpu.memory_space<vmem>>, vector<1x128xf32>
    %299 = vector.broadcast %298 : vector<1x128xf32> to vector<8x128xf32>
    %300 = arith.addf %297, %299 : vector<8x128xf32>
    %cst_179 = arith.constant 0.000000e+00 : f32
    %301 = vector.broadcast %cst_179 : f32 to vector<8x128xf32>
    %302 = arith.maximumf %300, %301 : vector<8x128xf32>
    %303 = arith.truncf %302 : vector<8x128xf32> to vector<8x128xbf16>
    %c0_180 = arith.constant 0 : index
    %c0_181 = arith.constant 0 : index
    %304 = vector.load %arg8[%c0_180, %c0_181] : memref<128x128xbf16, #tpu.memory_space<vmem>>, vector<128x128xbf16>
    %cst_182 = arith.constant dense<0.000000e+00> : vector<8x128xf32>
    %305 = tpu.matmul %303, %304, %cst_182 {dimension_numbers = #tpu.dot_dimension_numbers<[1], [0], [0], [1], [0, 0, 1, 1], [], []>} : vector<8x128xbf16>, vector<128x128xbf16>, vector<8x128xf32> -> vector<8x128xf32>
    %c0_183 = arith.constant 0 : index
    %c0_184 = arith.constant 0 : index
    %306 = vector.load %arg9[%c0_183, %c0_184] : memref<1x128xf32, #tpu.memory_space<vmem>>, vector<1x128xf32>
    %307 = vector.broadcast %306 : vector<1x128xf32> to vector<8x128xf32>
    %308 = arith.addf %305, %307 : vector<8x128xf32>
    %cst_185 = arith.constant dense<0xFF800000> : vector<8xf32>
    %309 = vector.multi_reduction <maximumf>, %308, %cst_185 [1] : vector<8x128xf32> to vector<8xf32>
    %310 = vector.shape_cast %309 : vector<8xf32> to vector<8x1xf32>
    %311 = vector.broadcast %310 : vector<8x1xf32> to vector<8x128xf32>
    %312 = arith.subf %308, %311 : vector<8x128xf32>
    %313 = math.exp %312 : vector<8x128xf32>
    %cst_186 = arith.constant dense<0.000000e+00> : vector<8xf32>
    %314 = vector.multi_reduction <add>, %313, %cst_186 [1] : vector<8x128xf32> to vector<8xf32>
    %315 = vector.shape_cast %314 : vector<8xf32> to vector<8x1xf32>
    %316 = math.log %315 : vector<8x1xf32>
    %317 = vector.broadcast %316 : vector<8x1xf32> to vector<8x128xf32>
    %318 = arith.subf %312, %317 : vector<8x128xf32>
    %c0_187 = arith.constant 0 : index
    %c0_188 = arith.constant 0 : index
    %c0_189 = arith.constant 0 : index
    %319 = vector.load %arg10[%c0_187, %c0_188, %c0_189] : memref<1x8x128xf32, #tpu.memory_space<vmem>>, vector<1x8x128xf32>
    %320 = vector.shape_cast %319 : vector<1x8x128xf32> to vector<8x128xf32>
    %321 = vector.shape_cast %318 : vector<8x128xf32> to vector<1x8x128xf32>
    tpu.vector_store %arg10[%c0_187, %c0_188, %c0_189], %321 {strides = array<i32>} : memref<1x8x128xf32, #tpu.memory_space<vmem>>, vector<1x8x128xf32>,
    return
  }
  func.func @transform_0(%arg0: i32) -> (i32, i32, i32) {
    %c0_i32 = arith.constant 0 : i32
    %c0_i32_0 = arith.constant 0 : i32
    %c0_i32_1 = arith.constant 0 : i32
    return %arg0, %c0_i32, %c0_i32_0 : i32, i32, i32
  }
  func.func @transform_1(%arg0: i32) -> (i32, i32, i32) {
    %c0_i32 = arith.constant 0 : i32
    %c0_i32_0 = arith.constant 0 : i32
    %c0_i32_1 = arith.constant 0 : i32
    %c0_i32_2 = arith.constant 0 : i32
    return %c0_i32, %c0_i32_0, %c0_i32_1 : i32, i32, i32
  }
  func.func @transform_2(%arg0: i32) -> (i32, i32) {
    %c0_i32 = arith.constant 0 : i32
    %c0_i32_0 = arith.constant 0 : i32
    %c0_i32_1 = arith.constant 0 : i32
    return %c0_i32, %c0_i32_0 : i32, i32
  }
  func.func @transform_3(%arg0: i32) -> (i32, i32, i32) {
    %c0_i32 = arith.constant 0 : i32
    %c0_i32_0 = arith.constant 0 : i32
    %c0_i32_1 = arith.constant 0 : i32
    %c0_i32_2 = arith.constant 0 : i32
    return %c0_i32, %c0_i32_0, %c0_i32_1 : i32, i32, i32
  }
  func.func @transform_4(%arg0: i32) -> (i32, i32) {
    %c0_i32 = arith.constant 0 : i32
    %c0_i32_0 = arith.constant 0 : i32
    %c0_i32_1 = arith.constant 0 : i32
    return %c0_i32, %c0_i32_0 : i32, i32
  }
  func.func @transform_5(%arg0: i32) -> (i32, i32, i32) {
    %c0_i32 = arith.constant 0 : i32
    %c0_i32_0 = arith.constant 0 : i32
    %c0_i32_1 = arith.constant 0 : i32
    %c0_i32_2 = arith.constant 0 : i32
    return %c0_i32, %c0_i32_0, %c0_i32_1 : i32, i32, i32
  }
  func.func @transform_6(%arg0: i32) -> (i32, i32) {
    %c0_i32 = arith.constant 0 : i32
    %c0_i32_0 = arith.constant 0 : i32
    %c0_i32_1 = arith.constant 0 : i32
    return %c0_i32, %c0_i32_0 : i32, i32
  }
  func.func @transform_7(%arg0: i32) -> (i32, i32) {
    %c0_i32 = arith.constant 0 : i32
    %c0_i32_0 = arith.constant 0 : i32
    %c0_i32_1 = arith.constant 0 : i32
    return %c0_i32, %c0_i32_0 : i32, i32
  }
  func.func @transform_8(%arg0: i32) -> (i32, i32) {
    %c0_i32 = arith.constant 0 : i32
    %c0_i32_0 = arith.constant 0 : i32
    %c0_i32_1 = arith.constant 0 : i32
    return %c0_i32, %c0_i32_0 : i32, i32
  }
  func.func @transform_9(%arg0: i32) -> (i32, i32, i32) {
    %c0_i32 = arith.constant 0 : i32
    %c0_i32_0 = arith.constant 0 : i32
    %c0_i32_1 = arith.constant 0 : i32
    return %arg0, %c0_i32, %c0_i32_0 : i32, i32, i32
  }
}

</mosaic_0001>

<llo_original>
// kernel: net_forward.1
$region0: #{net_forward.1}
  #allocation0 [shape = 'u32[]', space=smem, size = 0x4, offset = 0x4, fixed_abs, tag = 'smem constant byte address 0x4 - core index']
  #allocation1 [shape = 'u32[144,128]{1,0:T(1,128)}', space=vmem, size = 0x12000, scoped, tag = 'internal scratch']
  #allocation2 [shape = 'f32[96,128]{1,0:T(8,128)}', space=vmem, size = 0xc000, scoped, tag = 'scratch operand']
  %s0 = inlined_call_operand.vmem [shape: f32[2,224,32], index: 0, kind: input, shape index: {}]
  %s1 = inlined_call_operand.vmem [shape: bf16[5,32,256], index: 1, kind: input, shape index: {}]
  %s2 = inlined_call_operand.vmem [shape: f32[1,128], index: 2, kind: input, shape index: {}]
  %s3 = inlined_call_operand.vmem [shape: bf16[5,128,256], index: 3, kind: input, shape index: {}]
  %s4 = inlined_call_operand.vmem [shape: f32[1,128], index: 4, kind: input, shape index: {}]
  %s5 = inlined_call_operand.vmem [shape: bf16[4,128,128], index: 5, kind: input, shape index: {}]
  %s6 = inlined_call_operand.vmem [shape: f32[1,128], index: 6, kind: input, shape index: {}]
  %s7 = inlined_call_operand.vmem [shape: bf16[128,128], index: 7, kind: input, shape index: {}]
  %s8 = inlined_call_operand.vmem [shape: f32[1,128], index: 8, kind: input, shape index: {}]
  %s9 = inlined_call_operand.hbm [shape: f32[2,8,128], index: 9, kind: output, shape index: {}]
  %s10 = sld [smem:[#allocation0]]
  $region69: #{net_forward.1} parent=0
    _
  %s12 = ssub.s32 1, %s10
  %s13 = scalar_select 0, %s12, %s10
  $region1: #{net_forward.1} parent=0
    #allocation3 [shape = 'u8[8192]{0}', space=vmem, size = 0x2000, scoped, tag = 'output window, operand 0']
    #allocation4 [shape = 's32[2]{0}', space=sflag, size = 0x8, scoped, tag = 'scoped memory for net_forward.1']
    %14 = vsyncpa [#allocation4], 0
    %s15 = scalar_lea.sflag [#allocation4], 1
    %16 = vsyncpa %s15, 0
    loop: start=0, step=1, limit=4
    $region2: #{net_forward.1} parent=1 // loop_pre_header
      _
    $region3: #{net_forward.1} parent=1 // loop_header
      %s18 = sphi 0, %s22
      %p19 = scmp.ge.s32.totalorder %s18, 4
      %s28 = sphi 0, %s30
      %s31 = sphi 0, %s28
      %s32 = sphi 0, %s31
      %s48 = sphi 0, %s32
      %s52 = sphi 0, %s52
      %s54 = sphi 0, %s52
      %s55 = sphi 0, %s54
      %s69 = sphi 0, %s55
      %s73 = sphi 0, %s73
      %s75 = sphi 0, %s73
      %s76 = sphi 0, %s75
      %s90 = sphi 0, %s76
      %s94 = sphi 0, %s94
      %s96 = sphi 0, %s94
      %s97 = sphi 0, %s96
      %s111 = sphi 0, %s97
      %s115 = sphi 0, %s115
      %s117 = sphi 0, %s115
      %s118 = sphi 0, %s117
      %s132 = sphi 0, %s118
      %s136 = sphi 0, %s136
      %s138 = sphi 0, %s136
      %s139 = sphi 0, %s138
      %s153 = sphi 0, %s139
      %s157 = sphi 0, %s157
      %s159 = sphi 0, %s157
      %s160 = sphi 0, %s159
      %s174 = sphi 0, %s160
      %s178 = sphi 0, %s178
      %s180 = sphi 0, %s178
      %s181 = sphi 0, %s180
      %s195 = sphi 0, %s181
      %s199 = sphi 0, %s199
      %s201 = sphi 0, %s199
      %s202 = sphi 0, %s201
      %s216 = sphi 0, %s202
      %s222 = sphi 0, %s224
      %s225 = sphi 0, %s222
      %s226 = sphi 0, %s225
      %s242 = sphi 0, %s226
    $region4: #{net_forward.1} parent=1 // loop_header_branch
      %21 = sbr.rel (%p19) target = $region8
    $region5: #{net_forward.1} parent=1 // loop_body
      %s23 = ssub.s32 %s18, 1
      %s24 = ssub.s32 %s18, 2
      %s25 = sadd.s32 %s18, 1
      %s26 = ssub.s32 %s18, %s25
      %p27 = scmp.eq.s32.totalorder %s26, 0
      %s29 = sadd.s32 %s28, 1
      %s30 = scalar_select %p27, %s28, %s29
      %p33 = pneg %p27
      %p34 = scmp.eq.s32.totalorder %s18, 1
      %p35 = por %p33, %p34
      %p36 = scmp.ne.s32.totalorder %s28, %s31
      %p37 = scmp.eq.s32.totalorder %s18, 0
      %p38 = por %p36, %p37
      %p39 = scmp.ne.s32.totalorder %s28, %s31
      %p40 = scmp.eq.s32.totalorder %s23, 1
      %p41 = por %p39, %p40
      %p42 = scmp.ne.s32.totalorder %s31, %s32
      %p43 = scmp.eq.s32.totalorder %s23, 0
      %p44 = por %p42, %p43
      %p45 = scmp.ne.s32.totalorder %s31, %s32
      %p46 = scmp.eq.s32.totalorder %s24, 1
      %p47 = por %p45, %p46
      %p49 = scmp.ne.s32.totalorder %s32, %s48
      %p50 = scmp.eq.s32.totalorder %s24, 0
      %p51 = por %p49, %p50
      %s53 = sadd.s32 %s52, 1
      %p56 = scmp.eq.s32.totalorder %s18, 1
      %p57 = scmp.ne.s32.totalorder %s52, %s54
      %p58 = scmp.eq.s32.totalorder %s18, 0
      %p59 = por %p57, %p58
      %p60 = scmp.ne.s32.totalorder %s52, %s54
      %p61 = scmp.eq.s32.totalorder %s23, 1
      %p62 = por %p60, %p61
      %p63 = scmp.ne.s32.totalorder %s54, %s55
      %p64 = scmp.eq.s32.totalorder %s23, 0
      %p65 = por %p63, %p64
      %p66 = scmp.ne.s32.totalorder %s54, %s55
      %p67 = scmp.eq.s32.totalorder %s24, 1
      %p68 = por %p66, %p67
      %p70 = scmp.ne.s32.totalorder %s55, %s69
      %p71 = scmp.eq.s32.totalorder %s24, 0
      %p72 = por %p70, %p71
      %s74 = sadd.s32 %s73, 1
      %p77 = scmp.eq.s32.totalorder %s18, 1
      %p78 = scmp.ne.s32.totalorder %s73, %s75
      %p79 = scmp.eq.s32.totalorder %s18, 0
      %p80 = por %p78, %p79
      %p81 = scmp.ne.s32.totalorder %s73, %s75
      %p82 = scmp.eq.s32.totalorder %s23, 1
      %p83 = por %p81, %p82
      %p84 = scmp.ne.s32.totalorder %s75, %s76
      %p85 = scmp.eq.s32.totalorder %s23, 0
      %p86 = por %p84, %p85
      %p87 = scmp.ne.s32.totalorder %s75, %s76
      %p88 = scmp.eq.s32.totalorder %s24, 1
      %p89 = por %p87, %p88
      %p91 = scmp.ne.s32.totalorder %s76, %s90
      %p92 = scmp.eq.s32.totalorder %s24, 0
      %p93 = por %p91, %p92
      %s95 = sadd.s32 %s94, 1
      %p98 = scmp.eq.s32.totalorder %s18, 1
      %p99 = scmp.ne.s32.totalorder %s94, %s96
      %p100 = scmp.eq.s32.totalorder %s18, 0
      %p101 = por %p99, %p100
      %p102 = scmp.ne.s32.totalorder %s94, %s96
      %p103 = scmp.eq.s32.totalorder %s23, 1
      %p104 = por %p102, %p103
      %p105 = scmp.ne.s32.totalorder %s96, %s97
      %p106 = scmp.eq.s32.totalorder %s23, 0
      %p107 = por %p105, %p106
      %p108 = scmp.ne.s32.totalorder %s96, %s97
      %p109 = scmp.eq.s32.totalorder %s24, 1
      %p110 = por %p108, %p109
      %p112 = scmp.ne.s32.totalorder %s97, %s111
      %p113 = scmp.eq.s32.totalorder %s24, 0
      %p114 = por %p112, %p113
      %s116 = sadd.s32 %s115, 1
      %p119 = scmp.eq.s32.totalorder %s18, 1
      %p120 = scmp.ne.s32.totalorder %s115, %s117
      %p121 = scmp.eq.s32.totalorder %s18, 0
      %p122 = por %p120, %p121
      %p123 = scmp.ne.s32.totalorder %s115, %s117
      %p124 = scmp.eq.s32.totalorder %s23, 1
      %p125 = por %p123, %p124
      %p126 = scmp.ne.s32.totalorder %s117, %s118
      %p127 = scmp.eq.s32.totalorder %s23, 0
      %p128 = por %p126, %p127
      %p129 = scmp.ne.s32.totalorder %s117, %s118
      %p130 = scmp.eq.s32.totalorder %s24, 1
      %p131 = por %p129, %p130
      %p133 = scmp.ne.s32.totalorder %s118, %s132
      %p134 = scmp.eq.s32.totalorder %s24, 0
      %p135 = por %p133, %p134
      %s137 = sadd.s32 %s136, 1
      %p140 = scmp.eq.s32.totalorder %s18, 1
      %p141 = scmp.ne.s32.totalorder %s136, %s138
      %p142 = scmp.eq.s32.totalorder %s18, 0
      %p143 = por %p141, %p142
      %p144 = scmp.ne.s32.totalorder %s136, %s138
      %p145 = scmp.eq.s32.totalorder %s23, 1
      %p146 = por %p144, %p145
      %p147 = scmp.ne.s32.totalorder %s138, %s139
      %p148 = scmp.eq.s32.totalorder %s23, 0
      %p149 = por %p147, %p148
      %p150 = scmp.ne.s32.totalorder %s138, %s139
      %p151 = scmp.eq.s32.totalorder %s24, 1
      %p152 = por %p150, %p151
      %p154 = scmp.ne.s32.totalorder %s139, %s153
      %p155 = scmp.eq.s32.totalorder %s24, 0
      %p156 = por %p154, %p155
      %s158 = sadd.s32 %s157, 1
      %p161 = scmp.eq.s32.totalorder %s18, 1
      %p162 = scmp.ne.s32.totalorder %s157, %s159
      %p163 = scmp.eq.s32.totalorder %s18, 0
      %p164 = por %p162, %p163
      %p165 = scmp.ne.s32.totalorder %s157, %s159
      %p166 = scmp.eq.s32.totalorder %s23, 1
      %p167 = por %p165, %p166
      %p168 = scmp.ne.s32.totalorder %s159, %s160
      %p169 = scmp.eq.s32.totalorder %s23, 0
      %p170 = por %p168, %p169
      %p171 = scmp.ne.s32.totalorder %s159, %s160
      %p172 = scmp.eq.s32.totalorder %s24, 1
      %p173 = por %p171, %p172
      %p175 = scmp.ne.s32.totalorder %s160, %s174
      %p176 = scmp.eq.s32.totalorder %s24, 0
      %p177 = por %p175, %p176
      %s179 = sadd.s32 %s178, 1
      %p182 = scmp.eq.s32.totalorder %s18, 1
      %p183 = scmp.ne.s32.totalorder %s178, %s180
      %p184 = scmp.eq.s32.totalorder %s18, 0
      %p185 = por %p183, %p184
      %p186 = scmp.ne.s32.totalorder %s178, %s180
      %p187 = scmp.eq.s32.totalorder %s23, 1
      %p188 = por %p186, %p187
      %p189 = scmp.ne.s32.totalorder %s180, %s181
      %p190 = scmp.eq.s32.totalorder %s23, 0
      %p191 = por %p189, %p190
      %p192 = scmp.ne.s32.totalorder %s180, %s181
      %p193 = scmp.eq.s32.totalorder %s24, 1
      %p194 = por %p192, %p193
      %p196 = scmp.ne.s32.totalorder %s181, %s195
      %p197 = scmp.eq.s32.totalorder %s24, 0
      %p198 = por %p196, %p197
      %s200 = sadd.s32 %s199, 1
      %p203 = scmp.eq.s32.totalorder %s18, 1
      %p204 = scmp.ne.s32.totalorder %s199, %s201
      %p205 = scmp.eq.s32.totalorder %s18, 0
      %p206 = por %p204, %p205
      %p207 = scmp.ne.s32.totalorder %s199, %s201
      %p208 = scmp.eq.s32.totalorder %s23, 1
      %p209 = por %p207, %p208
      %p210 = scmp.ne.s32.totalorder %s201, %s202
      %p211 = scmp.eq.s32.totalorder %s23, 0
      %p212 = por %p210, %p211
      %p213 = scmp.ne.s32.totalorder %s201, %s202
      %p214 = scmp.eq.s32.totalorder %s24, 1
      %p215 = por %p213, %p214
      %p217 = scmp.ne.s32.totalorder %s202, %s216
      %p218 = scmp.eq.s32.totalorder %s24, 0
      %p219 = por %p217, %p218
      %s220 = ssub.s32 %s18, %s25
      %p221 = scmp.eq.s32.totalorder %s220, 0
      %s223 = sadd.s32 %s222, 1
      %s224 = scalar_select %p221, %s222, %s223
      %p227 = pneg %p221
      %p228 = scmp.eq.s32.totalorder %s18, 1
      %p229 = por %p227, %p228
      %p230 = scmp.ne.s32.totalorder %s222, %s225
      %p231 = scmp.eq.s32.totalorder %s18, 0
      %p232 = por %p230, %p231
      %p233 = scmp.ne.s32.totalorder %s222, %s225
      %p234 = scmp.eq.s32.totalorder %s23, 1
      %p235 = por %p233, %p234
      %p236 = scmp.ne.s32.totalorder %s225, %s226
      %p237 = scmp.eq.s32.totalorder %s23, 0
      %p238 = por %p236, %p237
      %p239 = scmp.ne.s32.totalorder %s225, %s226
      %p240 = scmp.eq.s32.totalorder %s24, 1
      %p241 = por %p239, %p240
      %p243 = scmp.ne.s32.totalorder %s226, %s242
      %p244 = scmp.eq.s32.totalorder %s24, 0
      %p245 = por %p243, %p244
      %p246 = scmp.le.s32.totalorder 1, %s18
      %p247 = scmp.lt.s32.totalorder %s18, 3
      %p248 = pnand %p246, %p247
      %p249 = pneg %p248
      // Predicated region
      $region9: #{net_forward.1} parent=5 // pred_check
        _
      $region10: #{net_forward.1} parent=5 // pred_check_branch
        %251 = sbr.rel (%p248) target = $region12
      $region11: #{net_forward.1} parent=5 // pred_region
        %s252 = ssub.s32 %s18, 1
        // Predicated region
        $region13: #{net_forward.1} parent=11 // pred_check
          %p253 = pneg %p65
        $region14: #{net_forward.1} parent=11 // pred_check_branch
          %255 = sbr.rel (%p253) target = $region16
        $region15: #{net_forward.1} parent=11 // pred_region
          _
        $region16: #{net_forward.1} parent=11 // pred_fallthru
          _
        // Predicated region
        $region17: #{net_forward.1} parent=11 // pred_check
          %p256 = pneg %p86
        $region18: #{net_forward.1} parent=11 // pred_check_branch
          %258 = sbr.rel (%p256) target = $region20
        $region19: #{net_forward.1} parent=11 // pred_region
          _
        $region20: #{net_forward.1} parent=11 // pred_fallthru
          _
        // Predicated region
        $region21: #{net_forward.1} parent=11 // pred_check
          %p259 = pneg %p107
        $region22: #{net_forward.1} parent=11 // pred_check_branch
          %261 = sbr.rel (%p259) target = $region24
        $region23: #{net_forward.1} parent=11 // pred_region
          _
        $region24: #{net_forward.1} parent=11 // pred_fallthru
          _
        // Predicated region
        $region25: #{net_forward.1} parent=11 // pred_check
          %p262 = pneg %p128
        $region26: #{net_forward.1} parent=11 // pred_check_branch
          %264 = sbr.rel (%p262) target = $region28
        $region27: #{net_forward.1} parent=11 // pred_region
          _
        $region28: #{net_forward.1} parent=11 // pred_fallthru
          _
        // Predicated region
        $region29: #{net_forward.1} parent=11 // pred_check
          %p265 = pneg %p149
        $region30: #{net_forward.1} parent=11 // pred_check_branch
          %267 = sbr.rel (%p265) target = $region32
        $region31: #{net_forward.1} parent=11 // pred_region
          _
        $region32: #{net_forward.1} parent=11 // pred_fallthru
          _
        // Predicated region
        $region33: #{net_forward.1} parent=11 // pred_check
          %p268 = pneg %p170
        $region34: #{net_forward.1} parent=11 // pred_check_branch
          %270 = sbr.rel (%p268) target = $region36
        $region35: #{net_forward.1} parent=11 // pred_region
          _
        $region36: #{net_forward.1} parent=11 // pred_fallthru
          _
        // Predicated region
        $region37: #{net_forward.1} parent=11 // pred_check
          %p271 = pneg %p191
        $region38: #{net_forward.1} parent=11 // pred_check_branch
          %273 = sbr.rel (%p271) target = $region40
        $region39: #{net_forward.1} parent=11 // pred_region
          _
        $region40: #{net_forward.1} parent=11 // pred_fallthru
          _
        // Predicated region
        $region41: #{net_forward.1} parent=11 // pred_check
          %p274 = pneg %p212
        $region42: #{net_forward.1} parent=11 // pred_check_branch
          %276 = sbr.rel (%p274) target = $region44
        $region43: #{net_forward.1} parent=11 // pred_region
          _
        $region44: #{net_forward.1} parent=11 // pred_fallthru
          _
      $region12: #{net_forward.1} parent=5 // pred_fallthru
        _
      %p277 = scmp.lt.s32.totalorder %s18, 2
      // Predicated region
      $region45: #{net_forward.1} parent=5 // pred_check
        %p278 = pneg %p277
      $region46: #{net_forward.1} parent=5 // pred_check_branch
        %280 = sbr.rel (%p278) target = $region48
      $region47: #{net_forward.1} parent=5 // pred_region
        // Predicated region
        $region49: #{net_forward.1} parent=47 // pred_check
          %p281 = pneg %p38
        $region50: #{net_forward.1} parent=47 // pred_check_branch
          %283 = sbr.rel (%p281) target = $region52
        $region51: #{net_forward.1} parent=47 // pred_region
          %p284 = scmp.lt.s32.totalorder %s18, 1
          %s285 = scalar_select %p284, %s18, 1
          %s286 = smul.addr %s285, 28
          %s287 = smul.addr %s286, 8
          %s288 = scalar_lea.vmem %s0, %s287
        $region52: #{net_forward.1} parent=47 // pred_fallthru
          _
      $region48: #{net_forward.1} parent=5 // pred_fallthru
        _
      %p289 = scmp.le.s32.totalorder 1, %s18
      %p290 = scmp.lt.s32.totalorder %s18, 3
      %p291 = pnand %p289, %p290
      %p292 = pneg %p291
      // Predicated region
      $region53: #{net_forward.1} parent=5 // pred_check
        _
      $region54: #{net_forward.1} parent=5 // pred_check_branch
        %294 = sbr.rel (%p291) target = $region56
      $region55: #{net_forward.1} parent=5 // pred_region
        %s295 = ssub.s32 %s18, 1
        %p296 = scmp.lt.s32.totalorder %s23, 1
        %s297 = scalar_select %p296, %s23, 1
        %s298 = smul.addr %s297, 28
        %s299 = smul.addr %s298, 8
        %s300 = scalar_lea.vmem %s0, %s299
        %p301 = pneg %p44
        %p302 = pneg %p41
        %p303 = pneg %p65
        %p304 = pneg %p62
        %p305 = pneg %p86
        %p306 = pneg %p83
        %p307 = pneg %p107
        %p308 = pneg %p104
        %p309 = pneg %p128
        %p310 = pneg %p125
        %p311 = pneg %p149
        %p312 = pneg %p146
        %p313 = pneg %p170
        %p314 = pneg %p167
        %p315 = pneg %p191
        %p316 = pneg %p188
        %p317 = pneg %p212
        %p318 = pneg %p209
        %p319 = pneg %p238
        %p320 = pneg %p235
        %s321 = sand.u32 %s225, 1
        %s322 = scalar_lea.sflag [#allocation4], %s321
        %s323 = sand.u32 %s225, 1
        %s324 = smul.addr %s323, 8
        %s325 = scalar_lea.vmem [#allocation3], %s324
        %p326 = scmp.lt.s32.totalorder %s23, 1
        %s327 = scalar_select %p326, %s23, 1
        %s328 = smul.addr %s327, 28
        %s329 = smul.addr %s328, 8
        %s330 = scalar_lea.vmem %s0, %s329
        %v332 = vld [vmem:[%s2] sm:$0x1]
        %v333 = vld [vmem:[%s330] sm:$0xff]
        %v334 = vld [vmem:[%s330 + $0x8] sm:$0xff]
        %v335 = vld [vmem:[%s330 + $0x10] sm:$0xff]
        %v336 = vld [vmem:[%s330 + $0x18] sm:$0xff]
        %v337 = vld [vmem:[%s330 + $0x20] sm:$0xff]
        %v338 = vld [vmem:[%s330 + $0x28] sm:$0xff]
        %v339 = vld [vmem:[%s330 + $0x30] sm:$0xff]
        %v340 = vld [vmem:[%s330 + $0x38] sm:$0xff]
        %v341 = vpack.c.bf16 %v334, %v333
        %v342 = vpack.c.bf16 %v336, %v335
        %v343 = vpack.c.bf16 %v338, %v337
        %v344 = vpack.c.bf16 %v340, %v339
        %v345 = vld [vmem:[%s1] sm:$0xff]
        %v346 = vld [vmem:[%s1 + $0x8] sm:$0xff]
        %v347 = vld [vmem:[%s1 + $0x10] sm:$0xff]
        %v348 = vld [vmem:[%s1 + $0x18] sm:$0xff]
        %v349 = vld [vmem:[%s330 + $0x40] sm:$0xff]
        %v350 = vpack.c.bf16 %v335, %v334
        %v351 = vpack.c.bf16 %v337, %v336
        %v352 = vpack.c.bf16 %v339, %v338
        %v353 = vpack.c.bf16 %v349, %v340
        %s354 = scalar_lea.vmem %s1, 32
        %v355 = vld [vmem:[%s354] sm:$0xff]
        %v356 = vld [vmem:[%s354 + $0x8] sm:$0xff]
        %v357 = vld [vmem:[%s354 + $0x10] sm:$0xff]
        %v358 = vld [vmem:[%s354 + $0x18] sm:$0xff]
        %v363 = vunpack.c.l.b16 %v355
        %v364 = vunpack.c.h.b16 %v355
        %v365 = vunpack.c.l.b16 %v356
        %v366 = vunpack.c.h.b16 %v356
        %v367 = vunpack.c.l.b16 %v357
        %v368 = vunpack.c.h.b16 %v357
        %v369 = vunpack.c.l.b16 %v358
        %v370 = vunpack.c.h.b16 %v358
        %v371 = vpack.c.b16 %v365, %v363
        %v372 = vpack.c.b16 %v366, %v364
        %v373 = vpack.c.b16 %v369, %v367
        %v374 = vpack.c.b16 %v370, %v368
        %vm379 = vcmask 261120
        %v381 = vsel %vm379, %v350, 0
        %v384 = vsel %vm379, %v351, 0
        %v387 = vsel %vm379, %v352, 0
        %v390 = vsel %vm379, %v353, 0
        %392 = vmatprep.subr.bf16.mxu0 %v372
        %393 = vmatpush1.bf16.msra.mxu0 %v371
        %394 = vmatprep.subr.bf16.mxu0 %v374
        %395 = vmatpush1.bf16.msra.mxu0 %v373
        %396 = vmatprep.subr.bf16.mxu0 0
        %397 = vmatpush1.bf16.msra.mxu0 0
        %398 = vmatprep.subr.bf16.mxu0 0
        %399 = vmatpush1.bf16.msra.mxu0 0
        %400 = vmatprep.subr.bf16.mxu0 0
        %401 = vmatpush1.bf16.msra.mxu0 0
        %402 = vmatprep.subr.bf16.mxu0 0
        %403 = vmatpush1.bf16.msra.mxu0 0
        %404 = vmatprep.subr.bf16.mxu0 0
        %405 = vmatpush1.bf16.msra.mxu0 0
        %406 = vmatprep.subr.bf16.mxu0 0
        %407 = vmatpush1.bf16.msra.mxu0 0
        %408 = vmatprep.subr.bf16.mxu0 0
        %409 = vmatpush1.bf16.msra.mxu0 0
        %410 = vmatprep.subr.bf16.mxu0 0
        %411 = vmatpush1.bf16.msra.mxu0 0
        %412 = vmatprep.subr.bf16.mxu0 0
        %413 = vmatpush1.bf16.msra.mxu0 0
        %414 = vmatprep.subr.bf16.mxu0 0
        %415 = vmatpush1.bf16.msra.mxu0 0
        %416 = vmatprep.subr.bf16.mxu0 0
        %417 = vmatpush1.bf16.msra.mxu0 0
        %418 = vmatprep.subr.bf16.mxu0 0
        %419 = vmatpush1.bf16.msra.mxu0 0
        %420 = vmatprep.subr.bf16.mxu0 0
        %421 = vmatpush1.bf16.msra.mxu0 0
        %422 = vmatprep.subr.bf16.mxu0 0
        %423 = vmatpush1.bf16.msra.mxu0 0
        %424 = vmatprep.mubr.bf16.mxu0 0
        %425 = vmatmul.mubr.bf16.gmra.mrb[0].mxu0 %v381
        %v426 = vpop.f32.mrb[0].mxu0
        %v427 = vadd.f32 0.0, %v426
        %v428 = vpop.f32.mrb[0].mxu0
        %v429 = vadd.f32 0.0, %v428
        %v430 = vpop.f32.mrb[0].mxu0
        %v431 = vadd.f32 0.0, %v430
        %v432 = vpop.f32.mrb[0].mxu0
        %v433 = vadd.f32 0.0, %v432
        %434 = vmatprep.mubr.bf16.mxu0 0
        %435 = vmatmul.mubr.bf16.gmra.mrb[0].mxu0 %v384
        %v436 = vpop.f32.mrb[0].mxu0
        %v437 = vadd.f32 0.0, %v436
        %v438 = vpop.f32.mrb[0].mxu0
        %v439 = vadd.f32 0.0, %v438
        %v440 = vpop.f32.mrb[0].mxu0
        %v441 = vadd.f32 0.0, %v440
        %v442 = vpop.f32.mrb[0].mxu0
        %v443 = vadd.f32 0.0, %v442
        %444 = vmatprep.mubr.bf16.mxu0 0
        %445 = vmatmul.mubr.bf16.gmra.mrb[0].mxu0 %v387
        %v446 = vpop.f32.mrb[0].mxu0
        %v447 = vadd.f32 0.0, %v446
        %v448 = vpop.f32.mrb[0].mxu0
        %v449 = vadd.f32 0.0, %v448
        %v450 = vpop.f32.mrb[0].mxu0
        %v451 = vadd.f32 0.0, %v450
        %v452 = vpop.f32.mrb[0].mxu0
        %v453 = vadd.f32 0.0, %v452
        %454 = vmatprep.mubr.bf16.mxu0 0
        %455 = vmatmul.mubr.bf16.gmra.mrb[0].mxu0 %v390
        %v456 = vpop.f32.mrb[0].mxu0
        %v457 = vadd.f32 0.0, %v456
        %v458 = vpop.f32.mrb[0].mxu0
        %v459 = vadd.f32 0.0, %v458
        %v460 = vpop.f32.mrb[0].mxu0
        %v461 = vadd.f32 0.0, %v460
        %v462 = vpop.f32.mrb[0].mxu0
        %v463 = vadd.f32 0.0, %v462
        %464 = vdwg.mxu0
        %v469 = vunpack.c.l.b16 %v345
        %v470 = vunpack.c.h.b16 %v345
        %v471 = vunpack.c.l.b16 %v346
        %v472 = vunpack.c.h.b16 %v346
        %v473 = vunpack.c.l.b16 %v347
        %v474 = vunpack.c.h.b16 %v347
        %v475 = vunpack.c.l.b16 %v348
        %v476 = vunpack.c.h.b16 %v348
        %v477 = vpack.c.b16 %v471, %v469
        %v478 = vpack.c.b16 %v472, %v470
        %v479 = vpack.c.b16 %v475, %v473
        %v480 = vpack.c.b16 %v476, %v474
        %v486 = vsel %vm379, %v341, 0
        %v489 = vsel %vm379, %v342, 0
        %v492 = vsel %vm379, %v343, 0
        %v495 = vsel %vm379, %v344, 0
        %497 = vmatprep.subr.bf16.mxu0 %v478
        %498 = vmatpush1.bf16.msra.mxu0 %v477
        %499 = vmatprep.subr.bf16.mxu0 %v480
        %500 = vmatpush1.bf16.msra.mxu0 %v479
        %501 = vmatprep.subr.bf16.mxu0 0
        %502 = vmatpush1.bf16.msra.mxu0 0
        %503 = vmatprep.subr.bf16.mxu0 0
        %504 = vmatpush1.bf16.msra.mxu0 0
        %505 = vmatprep.subr.bf16.mxu0 0
        %506 = vmatpush1.bf16.msra.mxu0 0
        %507 = vmatprep.subr.bf16.mxu0 0
        %508 = vmatpush1.bf16.msra.mxu0 0
        %509 = vmatprep.subr.bf16.mxu0 0
        %510 = vmatpush1.bf16.msra.mxu0 0
        %511 = vmatprep.subr.bf16.mxu0 0
        %512 = vmatpush1.bf16.msra.mxu0 0
        %513 = vmatprep.subr.bf16.mxu0 0
        %514 = vmatpush1.bf16.msra.mxu0 0
        %515 = vmatprep.subr.bf16.mxu0 0
        %516 = vmatpush1.bf16.msra.mxu0 0
        %517 = vmatprep.subr.bf16.mxu0 0
        %518 = vmatpush1.bf16.msra.mxu0 0
        %519 = vmatprep.subr.bf16.mxu0 0
        %520 = vmatpush1.bf16.msra.mxu0 0
        %521 = vmatprep.subr.bf16.mxu0 0
        %522 = vmatpush1.bf16.msra.mxu0 0
        %523 = vmatprep.subr.bf16.mxu0 0
        %524 = vmatpush1.bf16.msra.mxu0 0
        %525 = vmatprep.subr.bf16.mxu0 0
        %526 = vmatpush1.bf16.msra.mxu0 0
        %527 = vmatprep.subr.bf16.mxu0 0
        %528 = vmatpush1.bf16.msra.mxu0 0
        %529 = vmatprep.mubr.bf16.mxu0 0
        %530 = vmatmul.mubr.bf16.gmra.mrb[0].mxu0 %v486
        %v531 = vpop.f32.mrb[0].mxu0
        %v532 = vadd.f32 %v427, %v531
        %v533 = vpop.f32.mrb[0].mxu0
        %v534 = vadd.f32 %v429, %v533
        %v535 = vpop.f32.mrb[0].mxu0
        %v536 = vadd.f32 %v431, %v535
        %v537 = vpop.f32.mrb[0].mxu0
        %v538 = vadd.f32 %v433, %v537
        %539 = vmatprep.mubr.bf16.mxu0 0
        %540 = vmatmul.mubr.bf16.gmra.mrb[0].mxu0 %v489
        %v541 = vpop.f32.mrb[0].mxu0
        %v542 = vadd.f32 %v437, %v541
        %v543 = vpop.f32.mrb[0].mxu0
        %v544 = vadd.f32 %v439, %v543
        %v545 = vpop.f32.mrb[0].mxu0
        %v546 = vadd.f32 %v441, %v545
        %v547 = vpop.f32.mrb[0].mxu0
        %v548 = vadd.f32 %v443, %v547
        %549 = vmatprep.mubr.bf16.mxu0 0
        %550 = vmatmul.mubr.bf16.gmra.mrb[0].mxu0 %v492
        %v551 = vpop.f32.mrb[0].mxu0
        %v552 = vadd.f32 %v447, %v551
        %v553 = vpop.f32.mrb[0].mxu0
        %v554 = vadd.f32 %v449, %v553
        %v555 = vpop.f32.mrb[0].mxu0
        %v556 = vadd.f32 %v451, %v555
        %v557 = vpop.f32.mrb[0].mxu0
        %v558 = vadd.f32 %v453, %v557
        %559 = vmatprep.mubr.bf16.mxu0 0
        %560 = vmatmul.mubr.bf16.gmra.mrb[0].mxu0 %v495
        %v561 = vpop.f32.mrb[0].mxu0
        %v562 = vadd.f32 %v457, %v561
        %v563 = vpop.f32.mrb[0].mxu0
        %v564 = vadd.f32 %v459, %v563
        %v565 = vpop.f32.mrb[0].mxu0
        %v566 = vadd.f32 %v461, %v565
        %v567 = vpop.f32.mrb[0].mxu0
        %v568 = vadd.f32 %v463, %v567
        %569 = vdwg.mxu0
        %v570 = vld [vmem:[%s330 + $0x10] sm:$0xff]
        %v571 = vld [vmem:[%s330 + $0x18] sm:$0xff]
        %v572 = vld [vmem:[%s330 + $0x20] sm:$0xff]
        %v573 = vld [vmem:[%s330 + $0x28] sm:$0xff]
        %v574 = vld [vmem:[%s330 + $0x30] sm:$0xff]
        %v575 = vld [vmem:[%s330 + $0x38] sm:$0xff]
        %v576 = vld [vmem:[%s330 + $0x40] sm:$0xff]
        %v577 = vld [vmem:[%s330 + $0x48] sm:$0xff]
        %v578 = vpack.c.bf16 %v571, %v570
        %v579 = vpack.c.bf16 %v573, %v572
        %v580 = vpack.c.bf16 %v575, %v574
        %v581 = vpack.c.bf16 %v577, %v576
        %s582 = scalar_lea.vmem %s1, 64
        %v583 = vld [vmem:[%s582] sm:$0xff]
        %v584 = vld [vmem:[%s582 + $0x8] sm:$0xff]
        %v585 = vld [vmem:[%s582 + $0x10] sm:$0xff]
        %v586 = vld [vmem:[%s582 + $0x18] sm:$0xff]
        %v591 = vunpack.c.l.b16 %v583
        %v592 = vunpack.c.h.b16 %v583
        %v593 = vunpack.c.l.b16 %v584
        %v594 = vunpack.c.h.b16 %v584
        %v595 = vunpack.c.l.b16 %v585
        %v596 = vunpack.c.h.b16 %v585
        %v597 = vunpack.c.l.b16 %v586
        %v598 = vunpack.c.h.b16 %v586
        %v599 = vpack.c.b16 %v593, %v591
        %v600 = vpack.c.b16 %v594, %v592
        %v601 = vpack.c.b16 %v597, %v595
        %v602 = vpack.c.b16 %v598, %v596
        %v608 = vsel %vm379, %v578, 0
        %v611 = vsel %vm379, %v579, 0
        %v614 = vsel %vm379, %v580, 0
        %v617 = vsel %vm379, %v581, 0
        %619 = vmatprep.subr.bf16.mxu0 %v600
        %620 = vmatpush1.bf16.msra.mxu0 %v599
        %621 = vmatprep.subr.bf16.mxu0 %v602
        %622 = vmatpush1.bf16.msra.mxu0 %v601
        %623 = vmatprep.subr.bf16.mxu0 0
        %624 = vmatpush1.bf16.msra.mxu0 0
        %625 = vmatprep.subr.bf16.mxu0 0
        %626 = vmatpush1.bf16.msra.mxu0 0
        %627 = vmatprep.subr.bf16.mxu0 0
        %628 = vmatpush1.bf16.msra.mxu0 0
        %629 = vmatprep.subr.bf16.mxu0 0
        %630 = vmatpush1.bf16.msra.mxu0 0
        %631 = vmatprep.subr.bf16.mxu0 0
        %632 = vmatpush1.bf16.msra.mxu0 0
        %633 = vmatprep.subr.bf16.mxu0 0
        %634 = vmatpush1.bf16.msra.mxu0 0
        %635 = vmatprep.subr.bf16.mxu0 0
        %636 = vmatpush1.bf16.msra.mxu0 0
        %637 = vmatprep.subr.bf16.mxu0 0
        %638 = vmatpush1.bf16.msra.mxu0 0
        %639 = vmatprep.subr.bf16.mxu0 0
        %640 = vmatpush1.bf16.msra.mxu0 0
        %641 = vmatprep.subr.bf16.mxu0 0
        %642 = vmatpush1.bf16.msra.mxu0 0
        %643 = vmatprep.subr.bf16.mxu0 0
        %644 = vmatpush1.bf16.msra.mxu0 0
        %645 = vmatprep.subr.bf16.mxu0 0
        %646 = vmatpush1.bf16.msra.mxu0 0
        %647 = vmatprep.subr.bf16.mxu0 0
        %648 = vmatpush1.bf16.msra.mxu0 0
        %649 = vmatprep.subr.bf16.mxu0 0
        %650 = vmatpush1.bf16.msra.mxu0 0
        %651 = vmatprep.mubr.bf16.mxu0 0
        %652 = vmatmul.mubr.bf16.gmra.mrb[0].mxu0 %v608
        %v653 = vpop.f32.mrb[0].mxu0
        %v654 = vadd.f32 0.0, %v653
        %v655 = vpop.f32.mrb[0].mxu0
        %v656 = vadd.f32 0.0, %v655
        %v657 = vpop.f32.mrb[0].mxu0
        %v658 = vadd.f32 0.0, %v657
        %v659 = vpop.f32.mrb[0].mxu0
        %v660 = vadd.f32 0.0, %v659
        %661 = vmatprep.mubr.bf16.mxu0 0
        %662 = vmatmul.mubr.bf16.gmra.mrb[0].mxu0 %v611
        %v663 = vpop.f32.mrb[0].mxu0
        %v664 = vadd.f32 0.0, %v663
        %v665 = vpop.f32.mrb[0].mxu0
        %v666 = vadd.f32 0.0, %v665
        %v667 = vpop.f32.mrb[0].mxu0
        %v668 = vadd.f32 0.0, %v667
        %v669 = vpop.f32.mrb[0].mxu0
        %v670 = vadd.f32 0.0, %v669
        %671 = vmatprep.mubr.bf16.mxu0 0
        %672 = vmatmul.mubr.bf16.gmra.mrb[0].mxu0 %v614
        %v673 = vpop.f32.mrb[0].mxu0
        %v674 = vadd.f32 0.0, %v673
        %v675 = vpop.f32.mrb[0].mxu0
        %v676 = vadd.f32 0.0, %v675
        %v677 = vpop.f32.mrb[0].mxu0
        %v678 = vadd.f32 0.0, %v677
        %v679 = vpop.f32.mrb[0].mxu0
        %v680 = vadd.f32 0.0, %v679
        %681 = vmatprep.mubr.bf16.mxu0 0
        %682 = vmatmul.mubr.bf16.gmra.mrb[0].mxu0 %v617
        %v683 = vpop.f32.mrb[0].mxu0
        %v684 = vadd.f32 0.0, %v683
        %v685 = vpop.f32.mrb[0].mxu0
        %v686 = vadd.f32 0.0, %v685
        %v687 = vpop.f32.mrb[0].mxu0
        %v688 = vadd.f32 0.0, %v687
        %v689 = vpop.f32.mrb[0].mxu0
        %v690 = vadd.f32 0.0, %v689
        %691 = vdwg.mxu0
        %v692 = vadd.f32 %v532, %v654
        %v693 = vadd.f32 %v534, %v656
        %v694 = vadd.f32 %v536, %v658
        %v695 = vadd.f32 %v538, %v660
        %v696 = vadd.f32 %v542, %v664
        %v697 = vadd.f32 %v544, %v666
        %v698 = vadd.f32 %v546, %v668
        %v699 = vadd.f32 %v548, %v670
        %v700 = vadd.f32 %v552, %v674
        %v701 = vadd.f32 %v554, %v676
        %v702 = vadd.f32 %v556, %v678
        %v703 = vadd.f32 %v558, %v680
        %v704 = vadd.f32 %v562, %v684
        %v705 = vadd.f32 %v564, %v686
        %v706 = vadd.f32 %v566, %v688
        %v707 = vadd.f32 %v568, %v690
        %v708 = vld [vmem:[%s330 + $0x18] sm:$0xff]
        %v709 = vld [vmem:[%s330 + $0x20] sm:$0xff]
        %v710 = vld [vmem:[%s330 + $0x28] sm:$0xff]
        %v711 = vld [vmem:[%s330 + $0x30] sm:$0xff]
        %v712 = vld [vmem:[%s330 + $0x38] sm:$0xff]
        %v713 = vld [vmem:[%s330 + $0x40] sm:$0xff]
        %v714 = vld [vmem:[%s330 + $0x48] sm:$0xff]
        %v715 = vld [vmem:[%s330 + $0x50] sm:$0xff]
        %v716 = vpack.c.bf16 %v709, %v708
        %v717 = vpack.c.bf16 %v711, %v710
        %v718 = vpack.c.bf16 %v713, %v712
        %v719 = vpack.c.bf16 %v715, %v714
        %s720 = scalar_lea.vmem %s1, 96
        %v721 = vld [vmem:[%s720] sm:$0xff]
        %v722 = vld [vmem:[%s720 + $0x8] sm:$0xff]
        %v723 = vld [vmem:[%s720 + $0x10] sm:$0xff]
        %v724 = vld [vmem:[%s720 + $0x18] sm:$0xff]
        %v729 = vunpack.c.l.b16 %v721
        %v730 = vunpack.c.h.b16 %v721
        %v731 = vunpack.c.l.b16 %v722
        %v732 = vunpack.c.h.b16 %v722
        %v733 = vunpack.c.l.b16 %v723
        %v734 = vunpack.c.h.b16 %v723
        %v735 = vunpack.c.l.b16 %v724
        %v736 = vunpack.c.h.b16 %v724
        %v737 = vpack.c.b16 %v731, %v729
        %v738 = vpack.c.b16 %v732, %v730
        %v739 = vpack.c.b16 %v735, %v733
        %v740 = vpack.c.b16 %v736, %v734
        %v746 = vsel %vm379, %v716, 0
        %v749 = vsel %vm379, %v717, 0
        %v752 = vsel %vm379, %v718, 0
        %v755 = vsel %vm379, %v719, 0
        %757 = vmatprep.subr.bf16.mxu0 %v738
        %758 = vmatpush1.bf16.msra.mxu0 %v737
        %759 = vmatprep.subr.bf16.mxu0 %v740
        %760 = vmatpush1.bf16.msra.mxu0 %v739
        %761 = vmatprep.subr.bf16.mxu0 0
        %762 = vmatpush1.bf16.msra.mxu0 0
        %763 = vmatprep.subr.bf16.mxu0 0
        %764 = vmatpush1.bf16.msra.mxu0 0
        %765 = vmatprep.subr.bf16.mxu0 0
        %766 = vmatpush1.bf16.msra.mxu0 0
        %767 = vmatprep.subr.bf16.mxu0 0
        %768 = vmatpush1.bf16.msra.mxu0 0
        %769 = vmatprep.subr.bf16.mxu0 0
        %770 = vmatpush1.bf16.msra.mxu0 0
        %771 = vmatprep.subr.bf16.mxu0 0
        %772 = vmatpush1.bf16.msra.mxu0 0
        %773 = vmatprep.subr.bf16.mxu0 0
        %774 = vmatpush1.bf16.msra.mxu0 0
        %775 = vmatprep.subr.bf16.mxu0 0
        %776 = vmatpush1.bf16.msra.mxu0 0
        %777 = vmatprep.subr.bf16.mxu0 0
        %778 = vmatpush1.bf16.msra.mxu0 0
        %779 = vmatprep.subr.bf16.mxu0 0
        %780 = vmatpush1.bf16.msra.mxu0 0
        %781 = vmatprep.subr.bf16.mxu0 0
        %782 = vmatpush1.bf16.msra.mxu0 0
        %783 = vmatprep.subr.bf16.mxu0 0
        %784 = vmatpush1.bf16.msra.mxu0 0
        %785 = vmatprep.subr.bf16.mxu0 0
        %786 = vmatpush1.bf16.msra.mxu0 0
        %787 = vmatprep.subr.bf16.mxu0 0
        %788 = vmatpush1.bf16.msra.mxu0 0
        %789 = vmatprep.mubr.bf16.mxu0 0
        %790 = vmatmul.mubr.bf16.gmra.mrb[0].mxu0 %v746
        %v791 = vpop.f32.mrb[0].mxu0
        %v792 = vadd.f32 0.0, %v791
        %v793 = vpop.f32.mrb[0].mxu0
        %v794 = vadd.f32 0.0, %v793
        %v795 = vpop.f32.mrb[0].mxu0
        %v796 = vadd.f32 0.0, %v795
        %v797 = vpop.f32.mrb[0].mxu0
        %v798 = vadd.f32 0.0, %v797
        %799 = vmatprep.mubr.bf16.mxu0 0
        %800 = vmatmul.mubr.bf16.gmra.mrb[0].mxu0 %v749
        %v801 = vpop.f32.mrb[0].mxu0
        %v802 = vadd.f32 0.0, %v801
        %v803 = vpop.f32.mrb[0].mxu0
        %v804 = vadd.f32 0.0, %v803
        %v805 = vpop.f32.mrb[0].mxu0
        %v806 = vadd.f32 0.0, %v805
        %v807 = vpop.f32.mrb[0].mxu0
        %v808 = vadd.f32 0.0, %v807
        %809 = vmatprep.mubr.bf16.mxu0 0
        %810 = vmatmul.mubr.bf16.gmra.mrb[0].mxu0 %v752
        %v811 = vpop.f32.mrb[0].mxu0
        %v812 = vadd.f32 0.0, %v811
        %v813 = vpop.f32.mrb[0].mxu0
        %v814 = vadd.f32 0.0, %v813
        %v815 = vpop.f32.mrb[0].mxu0
        %v816 = vadd.f32 0.0, %v815
        %v817 = vpop.f32.mrb[0].mxu0
        %v818 = vadd.f32 0.0, %v817
        %819 = vmatprep.mubr.bf16.mxu0 0
        %820 = vmatmul.mubr.bf16.gmra.mrb[0].mxu0 %v755
        %v821 = vpop.f32.mrb[0].mxu0
        %v822 = vadd.f32 0.0, %v821
        %v823 = vpop.f32.mrb[0].mxu0
        %v824 = vadd.f32 0.0, %v823
        %v825 = vpop.f32.mrb[0].mxu0
        %v826 = vadd.f32 0.0, %v825
        %v827 = vpop.f32.mrb[0].mxu0
        %v828 = vadd.f32 0.0, %v827
        %829 = vdwg.mxu0
        %v830 = vadd.f32 %v692, %v792
        %v831 = vadd.f32 %v693, %v794
        %v832 = vadd.f32 %v694, %v796
        %v833 = vadd.f32 %v695, %v798
        %v834 = vadd.f32 %v696, %v802
        %v835 = vadd.f32 %v697, %v804
        %v836 = vadd.f32 %v698, %v806
        %v837 = vadd.f32 %v699, %v808
        %v838 = vadd.f32 %v700, %v812
        %v839 = vadd.f32 %v701, %v814
        %v840 = vadd.f32 %v702, %v816
        %v841 = vadd.f32 %v703, %v818
        %v842 = vadd.f32 %v704, %v822
        %v843 = vadd.f32 %v705, %v824
        %v844 = vadd.f32 %v706, %v826
        %v845 = vadd.f32 %v707, %v828
        %v846 = vld [vmem:[%s330 + $0x20] sm:$0xff]
        %v847 = vld [vmem:[%s330 + $0x28] sm:$0xff]
        %v848 = vld [vmem:[%s330 + $0x30] sm:$0xff]
        %v849 = vld [vmem:[%s330 + $0x38] sm:$0xff]
        %v850 = vld [vmem:[%s330 + $0x40] sm:$0xff]
        %v851 = vld [vmem:[%s330 + $0x48] sm:$0xff]
        %v852 = vld [vmem:[%s330 + $0x50] sm:$0xff]
        %v853 = vld [vmem:[%s330 + $0x58] sm:$0xff]
        %v854 = vpack.c.bf16 %v847, %v846
        %v855 = vpack.c.bf16 %v849, %v848
        %v856 = vpack.c.bf16 %v851, %v850
        %v857 = vpack.c.bf16 %v853, %v852
        %s858 = scalar_lea.vmem %s1, 128
        %v859 = vld [vmem:[%s858] sm:$0xff]
        %v860 = vld [vmem:[%s858 + $0x8] sm:$0xff]
        %v861 = vld [vmem:[%s858 + $0x10] sm:$0xff]
        %v862 = vld [vmem:[%s858 + $0x18] sm:$0xff]
        %v867 = vunpack.c.l.b16 %v859
        %v868 = vunpack.c.h.b16 %v859
        %v869 = vunpack.c.l.b16 %v860
        %v870 = vunpack.c.h.b16 %v860
        %v871 = vunpack.c.l.b16 %v861
        %v872 = vunpack.c.h.b16 %v861
        %v873 = vunpack.c.l.b16 %v862
        %v874 = vunpack.c.h.b16 %v862
        %v875 = vpack.c.b16 %v869, %v867
        %v876 = vpack.c.b16 %v870, %v868
        %v877 = vpack.c.b16 %v873, %v871
        %v878 = vpack.c.b16 %v874, %v872
        %v884 = vsel %vm379, %v854, 0
        %v887 = vsel %vm379, %v855, 0
        %v890 = vsel %vm379, %v856, 0
        %v893 = vsel %vm379, %v857, 0
        %895 = vmatprep.subr.bf16.mxu0 %v876
        %896 = vmatpush1.bf16.msra.mxu0 %v875
        %897 = vmatprep.subr.bf16.mxu0 %v878
        %898 = vmatpush1.bf16.msra.mxu0 %v877
        %899 = vmatprep.subr.bf16.mxu0 0
        %900 = vmatpush1.bf16.msra.mxu0 0
        %901 = vmatprep.subr.bf16.mxu0 0
        %902 = vmatpush1.bf16.msra.mxu0 0
        %903 = vmatprep.subr.bf16.mxu0 0
        %904 = vmatpush1.bf16.msra.mxu0 0
        %905 = vmatprep.subr.bf16.mxu0 0
        %906 = vmatpush1.bf16.msra.mxu0 0
        %907 = vmatprep.subr.bf16.mxu0 0
        %908 = vmatpush1.bf16.msra.mxu0 0
        %909 = vmatprep.subr.bf16.mxu0 0
        %910 = vmatpush1.bf16.msra.mxu0 0
        %911 = vmatprep.subr.bf16.mxu0 0
        %912 = vmatpush1.bf16.msra.mxu0 0
        %913 = vmatprep.subr.bf16.mxu0 0
        %914 = vmatpush1.bf16.msra.mxu0 0
        %915 = vmatprep.subr.bf16.mxu0 0
        %916 = vmatpush1.bf16.msra.mxu0 0
        %917 = vmatprep.subr.bf16.mxu0 0
        %918 = vmatpush1.bf16.msra.mxu0 0
        %919 = vmatprep.subr.bf16.mxu0 0
        %920 = vmatpush1.bf16.msra.mxu0 0
        %921 = vmatprep.subr.bf16.mxu0 0
        %922 = vmatpush1.bf16.msra.mxu0 0
        %923 = vmatprep.subr.bf16.mxu0 0
        %924 = vmatpush1.bf16.msra.mxu0 0
        %925 = vmatprep.subr.bf16.mxu0 0
        %926 = vmatpush1.bf16.msra.mxu0 0
        %927 = vmatprep.mubr.bf16.mxu0 0
        %928 = vmatmul.mubr.bf16.gmra.mrb[0].mxu0 %v884
        %v929 = vpop.f32.mrb[0].mxu0
        %v930 = vadd.f32 0.0, %v929
        %v931 = vpop.f32.mrb[0].mxu0
        %v932 = vadd.f32 0.0, %v931
        %v933 = vpop.f32.mrb[0].mxu0
        %v934 = vadd.f32 0.0, %v933
        %v935 = vpop.f32.mrb[0].mxu0
        %v936 = vadd.f32 0.0, %v935
        %937 = vmatprep.mubr.bf16.mxu0 0
        %938 = vmatmul.mubr.bf16.gmra.mrb[0].mxu0 %v887
        %v939 = vpop.f32.mrb[0].mxu0
        %v940 = vadd.f32 0.0, %v939
        %v941 = vpop.f32.mrb[0].mxu0
        %v942 = vadd.f32 0.0, %v941
        %v943 = vpop.f32.mrb[0].mxu0
        %v944 = vadd.f32 0.0, %v943
        %v945 = vpop.f32.mrb[0].mxu0
        %v946 = vadd.f32 0.0, %v945
        %947 = vmatprep.mubr.bf16.mxu0 0
        %948 = vmatmul.mubr.bf16.gmra.mrb[0].mxu0 %v890
        %v949 = vpop.f32.mrb[0].mxu0
        %v950 = vadd.f32 0.0, %v949
        %v951 = vpop.f32.mrb[0].mxu0
        %v952 = vadd.f32 0.0, %v951
        %v953 = vpop.f32.mrb[0].mxu0
        %v954 = vadd.f32 0.0, %v953
        %v955 = vpop.f32.mrb[0].mxu0
        %v956 = vadd.f32 0.0, %v955
        %957 = vmatprep.mubr.bf16.mxu0 0
        %958 = vmatmul.mubr.bf16.gmra.mrb[0].mxu0 %v893
        %v959 = vpop.f32.mrb[0].mxu0
        %v960 = vadd.f32 0.0, %v959
        %v961 = vpop.f32.mrb[0].mxu0
        %v962 = vadd.f32 0.0, %v961
        %v963 = vpop.f32.mrb[0].mxu0
        %v964 = vadd.f32 0.0, %v963
        %v965 = vpop.f32.mrb[0].mxu0
        %v966 = vadd.f32 0.0, %v965
        %967 = vdwg.mxu0
        %v968 = vadd.f32 %v830, %v930
        %v969 = vadd.f32 %v831, %v932
        %v970 = vadd.f32 %v832, %v934
        %v971 = vadd.f32 %v833, %v936
        %v972 = vadd.f32 %v834, %v940
        %v973 = vadd.f32 %v835, %v942
        %v974 = vadd.f32 %v836, %v944
        %v975 = vadd.f32 %v837, %v946
        %v976 = vadd.f32 %v838, %v950
        %v977 = vadd.f32 %v839, %v952
        %v978 = vadd.f32 %v840, %v954
        %v979 = vadd.f32 %v841, %v956
        %v980 = vadd.f32 %v842, %v960
        %v981 = vadd.f32 %v843, %v962
        %v982 = vadd.f32 %v844, %v964
        %v983 = vadd.f32 %v845, %v966
        %v984 = vmax.f32 %v968, %v969
        %v985 = vmax.f32 %v970, %v971
        %v986 = vmax.f32 %v972, %v973
        %v987 = vmax.f32 %v974, %v975
        %v988 = vmax.f32 %v976, %v977
        %v989 = vmax.f32 %v978, %v979
        %v990 = vmax.f32 %v980, %v981
        %v991 = vmax.f32 %v982, %v983
        %v992 = vmax.f32 %v984, %v985
        %v994 = vlaneseq
        %v995 = vshrl.u32 %v994, 7
        %v996 = vsub.s32 0, %v995
        %v997 = vrot.slane %v332, %v996
        %v999 = vadd.f32 %v992, %v997
        %v1000 = vmax.f32 %v999, 0.0
        %1001 = vst [vmem:[#allocation2] sm:$0xff] %v1000
        %v1002 = vmax.f32 %v986, %v987
        %v1003 = vadd.f32 %v1002, %v997
        %v1004 = vmax.f32 %v1003, 0.0
        %1005 = vst [vmem:[#allocation2 + $0x8] sm:$0xff] %v1004
        %v1006 = vmax.f32 %v988, %v989
        %v1007 = vadd.f32 %v1006, %v997
        %v1008 = vmax.f32 %v1007, 0.0
        %1009 = vst [vmem:[#allocation2 + $0x10] sm:$0xff] %v1008
        %v1010 = vmax.f32 %v990, %v991
        %v1011 = vadd.f32 %v1010, %v997
        %v1012 = vmax.f32 %v1011, 0.0
        %1013 = vst [vmem:[#allocation2 + $0x18] sm:$0xff] %v1012
        %v1014 = vld [vmem:[%s330 + $0x40] sm:$0xff]
        %v1015 = vld [vmem:[%s330 + $0x48] sm:$0xff]
        %v1016 = vld [vmem:[%s330 + $0x50] sm:$0xff]
        %v1017 = vld [vmem:[%s330 + $0x58] sm:$0xff]
        %v1018 = vld [vmem:[%s330 + $0x60] sm:$0xff]
        %v1019 = vld [vmem:[%s330 + $0x68] sm:$0xff]
        %v1020 = vld [vmem:[%s330 + $0x70] sm:$0xff]
        %v1021 = vld [vmem:[%s330 + $0x78] sm:$0xff]
        %v1022 = vpack.c.bf16 %v1015, %v1014
        %v1023 = vpack.c.bf16 %v1017, %v1016
        %v1024 = vpack.c.bf16 %v1019, %v1018
        %v1025 = vpack.c.bf16 %v1021, %v1020
        %v1026 = vld [vmem:[%s1] sm:$0xff]
        %v1027 = vld [vmem:[%s1 + $0x8] sm:$0xff]
        %v1028 = vld [vmem:[%s1 + $0x10] sm:$0xff]
        %v1029 = vld [vmem:[%s1 + $0x18] sm:$0xff]
        %v1030 = vld [vmem:[%s330 + $0x80] sm:$0xff]
        %v1031 = vpack.c.bf16 %v1016, %v1015
        %v1032 = vpack.c.bf16 %v1018, %v1017
        %v1033 = vpack.c.bf16 %v1020, %v1019
        %v1034 = vpack.c.bf16 %v1030, %v1021
        %v1035 = vld [vmem:[%s354] sm:$0xff]
        %v1036 = vld [vmem:[%s354 + $0x8] sm:$0xff]
        %v1037 = vld [vmem:[%s354 + $0x10] sm:$0xff]
        %v1038 = vld [vmem:[%s354 + $0x18] sm:$0xff]
        %v1043 = vunpack.c.l.b16 %v1035
        %v1044 = vunpack.c.h.b16 %v1035
        %v1045 = vunpack.c.l.b16 %v1036
        %v1046 = vunpack.c.h.b16 %v1036
        %v1047 = vunpack.c.l.b16 %v1037
        %v1048 = vunpack.c.h.b16 %v1037
        %v1049 = vunpack.c.l.b16 %v1038
        %v1050 = vunpack.c.h.b16 %v1038
        %v1051 = vpack.c.b16 %v1045, %v1043
        %v1052 = vpack.c.b16 %v1046, %v1044
        %v1053 = vpack.c.b16 %v1049, %v1047
        %v1054 = vpack.c.b16 %v1050, %v1048
        %v1060 = vsel %vm379, %v1031, 0
        %v1063 = vsel %vm379, %v1032, 0
        %v1066 = vsel %vm379, %v1033, 0
        %v1069 = vsel %vm379, %v1034, 0
        %1071 = vmatprep.subr.bf16.mxu0 %v1052
        %1072 = vmatpush1.bf16.msra.mxu0 %v1051
        %1073 = vmatprep.subr.bf16.mxu0 %v1054
        %1074 = vmatpush1.bf16.msra.mxu0 %v1053
        %1075 = vmatprep.subr.bf16.mxu0 0
        %1076 = vmatpush1.bf16.msra.mxu0 0
        %1077 = vmatprep.subr.bf16.mxu0 0
        %1078 = vmatpush1.bf16.msra.mxu0 0
        %1079 = vmatprep.subr.bf16.mxu0 0
        %1080 = vmatpush1.bf16.msra.mxu0 0
        %1081 = vmatprep.subr.bf16.mxu0 0
        %1082 = vmatpush1.bf16.msra.mxu0 0
        %1083 = vmatprep.subr.bf16.mxu0 0
        %1084 = vmatpush1.bf16.msra.mxu0 0
        %1085 = vmatprep.subr.bf16.mxu0 0
        %1086 = vmatpush1.bf16.msra.mxu0 0
        %1087 = vmatprep.subr.bf16.mxu0 0
        %1088 = vmatpush1.bf16.msra.mxu0 0
        %1089 = vmatprep.subr.bf16.mxu0 0
        %1090 = vmatpush1.bf16.msra.mxu0 0
        %1091 = vmatprep.subr.bf16.mxu0 0
        %1092 = vmatpush1.bf16.msra.mxu0 0
        %1093 = vmatprep.subr.bf16.mxu0 0
        %1094 = vmatpush1.bf16.msra.mxu0 0
        %1095 = vmatprep.subr.bf16.mxu0 0
        %1096 = vmatpush1.bf16.msra.mxu0 0
        %1097 = vmatprep.subr.bf16.mxu0 0
        %1098 = vmatpush1.bf16.msra.mxu0 0
        %1099 = vmatprep.subr.bf16.mxu0 0
        %1100 = vmatpush1.bf16.msra.mxu0 0
        %1101 = vmatprep.subr.bf16.mxu0 0
        %1102 = vmatpush1.bf16.msra.mxu0 0
        %1103 = vmatprep.mubr.bf16.mxu0 0
        %1104 = vmatmul.mubr.bf16.gmra.mrb[0].mxu0 %v1060
        %v1105 = vpop.f32.mrb[0].mxu0
        %v1106 = vadd.f32 0.0, %v1105
        %v1107 = vpop.f32.mrb[0].mxu0
        %v1108 = vadd.f32 0.0, %v1107
        %v1109 = vpop.f32.mrb[0].mxu0
        %v1110 = vadd.f32 0.0, %v1109
        %v1111 = vpop.f32.mrb[0].mxu0
        %v1112 = vadd.f32 0.0, %v1111
        %1113 = vmatprep.mubr.bf16.mxu0 0
        %1114 = vmatmul.mubr.bf16.gmra.mrb[0].mxu0 %v1063
        %v1115 = vpop.f32.mrb[0].mxu0
        %v1116 = vadd.f32 0.0, %v1115
        %v1117 = vpop.f32.mrb[0].mxu0
        %v1118 = vadd.f32 0.0, %v1117
        %v1119 = vpop.f32.mrb[0].mxu0
        %v1120 = vadd.f32 0.0, %v1119
        %v1121 = vpop.f32.mrb[0].mxu0
        %v1122 = vadd.f32 0.0, %v1121
        %1123 = vmatprep.mubr.bf16.mxu0 0
        %1124 = vmatmul.mubr.bf16.gmra.mrb[0].mxu0 %v1066
        %v1125 = vpop.f32.mrb[0].mxu0
        %v1126 = vadd.f32 0.0, %v1125
        %v1127 = vpop.f32.mrb[0].mxu0
        %v1128 = vadd.f32 0.0, %v1127
        %v1129 = vpop.f32.mrb[0].mxu0
        %v1130 = vadd.f32 0.0, %v1129
        %v1131 = vpop.f32.mrb[0].mxu0
        %v1132 = vadd.f32 0.0, %v1131
        %1133 = vmatprep.mubr.bf16.mxu0 0
        %1134 = vmatmul.mubr.bf16.gmra.mrb[0].mxu0 %v1069
        %v1135 = vpop.f32.mrb[0].mxu0
        %v1136 = vadd.f32 0.0, %v1135
        %v1137 = vpop.f32.mrb[0].mxu0
        %v1138 = vadd.f32 0.0, %v1137
        %v1139 = vpop.f32.mrb[0].mxu0
        %v1140 = vadd.f32 0.0, %v1139
        %v1141 = vpop.f32.mrb[0].mxu0
        %v1142 = vadd.f32 0.0, %v1141
        %1143 = vdwg.mxu0
        %v1148 = vunpack.c.l.b16 %v1026
        %v1149 = vunpack.c.h.b16 %v1026
        %v1150 = vunpack.c.l.b16 %v1027
        %v1151 = vunpack.c.h.b16 %v1027
        %v1152 = vunpack.c.l.b16 %v1028
        %v1153 = vunpack.c.h.b16 %v1028
        %v1154 = vunpack.c.l.b16 %v1029
        %v1155 = vunpack.c.h.b16 %v1029
        %v1156 = vpack.c.b16 %v1150, %v1148
        %v1157 = vpack.c.b16 %v1151, %v1149
        %v1158 = vpack.c.b16 %v1154, %v1152
        %v1159 = vpack.c.b16 %v1155, %v1153
        %v1165 = vsel %vm379, %v1022, 0
        %v1168 = vsel %vm379, %v1023, 0
        %v1171 = vsel %vm379, %v1024, 0
        %v1174 = vsel %vm379, %v1025, 0
        %1176 = vmatprep.subr.bf16.mxu0 %v1157
        %1177 = vmatpush1.bf16.msra.mxu0 %v1156
        %1178 = vmatprep.subr.bf16.mxu0 %v1159
        %1179 = vmatpush1.bf16.msra.mxu0 %v1158
        %1180 = vmatprep.subr.bf16.mxu0 0
        %1181 = vmatpush1.bf16.msra.mxu0 0
        %1182 = vmatprep.subr.bf16.mxu0 0
        %1183 = vmatpush1.bf16.msra.mxu0 0
        %1184 = vmatprep.subr.bf16.mxu0 0
        %1185 = vmatpush1.bf16.msra.mxu0 0
        %1186 = vmatprep.subr.bf16.mxu0 0
        %1187 = vmatpush1.bf16.msra.mxu0 0
        %1188 = vmatprep.subr.bf16.mxu0 0
        %1189 = vmatpush1.bf16.msra.mxu0 0
        %1190 = vmatprep.subr.bf16.mxu0 0
        %1191 = vmatpush1.bf16.msra.mxu0 0
        %1192 = vmatprep.subr.bf16.mxu0 0
        %1193 = vmatpush1.bf16.msra.mxu0 0
        %1194 = vmatprep.subr.bf16.mxu0 0
        %1195 = vmatpush1.bf16.msra.mxu0 0
        %1196 = vmatprep.subr.bf16.mxu0 0
        %1197 = vmatpush1.bf16.msra.mxu0 0
        %1198 = vmatprep.subr.bf16.mxu0 0
        %1199 = vmatpush1.bf16.msra.mxu0 0
        %1200 = vmatprep.subr.bf16.mxu0 0
        %1201 = vmatpush1.bf16.msra.mxu0 0
        %1202 = vmatprep.subr.bf16.mxu0 0
        %1203 = vmatpush1.bf16.msra.mxu0 0
        %1204 = vmatprep.subr.bf16.mxu0 0
        %1205 = vmatpush1.bf16.msra.mxu0 0
        %1206 = vmatprep.subr.bf16.mxu0 0
        %1207 = vmatpush1.bf16.msra.mxu0 0
        %1208 = vmatprep.mubr.bf16.mxu0 0
        %1209 = vmatmul.mubr.bf16.gmra.mrb[0].mxu0 %v1165
        %v1210 = vpop.f32.mrb[0].mxu0
        %v1211 = vadd.f32 %v1106, %v1210
        %v1212 = vpop.f32.mrb[0].mxu0
        %v1213 = vadd.f32 %v1108, %v1212
        %v1214 = vpop.f32.mrb[0].mxu0
        %v1215 = vadd.f32 %v1110, %v1214
        %v1216 = vpop.f32.mrb[0].mxu0
        %v1217 = vadd.f32 %v1112, %v1216
        %1218 = vmatprep.mubr.bf16.mxu0 0
        %1219 = vmatmul.mubr.bf16.gmra.mrb[0].mxu0 %v1168
        %v1220 = vpop.f32.mrb[0].mxu0
        %v1221 = vadd.f32 %v1116, %v1220
        %v1222 = vpop.f32.mrb[0].mxu0
        %v1223 = vadd.f32 %v1118, %v1222
        %v1224 = vpop.f32.mrb[0].mxu0
        %v1225 = vadd.f32 %v1120, %v1224
        %v1226 = vpop.f32.mrb[0].mxu0
        %v1227 = vadd.f32 %v1122, %v1226
        %1228 = vmatprep.mubr.bf16.mxu0 0
        %1229 = vmatmul.mubr.bf16.gmra.mrb[0].mxu0 %v1171
        %v1230 = vpop.f32.mrb[0].mxu0
        %v1231 = vadd.f32 %v1126, %v1230
        %v1232 = vpop.f32.mrb[0].mxu0
        %v1233 = vadd.f32 %v1128, %v1232
        %v1234 = vpop.f32.mrb[0].mxu0
        %v1235 = vadd.f32 %v1130, %v1234
        %v1236 = vpop.f32.mrb[0].mxu0
        %v1237 = vadd.f32 %v1132, %v1236
        %1238 = vmatprep.mubr.bf16.mxu0 0
        %1239 = vmatmul.mubr.bf16.gmra.mrb[0].mxu0 %v1174
        %v1240 = vpop.f32.mrb[0].mxu0
        %v1241 = vadd.f32 %v1136, %v1240
        %v1242 = vpop.f32.mrb[0].mxu0
        %v1243 = vadd.f32 %v1138, %v1242
        %v1244 = vpop.f32.mrb[0].mxu0
        %v1245 = vadd.f32 %v1140, %v1244
        %v1246 = vpop.f32.mrb[0].mxu0
        %v1247 = vadd.f32 %v1142, %v1246
        %1248 = vdwg.mxu0
        %v1249 = vld [vmem:[%s330 + $0x50] sm:$0xff]
        %v1250 = vld [vmem:[%s330 + $0x58] sm:$0xff]
        %v1251 = vld [vmem:[%s330 + $0x60] sm:$0xff]
        %v1252 = vld [vmem:[%s330 + $0x68] sm:$0xff]
        %v1253 = vld [vmem:[%s330 + $0x70] sm:$0xff]
        %v1254 = vld [vmem:[%s330 + $0x78] sm:$0xff]
        %v1255 = vld [vmem:[%s330 + $0x80] sm:$0xff]
        %v1256 = vld [vmem:[%s330 + $0x88] sm:$0xff]
        %v1257 = vpack.c.bf16 %v1250, %v1249
        %v1258 = vpack.c.bf16 %v1252, %v1251
        %v1259 = vpack.c.bf16 %v1254, %v1253
        %v1260 = vpack.c.bf16 %v1256, %v1255
        %v1261 = vld [vmem:[%s582] sm:$0xff]
        %v1262 = vld [vmem:[%s582 + $0x8] sm:$0xff]
        %v1263 = vld [vmem:[%s582 + $0x10] sm:$0xff]
        %v1264 = vld [vmem:[%s582 + $0x18] sm:$0xff]
        %v1269 = vunpack.c.l.b16 %v1261
        %v1270 = vunpack.c.h.b16 %v1261
        %v1271 = vunpack.c.l.b16 %v1262
        %v1272 = vunpack.c.h.b16 %v1262
        %v1273 = vunpack.c.l.b16 %v1263
        %v1274 = vunpack.c.h.b16 %v1263
        %v1275 = vunpack.c.l.b16 %v1264
        %v1276 = vunpack.c.h.b16 %v1264
        %v1277 = vpack.c.b16 %v1271, %v1269
        %v1278 = vpack.c.b16 %v1272, %v1270
        %v1279 = vpack.c.b16 %v1275, %v1273
        %v1280 = vpack.c.b16 %v1276, %v1274
        %v1286 = vsel %vm379, %v1257, 0
        %v1289 = vsel %vm379, %v1258, 0
        %v1292 = vsel %vm379, %v1259, 0
        %v1295 = vsel %vm379, %v1260, 0
        %1297 = vmatprep.subr.bf16.mxu0 %v1278
        %1298 = vmatpush1.bf16.msra.mxu0 %v1277
        %1299 = vmatprep.subr.bf16.mxu0 %v1280
        %1300 = vmatpush1.bf16.msra.mxu0 %v1279
        %1301 = vmatprep.subr.bf16.mxu0 0
        %1302 = vmatpush1.bf16.msra.mxu0 0
        %1303 = vmatprep.subr.bf16.mxu0 0
        %1304 = vmatpush1.bf16.msra.mxu0 0
        %1305 = vmatprep.subr.bf16.mxu0 0
        %1306 = vmatpush1.bf16.msra.mxu0 0
        %1307 = vmatprep.subr.bf16.mxu0 0
        %1308 = vmatpush1.bf16.msra.mxu0 0
        %1309 = vmatprep.subr.bf16.mxu0 0
        %1310 = vmatpush1.bf16.msra.mxu0 0
        %1311 = vmatprep.subr.bf16.mxu0 0
        %1312 = vmatpush1.bf16.msra.mxu0 0
        %1313 = vmatprep.subr.bf16.mxu0 0
        %1314 = vmatpush1.bf16.msra.mxu0 0
        %1315 = vmatprep.subr.bf16.mxu0 0
        %1316 = vmatpush1.bf16.msra.mxu0 0
        %1317 = vmatprep.subr.bf16.mxu0 0
        %1318 = vmatpush1.bf16.msra.mxu0 0
        %1319 = vmatprep.subr.bf16.mxu0 0
        %1320 = vmatpush1.bf16.msra.mxu0 0
        %1321 = vmatprep.subr.bf16.mxu0 0
        %1322 = vmatpush1.bf16.msra.mxu0 0
        %1323 = vmatprep.subr.bf16.mxu0 0
        %1324 = vmatpush1.bf16.msra.mxu0 0
        %1325 = vmatprep.subr.bf16.mxu0 0
        %1326 = vmatpush1.bf16.msra.mxu0 0
        %1327 = vmatprep.subr.bf16.mxu0 0
        %1328 = vmatpush1.bf16.msra.mxu0 0
        %1329 = vmatprep.mubr.bf16.mxu0 0
        %1330 = vmatmul.mubr.bf16.gmra.mrb[0].mxu0 %v1286
        %v1331 = vpop.f32.mrb[0].mxu0
        %v1332 = vadd.f32 0.0, %v1331
        %v1333 = vpop.f32.mrb[0].mxu0
        %v1334 = vadd.f32 0.0, %v1333
        %v1335 = vpop.f32.mrb[0].mxu0
        %v1336 = vadd.f32 0.0, %v1335
        %v1337 = vpop.f32.mrb[0].mxu0
        %v1338 = vadd.f32 0.0, %v1337
        %1339 = vmatprep.mubr.bf16.mxu0 0
        %1340 = vmatmul.mubr.bf16.gmra.mrb[0].mxu0 %v1289
        %v1341 = vpop.f32.mrb[0].mxu0
        %v1342 = vadd.f32 0.0, %v1341
        %v1343 = vpop.f32.mrb[0].mxu0
        %v1344 = vadd.f32 0.0, %v1343
        %v1345 = vpop.f32.mrb[0].mxu0
        %v1346 = vadd.f32 0.0, %v1345
        %v1347 = vpop.f32.mrb[0].mxu0
        %v1348 = vadd.f32 0.0, %v1347
        %1349 = vmatprep.mubr.bf16.mxu0 0
        %1350 = vmatmul.mubr.bf16.gmra.mrb[0].mxu0 %v1292
        %v1351 = vpop.f32.mrb[0].mxu0
        %v1352 = vadd.f32 0.0, %v1351
        %v1353 = vpop.f32.mrb[0].mxu0
        %v1354 = vadd.f32 0.0, %v1353
        %v1355 = vpop.f32.mrb[0].mxu0
        %v1356 = vadd.f32 0.0, %v1355
        %v1357 = vpop.f32.mrb[0].mxu0
        %v1358 = vadd.f32 0.0, %v1357
        %1359 = vmatprep.mubr.bf16.mxu0 0
        %1360 = vmatmul.mubr.bf16.gmra.mrb[0].mxu0 %v1295
        %v1361 = vpop.f32.mrb[0].mxu0
        %v1362 = vadd.f32 0.0, %v1361
        %v1363 = vpop.f32.mrb[0].mxu0
        %v1364 = vadd.f32 0.0, %v1363
        %v1365 = vpop.f32.mrb[0].mxu0
        %v1366 = vadd.f32 0.0, %v1365
        %v1367 = vpop.f32.mrb[0].mxu0
        %v1368 = vadd.f32 0.0, %v1367
        %1369 = vdwg.mxu0
        %v1370 = vadd.f32 %v1211, %v1332
        %v1371 = vadd.f32 %v1213, %v1334
        %v1372 = vadd.f32 %v1215, %v1336
        %v1373 = vadd.f32 %v1217, %v1338
        %v1374 = vadd.f32 %v1221, %v1342
        %v1375 = vadd.f32 %v1223, %v1344
        %v1376 = vadd.f32 %v1225, %v1346
        %v1377 = vadd.f32 %v1227, %v1348
        %v1378 = vadd.f32 %v1231, %v1352
        %v1379 = vadd.f32 %v1233, %v1354
        %v1380 = vadd.f32 %v1235, %v1356
        %v1381 = vadd.f32 %v1237, %v1358
        %v1382 = vadd.f32 %v1241, %v1362
        %v1383 = vadd.f32 %v1243, %v1364
        %v1384 = vadd.f32 %v1245, %v1366
        %v1385 = vadd.f32 %v1247, %v1368
        %v1386 = vld [vmem:[%s330 + $0x58] sm:$0xff]
        %v1387 = vld [vmem:[%s330 + $0x60] sm:$0xff]
        %v1388 = vld [vmem:[%s330 + $0x68] sm:$0xff]
        %v1389 = vld [vmem:[%s330 + $0x70] sm:$0xff]
        %v1390 = vld [vmem:[%s330 + $0x78] sm:$0xff]
        %v1391 = vld [vmem:[%s330 + $0x80] sm:$0xff]
        %v1392 = vld [vmem:[%s330 + $0x88] sm:$0xff]
        %v1393 = vld [vmem:[%s330 + $0x90] sm:$0xff]
        %v1394 = vpack.c.bf16 %v1387, %v1386
        %v1395 = vpack.c.bf16 %v1389, %v1388
        %v1396 = vpack.c.bf16 %v1391, %v1390
        %v1397 = vpack.c.bf16 %v1393, %v1392
        %v1398 = vld [vmem:[%s720] sm:$0xff]
        %v1399 = vld [vmem:[%s720 + $0x8] sm:$0xff]
        %v1400 = vld [vmem:[%s720 + $0x10] sm:$0xff]
        %v1401 = vld [vmem:[%s720 + $0x18] sm:$0xff]
        %v1406 = vunpack.c.l.b16 %v1398
        %v1407 = vunpack.c.h.b16 %v1398
        %v1408 = vunpack.c.l.b16 %v1399
        %v1409 = vunpack.c.h.b16 %v1399
        %v1410 = vunpack.c.l.b16 %v1400
        %v1411 = vunpack.c.h.b16 %v1400
        %v1412 = vunpack.c.l.b16 %v1401
        %v1413 = vunpack.c.h.b16 %v1401
        %v1414 = vpack.c.b16 %v1408, %v1406
        %v1415 = vpack.c.b16 %v1409, %v1407
        %v1416 = vpack.c.b16 %v1412, %v1410
        %v1417 = vpack.c.b16 %v1413, %v1411
        %v1423 = vsel %vm379, %v1394, 0
        %v1426 = vsel %vm379, %v1395, 0
        %v1429 = vsel %vm379, %v1396, 0
        %v1432 = vsel %vm379, %v1397, 0
        %1434 = vmatprep.subr.bf16.mxu0 %v1415
        %1435 = vmatpush1.bf16.msra.mxu0 %v1414
        %1436 = vmatprep.subr.bf16.mxu0 %v1417
        %1437 = vmatpush1.bf16.msra.mxu0 %v1416
        %1438 = vmatprep.subr.bf16.mxu0 0
        %1439 = vmatpush1.bf16.msra.mxu0 0
        %1440 = vmatprep.subr.bf16.mxu0 0
        %1441 = vmatpush1.bf16.msra.mxu0 0
        %1442 = vmatprep.subr.bf16.mxu0 0
        %1443 = vmatpush1.bf16.msra.mxu0 0
        %1444 = vmatprep.subr.bf16.mxu0 0
        %1445 = vmatpush1.bf16.msra.mxu0 0
        %1446 = vmatprep.subr.bf16.mxu0 0
        %1447 = vmatpush1.bf16.msra.mxu0 0
        %1448 = vmatprep.subr.bf16.mxu0 0
        %1449 = vmatpush1.bf16.msra.mxu0 0
        %1450 = vmatprep.subr.bf16.mxu0 0
        %1451 = vmatpush1.bf16.msra.mxu0 0
        %1452 = vmatprep.subr.bf16.mxu0 0
        %1453 = vmatpush1.bf16.msra.mxu0 0
        %1454 = vmatprep.subr.bf16.mxu0 0
        %1455 = vmatpush1.bf16.msra.mxu0 0
        %1456 = vmatprep.subr.bf16.mxu0 0
        %1457 = vmatpush1.bf16.msra.mxu0 0
        %1458 = vmatprep.subr.bf16.mxu0 0
        %1459 = vmatpush1.bf16.msra.mxu0 0
        %1460 = vmatprep.subr.bf16.mxu0 0
        %1461 = vmatpush1.bf16.msra.mxu0 0
        %1462 = vmatprep.subr.bf16.mxu0 0
        %1463 = vmatpush1.bf16.msra.mxu0 0
        %1464 = vmatprep.subr.bf16.mxu0 0
        %1465 = vmatpush1.bf16.msra.mxu0 0
        %1466 = vmatprep.mubr.bf16.mxu0 0
        %1467 = vmatmul.mubr.bf16.gmra.mrb[0].mxu0 %v1423
        %v1468 = vpop.f32.mrb[0].mxu0
        %v1469 = vadd.f32 0.0, %v1468
        %v1470 = vpop.f32.mrb[0].mxu0
        %v1471 = vadd.f32 0.0, %v1470
        %v1472 = vpop.f32.mrb[0].mxu0
        %v1473 = vadd.f32 0.0, %v1472
        %v1474 = vpop.f32.mrb[0].mxu0
        %v1475 = vadd.f32 0.0, %v1474
        %1476 = vmatprep.mubr.bf16.mxu0 0
        %1477 = vmatmul.mubr.bf16.gmra.mrb[0].mxu0 %v1426
        %v1478 = vpop.f32.mrb[0].mxu0
        %v1479 = vadd.f32 0.0, %v1478
        %v1480 = vpop.f32.mrb[0].mxu0
        %v1481 = vadd.f32 0.0, %v1480
        %v1482 = vpop.f32.mrb[0].mxu0
        %v1483 = vadd.f32 0.0, %v1482
        %v1484 = vpop.f32.mrb[0].mxu0
        %v1485 = vadd.f32 0.0, %v1484
        %1486 = vmatprep.mubr.bf16.mxu0 0
        %1487 = vmatmul.mubr.bf16.gmra.mrb[0].mxu0 %v1429
        %v1488 = vpop.f32.mrb[0].mxu0
        %v1489 = vadd.f32 0.0, %v1488
        %v1490 = vpop.f32.mrb[0].mxu0
        %v1491 = vadd.f32 0.0, %v1490
        %v1492 = vpop.f32.mrb[0].mxu0
        %v1493 = vadd.f32 0.0, %v1492
        %v1494 = vpop.f32.mrb[0].mxu0
        %v1495 = vadd.f32 0.0, %v1494
        %1496 = vmatprep.mubr.bf16.mxu0 0
        %1497 = vmatmul.mubr.bf16.gmra.mrb[0].mxu0 %v1432
        %v1498 = vpop.f32.mrb[0].mxu0
        %v1499 = vadd.f32 0.0, %v1498
        %v1500 = vpop.f32.mrb[0].mxu0
        %v1501 = vadd.f32 0.0, %v1500
        %v1502 = vpop.f32.mrb[0].mxu0
        %v1503 = vadd.f32 0.0, %v1502
        %v1504 = vpop.f32.mrb[0].mxu0
        %v1505 = vadd.f32 0.0, %v1504
        %1506 = vdwg.mxu0
        %v1507 = vadd.f32 %v1370, %v1469
        %v1508 = vadd.f32 %v1371, %v1471
        %v1509 = vadd.f32 %v1372, %v1473
        %v1510 = vadd.f32 %v1373, %v1475
        %v1511 = vadd.f32 %v1374, %v1479
        %v1512 = vadd.f32 %v1375, %v1481
        %v1513 = vadd.f32 %v1376, %v1483
        %v1514 = vadd.f32 %v1377, %v1485
        %v1515 = vadd.f32 %v1378, %v1489
        %v1516 = vadd.f32 %v1379, %v1491
        %v1517 = vadd.f32 %v1380, %v1493
        %v1518 = vadd.f32 %v1381, %v1495
        %v1519 = vadd.f32 %v1382, %v1499
        %v1520 = vadd.f32 %v1383, %v1501
        %v1521 = vadd.f32 %v1384, %v1503
        %v1522 = vadd.f32 %v1385, %v1505
        %v1523 = vld [vmem:[%s330 + $0x60] sm:$0xff]
        %v1524 = vld [vmem:[%s330 + $0x68] sm:$0xff]
        %v1525 = vld [vmem:[%s330 + $0x70] sm:$0xff]
        %v1526 = vld [vmem:[%s330 + $0x78] sm:$0xff]
        %v1527 = vld [vmem:[%s330 + $0x80] sm:$0xff]
        %v1528 = vld [vmem:[%s330 + $0x88] sm:$0xff]
        %v1529 = vld [vmem:[%s330 + $0x90] sm:$0xff]
        %v1530 = vld [vmem:[%s330 + $0x98] sm:$0xff]
        %v1531 = vpack.c.bf16 %v1524, %v1523
        %v1532 = vpack.c.bf16 %v1526, %v1525
        %v1533 = vpack.c.bf16 %v1528, %v1527
        %v1534 = vpack.c.bf16 %v1530, %v1529
        %v1535 = vld [vmem:[%s858] sm:$0xff]
        %v1536 = vld [vmem:[%s858 + $0x8] sm:$0xff]
        %v1537 = vld [vmem:[%s858 + $0x10] sm:$0xff]
        %v1538 = vld [vmem:[%s858 + $0x18] sm:$0xff]
        %v1543 = vunpack.c.l.b16 %v1535
        %v1544 = vunpack.c.h.b16 %v1535
        %v1545 = vunpack.c.l.b16 %v1536
        %v1546 = vunpack.c.h.b16 %v1536
        %v1547 = vunpack.c.l.b16 %v1537
        %v1548 = vunpack.c.h.b16 %v1537
        %v1549 = vunpack.c.l.b16 %v1538
        %v1550 = vunpack.c.h.b16 %v1538
        %v1551 = vpack.c.b16 %v1545, %v1543
        %v1552 = vpack.c.b16 %v1546, %v1544
        %v1553 = vpack.c.b16 %v1549, %v1547
        %v1554 = vpack.c.b16 %v1550, %v1548
        %v1560 = vsel %vm379, %v1531, 0
        %v1563 = vsel %vm379, %v1532, 0
        %v1566 = vsel %vm379, %v1533, 0
        %v1569 = vsel %vm379, %v1534, 0
        %1571 = vmatprep.subr.bf16.mxu0 %v1552
        %1572 = vmatpush1.bf16.msra.mxu0 %v1551
        %1573 = vmatprep.subr.bf16.mxu0 %v1554
        %1574 = vmatpush1.bf16.msra.mxu0 %v1553
        %1575 = vmatprep.subr.bf16.mxu0 0
        %1576 = vmatpush1.bf16.msra.mxu0 0
        %1577 = vmatprep.subr.bf16.mxu0 0
        %1578 = vmatpush1.bf16.msra.mxu0 0
        %1579 = vmatprep.subr.bf16.mxu0 0
        %1580 = vmatpush1.bf16.msra.mxu0 0
        %1581 = vmatprep.subr.bf16.mxu0 0
        %1582 = vmatpush1.bf16.msra.mxu0 0
        %1583 = vmatprep.subr.bf16.mxu0 0
        %1584 = vmatpush1.bf16.msra.mxu0 0
        %1585 = vmatprep.subr.bf16.mxu0 0
        %1586 = vmatpush1.bf16.msra.mxu0 0
        %1587 = vmatprep.subr.bf16.mxu0 0
        %1588 = vmatpush1.bf16.msra.mxu0 0
        %1589 = vmatprep.subr.bf16.mxu0 0
        %1590 = vmatpush1.bf16.msra.mxu0 0
        %1591 = vmatprep.subr.bf16.mxu0 0
        %1592 = vmatpush1.bf16.msra.mxu0 0
        %1593 = vmatprep.subr.bf16.mxu0 0
        %1594 = vmatpush1.bf16.msra.mxu0 0
        %1595 = vmatprep.subr.bf16.mxu0 0
        %1596 = vmatpush1.bf16.msra.mxu0 0
        %1597 = vmatprep.subr.bf16.mxu0 0
        %1598 = vmatpush1.bf16.msra.mxu0 0
        %1599 = vmatprep.subr.bf16.mxu0 0
        %1600 = vmatpush1.bf16.msra.mxu0 0
        %1601 = vmatprep.subr.bf16.mxu0 0
        %1602 = vmatpush1.bf16.msra.mxu0 0
        %1603 = vmatprep.mubr.bf16.mxu0 0
        %1604 = vmatmul.mubr.bf16.gmra.mrb[0].mxu0 %v1560
        %v1605 = vpop.f32.mrb[0].mxu0
        %v1606 = vadd.f32 0.0, %v1605
        %v1607 = vpop.f32.mrb[0].mxu0
        %v1608 = vadd.f32 0.0, %v1607
        %v1609 = vpop.f32.mrb[0].mxu0
        %v1610 = vadd.f32 0.0, %v1609
        %v1611 = vpop.f32.mrb[0].mxu0
        %v1612 = vadd.f32 0.0, %v1611
        %1613 = vmatprep.mubr.bf16.mxu0 0
        %1614 = vmatmul.mubr.bf16.gmra.mrb[0].mxu0 %v1563
        %v1615 = vpop.f32.mrb[0].mxu0
        %v1616 = vadd.f32 0.0, %v1615
        %v1617 = vpop.f32.mrb[0].mxu0
        %v1618 = vadd.f32 0.0, %v1617
        %v1619 = vpop.f32.mrb[0].mxu0
        %v1620 = vadd.f32 0.0, %v1619
        %v1621 = vpop.f32.mrb[0].mxu0
        %v1622 = vadd.f32 0.0, %v1621
        %1623 = vmatprep.mubr.bf16.mxu0 0
        %1624 = vmatmul.mubr.bf16.gmra.mrb[0].mxu0 %v1566
        %v1625 = vpop.f32.mrb[0].mxu0
        %v1626 = vadd.f32 0.0, %v1625
        %v1627 = vpop.f32.mrb[0].mxu0
        %v1628 = vadd.f32 0.0, %v1627
        %v1629 = vpop.f32.mrb[0].mxu0
        %v1630 = vadd.f32 0.0, %v1629
        %v1631 = vpop.f32.mrb[0].mxu0
        %v1632 = vadd.f32 0.0, %v1631
        %1633 = vmatprep.mubr.bf16.mxu0 0
        %1634 = vmatmul.mubr.bf16.gmra.mrb[0].mxu0 %v1569
        %v1635 = vpop.f32.mrb[0].mxu0
        %v1636 = vadd.f32 0.0, %v1635
        %v1637 = vpop.f32.mrb[0].mxu0
        %v1638 = vadd.f32 0.0, %v1637
        %v1639 = vpop.f32.mrb[0].mxu0
        %v1640 = vadd.f32 0.0, %v1639
        %v1641 = vpop.f32.mrb[0].mxu0
        %v1642 = vadd.f32 0.0, %v1641
        %1643 = vdwg.mxu0
        %v1644 = vadd.f32 %v1507, %v1606
        %v1645 = vadd.f32 %v1508, %v1608
        %v1646 = vadd.f32 %v1509, %v1610
        %v1647 = vadd.f32 %v1510, %v1612
        %v1648 = vadd.f32 %v1511, %v1616
        %v1649 = vadd.f32 %v1512, %v1618
        %v1650 = vadd.f32 %v1513, %v1620
        %v1651 = vadd.f32 %v1514, %v1622
        %v1652 = vadd.f32 %v1515, %v1626
        %v1653 = vadd.f32 %v1516, %v1628
        %v1654 = vadd.f32 %v1517, %v1630
        %v1655 = vadd.f32 %v1518, %v1632
        %v1656 = vadd.f32 %v1519, %v1636
        %v1657 = vadd.f32 %v1520, %v1638
        %v1658 = vadd.f32 %v1521, %v1640
        %v1659 = vadd.f32 %v1522, %v1642
        %v1660 = vmax.f32 %v1644, %v1645
        %v1661 = vmax.f32 %v1646, %v1647
        %v1662 = vmax.f32 %v1648, %v1649
        %v1663 = vmax.f32 %v1650, %v1651
        %v1664 = vmax.f32 %v1652, %v1653
        %v1665 = vmax.f32 %v1654, %v1655
        %v1666 = vmax.f32 %v1656, %v1657
        %v1667 = vmax.f32 %v1658, %v1659
        %v1668 = vmax.f32 %v1660, %v1661
        %v1669 = vadd.f32 %v1668, %v997
        %v1670 = vmax.f32 %v1669, 0.0
        %1671 = vst [vmem:[#allocation2 + $0x20] sm:$0xff] %v1670
        %v1672 = vmax.f32 %v1662, %v1663
        %v1673 = vadd.f32 %v1672, %v997
        %v1674 = vmax.f32 %v1673, 0.0
        %1675 = vst [vmem:[#allocation2 + $0x28] sm:$0xff] %v1674
        %v1676 = vmax.f32 %v1664, %v1665
        %v1677 = vadd.f32 %v1676, %v997
        %v1678 = vmax.f32 %v1677, 0.0
        %1679 = vst [vmem:[#allocation2 + $0x30] sm:$0xff] %v1678
        %v1680 = vmax.f32 %v1666, %v1667
        %v1681 = vadd.f32 %v1680, %v997
        %v1682 = vmax.f32 %v1681, 0.0
        %1683 = vst [vmem:[#allocation2 + $0x38] sm:$0xff] %v1682
        %v1684 = vld [vmem:[%s330 + $0x80] sm:$0xff]
        %v1685 = vld [vmem:[%s330 + $0x88] sm:$0xff]
        %v1686 = vld [vmem:[%s330 + $0x90] sm:$0xff]
        %v1687 = vld [vmem:[%s330 + $0x98] sm:$0xff]
        %v1688 = vld [vmem:[%s330 + $0xa0] sm:$0xff]
        %v1689 = vld [vmem:[%s330 + $0xa8] sm:$0xff]
        %v1690 = vld [vmem:[%s330 + $0xb0] sm:$0xff]
        %v1691 = vld [vmem:[%s330 + $0xb8] sm:$0xff]
        %v1692 = vpack.c.bf16 %v1685, %v1684
        %v1693 = vpack.c.bf16 %v1687, %v1686
        %v1694 = vpack.c.bf16 %v1689, %v1688
        %v1695 = vpack.c.bf16 %v1691, %v1690
        %v1696 = vld [vmem:[%s1] sm:$0xff]
        %v1697 = vld [vmem:[%s1 + $0x8] sm:$0xff]
        %v1698 = vld [vmem:[%s1 + $0x10] sm:$0xff]
        %v1699 = vld [vmem:[%s1 + $0x18] sm:$0xff]
        %v1700 = vld [vmem:[%s330 + $0xc0] sm:$0xff]
        %v1701 = vpack.c.bf16 %v1686, %v1685
        %v1702 = vpack.c.bf16 %v1688, %v1687
        %v1703 = vpack.c.bf16 %v1690, %v1689
        %v1704 = vpack.c.bf16 %v1700, %v1691
        %v1705 = vld [vmem:[%s354] sm:$0xff]
        %v1706 = vld [vmem:[%s354 + $0x8] sm:$0xff]
        %v1707 = vld [vmem:[%s354 + $0x10] sm:$0xff]
        %v1708 = vld [vmem:[%s354 + $0x18] sm:$0xff]
        %v1713 = vunpack.c.l.b16 %v1705
        %v1714 = vunpack.c.h.b16 %v1705
        %v1715 = vunpack.c.l.b16 %v1706
        %v1716 = vunpack.c.h.b16 %v1706
        %v1717 = vunpack.c.l.b16 %v1707
        %v1718 = vunpack.c.h.b16 %v1707
        %v1719 = vunpack.c.l.b16 %v1708
        %v1720 = vunpack.c.h.b16 %v1708
        %v1721 = vpack.c.b16 %v1715, %v1713
        %v1722 = vpack.c.b16 %v1716, %v1714
        %v1723 = vpack.c.b16 %v1719, %v1717
        %v1724 = vpack.c.b16 %v1720, %v1718
        %v1730 = vsel %vm379, %v1701, 0
        %v1733 = vsel %vm379, %v1702, 0
        %v1736 = vsel %vm379, %v1703, 0
        %v1739 = vsel %vm379, %v1704, 0
        %1741 = vmatprep.subr.bf16.mxu0 %v1722
        %1742 = vmatpush1.bf16.msra.mxu0 %v1721
        %1743 = vmatprep.subr.bf16.mxu0 %v1724
        %1744 = vmatpush1.bf16.msra.mxu0 %v1723
        %1745 = vmatprep.subr.bf16.mxu0 0
        %1746 = vmatpush1.bf16.msra.mxu0 0
        %1747 = vmatprep.subr.bf16.mxu0 0
        %1748 = vmatpush1.bf16.msra.mxu0 0
        %1749 = vmatprep.subr.bf16.mxu0 0
        %1750 = vmatpush1.bf16.msra.mxu0 0
        %1751 = vmatprep.subr.bf16.mxu0 0
        %1752 = vmatpush1.bf16.msra.mxu0 0
        %1753 = vmatprep.subr.bf16.mxu0 0
        %1754 = vmatpush1.bf16.msra.mxu0 0
        %1755 = vmatprep.subr.bf16.mxu0 0
        %1756 = vmatpush1.bf16.msra.mxu0 0
        %1757 = vmatprep.subr.bf16.mxu0 0
        %1758 = vmatpush1.bf16.msra.mxu0 0
        %1759 = vmatprep.subr.bf16.mxu0 0
        %1760 = vmatpush1.bf16.msra.mxu0 0
        %1761 = vmatprep.subr.bf16.mxu0 0
        %1762 = vmatpush1.bf16.msra.mxu0 0
        %1763 = vmatprep.subr.bf16.mxu0 0
        %1764 = vmatpush1.bf16.msra.mxu0 0
        %1765 = vmatprep.subr.bf16.mxu0 0
        %1766 = vmatpush1.bf16.msra.mxu0 0
        %1767 = vmatprep.subr.bf16.mxu0 0
        %1768 = vmatpush1.bf16.msra.mxu0 0
        %1769 = vmatprep.subr.bf16.mxu0 0
        %1770 = vmatpush1.bf16.msra.mxu0 0
        %1771 = vmatprep.subr.bf16.mxu0 0
        %1772 = vmatpush1.bf16.msra.mxu0 0
        %1773 = vmatprep.mubr.bf16.mxu0 0
        %1774 = vmatmul.mubr.bf16.gmra.mrb[0].mxu0 %v1730
        %v1775 = vpop.f32.mrb[0].mxu0
        %v1776 = vadd.f32 0.0, %v1775
        %v1777 = vpop.f32.mrb[0].mxu0
        %v1778 = vadd.f32 0.0, %v1777
        %v1779 = vpop.f32.mrb[0].mxu0
        %v1780 = vadd.f32 0.0, %v1779
        %v1781 = vpop.f32.mrb[0].mxu0
        %v1782 = vadd.f32 0.0, %v1781
        %1783 = vmatprep.mubr.bf16.mxu0 0
        %1784 = vmatmul.mubr.bf16.gmra.mrb[0].mxu0 %v1733
        %v1785 = vpop.f32.mrb[0].mxu0
        %v1786 = vadd.f32 0.0, %v1785
        %v1787 = vpop.f32.mrb[0].mxu0
        %v1788 = vadd.f32 0.0, %v1787
        %v1789 = vpop.f32.mrb[0].mxu0
        %v1790 = vadd.f32 0.0, %v1789
        %v1791 = vpop.f32.mrb[0].mxu0
        %v1792 = vadd.f32 0.0, %v1791
        %1793 = vmatprep.mubr.bf16.mxu0 0
        %1794 = vmatmul.mubr.bf16.gmra.mrb[0].mxu0 %v1736
        %v1795 = vpop.f32.mrb[0].mxu0
        %v1796 = vadd.f32 0.0, %v1795
        %v1797 = vpop.f32.mrb[0].mxu0
        %v1798 = vadd.f32 0.0, %v1797
        %v1799 = vpop.f32.mrb[0].mxu0
        %v1800 = vadd.f32 0.0, %v1799
        %v1801 = vpop.f32.mrb[0].mxu0
        %v1802 = vadd.f32 0.0, %v1801
        %1803 = vmatprep.mubr.bf16.mxu0 0
        %1804 = vmatmul.mubr.bf16.gmra.mrb[0].mxu0 %v1739
        %v1805 = vpop.f32.mrb[0].mxu0
        %v1806 = vadd.f32 0.0, %v1805
        %v1807 = vpop.f32.mrb[0].mxu0
        %v1808 = vadd.f32 0.0, %v1807
        %v1809 = vpop.f32.mrb[0].mxu0
        %v1810 = vadd.f32 0.0, %v1809
        %v1811 = vpop.f32.mrb[0].mxu0
        %v1812 = vadd.f32 0.0, %v1811
        %1813 = vdwg.mxu0
        %v1818 = vunpack.c.l.b16 %v1696
        %v1819 = vunpack.c.h.b16 %v1696
        %v1820 = vunpack.c.l.b16 %v1697
        %v1821 = vunpack.c.h.b16 %v1697
        %v1822 = vunpack.c.l.b16 %v1698
        %v1823 = vunpack.c.h.b16 %v1698
        %v1824 = vunpack.c.l.b16 %v1699
        %v1825 = vunpack.c.h.b16 %v1699
        %v1826 = vpack.c.b16 %v1820, %v1818
        %v1827 = vpack.c.b16 %v1821, %v1819
        %v1828 = vpack.c.b16 %v1824, %v1822
        %v1829 = vpack.c.b16 %v1825, %v1823
        %v1835 = vsel %vm379, %v1692, 0
        %v1838 = vsel %vm379, %v1693, 0
        %v1841 = vsel %vm379, %v1694, 0
        %v1844 = vsel %vm379, %v1695, 0
        %1846 = vmatprep.subr.bf16.mxu0 %v1827
        %1847 = vmatpush1.bf16.msra.mxu0 %v1826
        %1848 = vmatprep.subr.bf16.mxu0 %v1829
        %1849 = vmatpush1.bf16.msra.mxu0 %v1828
        %1850 = vmatprep.subr.bf16.mxu0 0
        %1851 = vmatpush1.bf16.msra.mxu0 0
        %1852 = vmatprep.subr.bf16.mxu0 0
        %1853 = vmatpush1.bf16.msra.mxu0 0
        %1854 = vmatprep.subr.bf16.mxu0 0
        %1855 = vmatpush1.bf16.msra.mxu0 0
        %1856 = vmatprep.subr.bf16.mxu0 0
        %1857 = vmatpush1.bf16.msra.mxu0 0
        %1858 = vmatprep.subr.bf16.mxu0 0
        %1859 = vmatpush1.bf16.msra.mxu0 0
        %1860 = vmatprep.subr.bf16.mxu0 0
        %1861 = vmatpush1.bf16.msra.mxu0 0
        %1862 = vmatprep.subr.bf16.mxu0 0
        %1863 = vmatpush1.bf16.msra.mxu0 0
        %1864 = vmatprep.subr.bf16.mxu0 0
        %1865 = vmatpush1.bf16.msra.mxu0 0
        %1866 = vmatprep.subr.bf16.mxu0 0
        %1867 = vmatpush1.bf16.msra.mxu0 0
        %1868 = vmatprep.subr.bf16.mxu0 0
        %1869 = vmatpush1.bf16.msra.mxu0 0
        %1870 = vmatprep.subr.bf16.mxu0 0
        %1871 = vmatpush1.bf16.msra.mxu0 0
        %1872 = vmatprep.subr.bf16.mxu0 0
        %1873 = vmatpush1.bf16.msra.mxu0 0
        %1874 = vmatprep.subr.bf16.mxu0 0
        %1875 = vmatpush1.bf16.msra.mxu0 0
        %1876 = vmatprep.subr.bf16.mxu0 0
        %1877 = vmatpush1.bf16.msra.mxu0 0
        %1878 = vmatprep.mubr.bf16.mxu0 0
        %1879 = vmatmul.mubr.bf16.gmra.mrb[0].mxu0 %v1835
        %v1880 = vpop.f32.mrb[0].mxu0
        %v1881 = vadd.f32 %v1776, %v1880
        %v1882 = vpop.f32.mrb[0].mxu0
        %v1883 = vadd.f32 %v1778, %v1882
        %v1884 = vpop.f32.mrb[0].mxu0
        %v1885 = vadd.f32 %v1780, %v1884
        %v1886 = vpop.f32.mrb[0].mxu0
        %v1887 = vadd.f32 %v1782, %v1886
        %1888 = vmatprep.mubr.bf16.mxu0 0
        %1889 = vmatmul.mubr.bf16.gmra.mrb[0].mxu0 %v1838
        %v1890 = vpop.f32.mrb[0].mxu0
        %v1891 = vadd.f32 %v1786, %v1890
        %v1892 = vpop.f32.mrb[0].mxu0
        %v1893 = vadd.f32 %v1788, %v1892
        %v1894 = vpop.f32.mrb[0].mxu0
        %v1895 = vadd.f32 %v1790, %v1894
        %v1896 = vpop.f32.mrb[0].mxu0
        %v1897 = vadd.f32 %v1792, %v1896
        %1898 = vmatprep.mubr.bf16.mxu0 0
        %1899 = vmatmul.mubr.bf16.gmra.mrb[0].mxu0 %v1841
        %v1900 = vpop.f32.mrb[0].mxu0
        %v1901 = vadd.f32 %v1796, %v1900
        %v1902 = vpop.f32.mrb[0].mxu0
        %v1903 = vadd.f32 %v1798, %v1902
        %v1904 = vpop.f32.mrb[0].mxu0
        %v1905 = vadd.f32 %v1800, %v1904
        %v1906 = vpop.f32.mrb[0].mxu0
        %v1907 = vadd.f32 %v1802, %v1906
        %1908 = vmatprep.mubr.bf16.mxu0 0
        %1909 = vmatmul.mubr.bf16.gmra.mrb[0].mxu0 %v1844
        %v1910 = vpop.f32.mrb[0].mxu0
        %v1911 = vadd.f32 %v1806, %v1910
        %v1912 = vpop.f32.mrb[0].mxu0
        %v1913 = vadd.f32 %v1808, %v1912
        %v1914 = vpop.f32.mrb[0].mxu0
        %v1915 = vadd.f32 %v1810, %v1914
        %v1916 = vpop.f32.mrb[0].mxu0
        %v1917 = vadd.f32 %v1812, %v1916
        %1918 = vdwg.mxu0
        %v1919 = vld [vmem:[%s330 + $0x90] sm:$0xff]
        %v1920 = vld [vmem:[%s330 + $0x98] sm:$0xff]
        %v1921 = vld [vmem:[%s330 + $0xa0] sm:$0xff]
        %v1922 = vld [vmem:[%s330 + $0xa8] sm:$0xff]
        %v1923 = vld [vmem:[%s330 + $0xb0] sm:$0xff]
        %v1924 = vld [vmem:[%s330 + $0xb8] sm:$0xff]
        %v1925 = vld [vmem:[%s330 + $0xc0] sm:$0xff]
        %v1926 = vld [vmem:[%s330 + $0xc8] sm:$0xff]
        %v1927 = vpack.c.bf16 %v1920, %v1919
        %v1928 = vpack.c.bf16 %v1922, %v1921
        %v1929 = vpack.c.bf16 %v1924, %v1923
        %v1930 = vpack.c.bf16 %v1926, %v1925
        %v1931 = vld [vmem:[%s582] sm:$0xff]
        %v1932 = vld [vmem:[%s582 + $0x8] sm:$0xff]
        %v1933 = vld [vmem:[%s582 + $0x10] sm:$0xff]
        %v1934 = vld [vmem:[%s582 + $0x18] sm:$0xff]
        %v1939 = vunpack.c.l.b16 %v1931
        %v1940 = vunpack.c.h.b16 %v1931
        %v1941 = vunpack.c.l.b16 %v1932
        %v1942 = vunpack.c.h.b16 %v1932
        %v1943 = vunpack.c.l.b16 %v1933
        %v1944 = vunpack.c.h.b16 %v1933
        %v1945 = vunpack.c.l.b16 %v1934
        %v1946 = vunpack.c.h.b16 %v1934
        %v1947 = vpack.c.b16 %v1941, %v1939
        %v1948 = vpack.c.b16 %v1942, %v1940
        %v1949 = vpack.c.b16 %v1945, %v1943
        %v1950 = vpack.c.b16 %v1946, %v1944
        %v1956 = vsel %vm379, %v1927, 0
        %v1959 = vsel %vm379, %v1928, 0
        %v1962 = vsel %vm379, %v1929, 0
        %v1965 = vsel %vm379, %v1930, 0
        %1967 = vmatprep.subr.bf16.mxu0 %v1948
        %1968 = vmatpush1.bf16.msra.mxu0 %v1947
        %1969 = vmatprep.subr.bf16.mxu0 %v1950
        %1970 = vmatpush1.bf16.msra.mxu0 %v1949
        %1971 = vmatprep.subr.bf16.mxu0 0
        %1972 = vmatpush1.bf16.msra.mxu0 0
        %1973 = vmatprep.subr.bf16.mxu0 0
        %1974 = vmatpush1.bf16.msra.mxu0 0
        %1975 = vmatprep.subr.bf16.mxu0 0
        %1976 = vmatpush1.bf16.msra.mxu0 0
        %1977 = vmatprep.subr.bf16.mxu0 0
        %1978 = vmatpush1.bf16.msra.mxu0 0
        %1979 = vmatprep.subr.bf16.mxu0 0
        %1980 = vmatpush1.bf16.msra.mxu0 0
        %1981 = vmatprep.subr.bf16.mxu0 0
        %1982 = vmatpush1.bf16.msra.mxu0 0
        %1983 = vmatprep.subr.bf16.mxu0 0
        %1984 = vmatpush1.bf16.msra.mxu0 0
        %1985 = vmatprep.subr.bf16.mxu0 0
        %1986 = vmatpush1.bf16.msra.mxu0 0
        %1987 = vmatprep.subr.bf16.mxu0 0
        %1988 = vmatpush1.bf16.msra.mxu0 0
        %1989 = vmatprep.subr.bf16.mxu0 0
        %1990 = vmatpush1.bf16.msra.mxu0 0
        %1991 = vmatprep.subr.bf16.mxu0 0
        %1992 = vmatpush1.bf16.msra.mxu0 0
        %1993 = vmatprep.subr.bf16.mxu0 0
        %1994 = vmatpush1.bf16.msra.mxu0 0
        %1995 = vmatprep.subr.bf16.mxu0 0
        %1996 = vmatpush1.bf16.msra.mxu0 0
        %1997 = vmatprep.subr.bf16.mxu0 0
        %1998 = vmatpush1.bf16.msra.mxu0 0
        %1999 = vmatprep.mubr.bf16.mxu0 0
        %2000 = vmatmul.mubr.bf16.gmra.mrb[0].mxu0 %v1956
        %v2001 = vpop.f32.mrb[0].mxu0
        %v2002 = vadd.f32 0.0, %v2001
        %v2003 = vpop.f32.mrb[0].mxu0
        %v2004 = vadd.f32 0.0, %v2003
        %v2005 = vpop.f32.mrb[0].mxu0
        %v2006 = vadd.f32 0.0, %v2005
        %v2007 = vpop.f32.mrb[0].mxu0
        %v2008 = vadd.f32 0.0, %v2007
        %2009 = vmatprep.mubr.bf16.mxu0 0
        %2010 = vmatmul.mubr.bf16.gmra.mrb[0].mxu0 %v1959
        %v2011 = vpop.f32.mrb[0].mxu0
        %v2012 = vadd.f32 0.0, %v2011
        %v2013 = vpop.f32.mrb[0].mxu0
        %v2014 = vadd.f32 0.0, %v2013
        %v2015 = vpop.f32.mrb[0].mxu0
        %v2016 = vadd.f32 0.0, %v2015
        %v2017 = vpop.f32.mrb[0].mxu0
        %v2018 = vadd.f32 0.0, %v2017
        %2019 = vmatprep.mubr.bf16.mxu0 0
        %2020 = vmatmul.mubr.bf16.gmra.mrb[0].mxu0 %v1962
        %v2021 = vpop.f32.mrb[0].mxu0
        %v2022 = vadd.f32 0.0, %v2021
        %v2023 = vpop.f32.mrb[0].mxu0
        %v2024 = vadd.f32 0.0, %v2023
        %v2025 = vpop.f32.mrb[0].mxu0
        %v2026 = vadd.f32 0.0, %v2025
        %v2027 = vpop.f32.mrb[0].mxu0
        %v2028 = vadd.f32 0.0, %v2027
        %2029 = vmatprep.mubr.bf16.mxu0 0
        %2030 = vmatmul.mubr.bf16.gmra.mrb[0].mxu0 %v1965
        %v2031 = vpop.f32.mrb[0].mxu0
        %v2032 = vadd.f32 0.0, %v2031
        %v2033 = vpop.f32.mrb[0].mxu0
        %v2034 = vadd.f32 0.0, %v2033
        %v2035 = vpop.f32.mrb[0].mxu0
        %v2036 = vadd.f32 0.0, %v2035
        %v2037 = vpop.f32.mrb[0].mxu0
        %v2038 = vadd.f32 0.0, %v2037
        %2039 = vdwg.mxu0
        %v2040 = vadd.f32 %v1881, %v2002
        %v2041 = vadd.f32 %v1883, %v2004
        %v2042 = vadd.f32 %v1885, %v2006
        %v2043 = vadd.f32 %v1887, %v2008
        %v2044 = vadd.f32 %v1891, %v2012
        %v2045 = vadd.f32 %v1893, %v2014
        %v2046 = vadd.f32 %v1895, %v2016
        %v2047 = vadd.f32 %v1897, %v2018
        %v2048 = vadd.f32 %v1901, %v2022
        %v2049 = vadd.f32 %v1903, %v2024
        %v2050 = vadd.f32 %v1905, %v2026
        %v2051 = vadd.f32 %v1907, %v2028
        %v2052 = vadd.f32 %v1911, %v2032
        %v2053 = vadd.f32 %v1913, %v2034
        %v2054 = vadd.f32 %v1915, %v2036
        %v2055 = vadd.f32 %v1917, %v2038
        %v2056 = vld [vmem:[%s330 + $0x98] sm:$0xff]
        %v2057 = vld [vmem:[%s330 + $0xa0] sm:$0xff]
        %v2058 = vld [vmem:[%s330 + $0xa8] sm:$0xff]
        %v2059 = vld [vmem:[%s330 + $0xb0] sm:$0xff]
        %v2060 = vld [vmem:[%s330 + $0xb8] sm:$0xff]
        %v2061 = vld [vmem:[%s330 + $0xc0] sm:$0xff]
        %v2062 = vld [vmem:[%s330 + $0xc8] sm:$0xff]
        %v2063 = vld [vmem:[%s330 + $0xd0] sm:$0xff]
        %v2064 = vpack.c.bf16 %v2057, %v2056
        %v2065 = vpack.c.bf16 %v2059, %v2058
        %v2066 = vpack.c.bf16 %v2061, %v2060
        %v2067 = vpack.c.bf16 %v2063, %v2062
        %v2068 = vld [vmem:[%s720] sm:$0xff]
        %v2069 = vld [vmem:[%s720 + $0x8] sm:$0xff]
        %v2070 = vld [vmem:[%s720 + $0x10] sm:$0xff]
        %v2071 = vld [vmem:[%s720 + $0x18] sm:$0xff]
        %v2076 = vunpack.c.l.b16 %v2068
        %v2077 = vunpack.c.h.b16 %v2068
        %v2078 = vunpack.c.l.b16 %v2069
        %v2079 = vunpack.c.h.b16 %v2069
        %v2080 = vunpack.c.l.b16 %v2070
        %v2081 = vunpack.c.h.b16 %v2070
        %v2082 = vunpack.c.l.b16 %v2071
        %v2083 = vunpack.c.h.b16 %v2071
        %v2084 = vpack.c.b16 %v2078, %v2076
        %v2085 = vpack.c.b16 %v2079, %v2077
        %v2086 = vpack.c.b16 %v2082, %v2080
        %v2087 = vpack.c.b16 %v2083, %v2081
        %v2093 = vsel %vm379, %v2064, 0
        %v2096 = vsel %vm379, %v2065, 0
        %v2099 = vsel %vm379, %v2066, 0
        %v2102 = vsel %vm379, %v2067, 0
        %2104 = vmatprep.subr.bf16.mxu0 %v2085
        %2105 = vmatpush1.bf16.msra.mxu0 %v2084
        %2106 = vmatprep.subr.bf16.mxu0 %v2087
        %2107 = vmatpush1.bf16.msra.mxu0 %v2086
        %2108 = vmatprep.subr.bf16.mxu0 0
        %2109 = vmatpush1.bf16.msra.mxu0 0
        %2110 = vmatprep.subr.bf16.mxu0 0
        %2111 = vmatpush1.bf16.msra.mxu0 0
        %2112 = vmatprep.subr.bf16.mxu0 0
        %2113 = vmatpush1.bf16.msra.mxu0 0
        %2114 = vmatprep.subr.bf16.mxu0 0
        %2115 = vmatpush1.bf16.msra.mxu0 0
        %2116 = vmatprep.subr.bf16.mxu0 0
        %2117 = vmatpush1.bf16.msra.mxu0 0
        %2118 = vmatprep.subr.bf16.mxu0 0
        %2119 = vmatpush1.bf16.msra.mxu0 0
        %2120 = vmatprep.subr.bf16.mxu0 0
        %2121 = vmatpush1.bf16.msra.mxu0 0
        %2122 = vmatprep.subr.bf16.mxu0 0
        %2123 = vmatpush1.bf16.msra.mxu0 0
        %2124 = vmatprep.subr.bf16.mxu0 0
        %2125 = vmatpush1.bf16.msra.mxu0 0
        %2126 = vmatprep.subr.bf16.mxu0 0
        %2127 = vmatpush1.bf16.msra.mxu0 0
        %2128 = vmatprep.subr.bf16.mxu0 0
        %2129 = vmatpush1.bf16.msra.mxu0 0
        %2130 = vmatprep.subr.bf16.mxu0 0
        %2131 = vmatpush1.bf16.msra.mxu0 0
        %2132 = vmatprep.subr.bf16.mxu0 0
        %2133 = vmatpush1.bf16.msra.mxu0 0
        %2134 = vmatprep.subr.bf16.mxu0 0
        %2135 = vmatpush1.bf16.msra.mxu0 0
        %2136 = vmatprep.mubr.bf16.mxu0 0
        %2137 = vmatmul.mubr.bf16.gmra.mrb[0].mxu0 %v2093
        %v2138 = vpop.f32.mrb[0].mxu0
        %v2139 = vadd.f32 0.0, %v2138
        %v2140 = vpop.f32.mrb[0].mxu0
        %v2141 = vadd.f32 0.0, %v2140
        %v2142 = vpop.f32.mrb[0].mxu0
        %v2143 = vadd.f32 0.0, %v2142
        %v2144 = vpop.f32.mrb[0].mxu0
        %v2145 = vadd.f32 0.0, %v2144
        %2146 = vmatprep.mubr.bf16.mxu0 0
        %2147 = vmatmul.mubr.bf16.gmra.mrb[0].mxu0 %v2096
        %v2148 = vpop.f32.mrb[0].mxu0
        %v2149 = vadd.f32 0.0, %v2148
        %v2150 = vpop.f32.mrb[0].mxu0
        %v2151 = vadd.f32 0.0, %v2150
        %v2152 = vpop.f32.mrb[0].mxu0
        %v2153 = vadd.f32 0.0, %v2152
        %v2154 = vpop.f32.mrb[0].mxu0
        %v2155 = vadd.f32 0.0, %v2154
        %2156 = vmatprep.mubr.bf16.mxu0 0
        %2157 = vmatmul.mubr.bf16.gmra.mrb[0].mxu0 %v2099
        %v2158 = vpop.f32.mrb[0].mxu0
        %v2159 = vadd.f32 0.0, %v2158
        %v2160 = vpop.f32.mrb[0].mxu0
        %v2161 = vadd.f32 0.0, %v2160
        %v2162 = vpop.f32.mrb[0].mxu0
        %v2163 = vadd.f32 0.0, %v2162
        %v2164 = vpop.f32.mrb[0].mxu0
        %v2165 = vadd.f32 0.0, %v2164
        %2166 = vmatprep.mubr.bf16.mxu0 0
        %2167 = vmatmul.mubr.bf16.gmra.mrb[0].mxu0 %v2102
        %v2168 = vpop.f32.mrb[0].mxu0
        %v2169 = vadd.f32 0.0, %v2168
        %v2170 = vpop.f32.mrb[0].mxu0
        %v2171 = vadd.f32 0.0, %v2170
        %v2172 = vpop.f32.mrb[0].mxu0
        %v2173 = vadd.f32 0.0, %v2172
        %v2174 = vpop.f32.mrb[0].mxu0
        %v2175 = vadd.f32 0.0, %v2174
        %2176 = vdwg.mxu0
        %v2177 = vadd.f32 %v2040, %v2139
        %v2178 = vadd.f32 %v2041, %v2141
        %v2179 = vadd.f32 %v2042, %v2143
        %v2180 = vadd.f32 %v2043, %v2145
        %v2181 = vadd.f32 %v2044, %v2149
        %v2182 = vadd.f32 %v2045, %v2151
        %v2183 = vadd.f32 %v2046, %v2153
        %v2184 = vadd.f32 %v2047, %v2155
        %v2185 = vadd.f32 %v2048, %v2159
        %v2186 = vadd.f32 %v2049, %v2161
        %v2187 = vadd.f32 %v2050, %v2163
        %v2188 = vadd.f32 %v2051, %v2165
        %v2189 = vadd.f32 %v2052, %v2169
        %v2190 = vadd.f32 %v2053, %v2171
        %v2191 = vadd.f32 %v2054, %v2173
        %v2192 = vadd.f32 %v2055, %v2175
        %v2193 = vld [vmem:[%s330 + $0xa0] sm:$0xff]
        %v2194 = vld [vmem:[%s330 + $0xa8] sm:$0xff]
        %v2195 = vld [vmem:[%s330 + $0xb0] sm:$0xff]
        %v2196 = vld [vmem:[%s330 + $0xb8] sm:$0xff]
        %v2197 = vld [vmem:[%s330 + $0xc0] sm:$0xff]
        %v2198 = vld [vmem:[%s330 + $0xc8] sm:$0xff]
        %v2199 = vld [vmem:[%s330 + $0xd0] sm:$0xff]
        %v2200 = vld [vmem:[%s330 + $0xd8] sm:$0xff]
        %v2201 = vpack.c.bf16 %v2194, %v2193
        %v2202 = vpack.c.bf16 %v2196, %v2195
        %v2203 = vpack.c.bf16 %v2198, %v2197
        %v2204 = vpack.c.bf16 %v2200, %v2199
        %v2205 = vld [vmem:[%s858] sm:$0xff]
        %v2206 = vld [vmem:[%s858 + $0x8] sm:$0xff]
        %v2207 = vld [vmem:[%s858 + $0x10] sm:$0xff]
        %v2208 = vld [vmem:[%s858 + $0x18] sm:$0xff]
        %v2213 = vunpack.c.l.b16 %v2205
        %v2214 = vunpack.c.h.b16 %v2205
        %v2215 = vunpack.c.l.b16 %v2206
        %v2216 = vunpack.c.h.b16 %v2206
        %v2217 = vunpack.c.l.b16 %v2207
        %v2218 = vunpack.c.h.b16 %v2207
        %v2219 = vunpack.c.l.b16 %v2208
        %v2220 = vunpack.c.h.b16 %v2208
        %v2221 = vpack.c.b16 %v2215, %v2213
        %v2222 = vpack.c.b16 %v2216, %v2214
        %v2223 = vpack.c.b16 %v2219, %v2217
        %v2224 = vpack.c.b16 %v2220, %v2218
        %v2230 = vsel %vm379, %v2201, 0
        %v2233 = vsel %vm379, %v2202, 0
        %v2236 = vsel %vm379, %v2203, 0
        %v2239 = vsel %vm379, %v2204, 0
        %2241 = vmatprep.subr.bf16.mxu0 %v2222
        %2242 = vmatpush1.bf16.msra.mxu0 %v2221
        %2243 = vmatprep.subr.bf16.mxu0 %v2224
        %2244 = vmatpush1.bf16.msra.mxu0 %v2223
        %2245 = vmatprep.subr.bf16.mxu0 0
        %2246 = vmatpush1.bf16.msra.mxu0 0
        %2247 = vmatprep.subr.bf16.mxu0 0
        %2248 = vmatpush1.bf16.msra.mxu0 0
        %2249 = vmatprep.subr.bf16.mxu0 0
        %2250 = vmatpush1.bf16.msra.mxu0 0
        %2251 = vmatprep.subr.bf16.mxu0 0
        %2252 = vmatpush1.bf16.msra.mxu0 0
        %2253 = vmatprep.subr.bf16.mxu0 0
        %2254 = vmatpush1.bf16.msra.mxu0 0
        %2255 = vmatprep.subr.bf16.mxu0 0
        %2256 = vmatpush1.bf16.msra.mxu0 0
        %2257 = vmatprep.subr.bf16.mxu0 0
        %2258 = vmatpush1.bf16.msra.mxu0 0
        %2259 = vmatprep.subr.bf16.mxu0 0
        %2260 = vmatpush1.bf16.msra.mxu0 0
        %2261 = vmatprep.subr.bf16.mxu0 0
        %2262 = vmatpush1.bf16.msra.mxu0 0
        %2263 = vmatprep.subr.bf16.mxu0 0
        %2264 = vmatpush1.bf16.msra.mxu0 0
        %2265 = vmatprep.subr.bf16.mxu0 0
        %2266 = vmatpush1.bf16.msra.mxu0 0
        %2267 = vmatprep.subr.bf16.mxu0 0
        %2268 = vmatpush1.bf16.msra.mxu0 0
        %2269 = vmatprep.subr.bf16.mxu0 0
        %2270 = vmatpush1.bf16.msra.mxu0 0
        %2271 = vmatprep.subr.bf16.mxu0 0
        %2272 = vmatpush1.bf16.msra.mxu0 0
        %2273 = vmatprep.mubr.bf16.mxu0 0
        %2274 = vmatmul.mubr.bf16.gmra.mrb[0].mxu0 %v2230
        %v2275 = vpop.f32.mrb[0].mxu0
        %v2276 = vadd.f32 0.0, %v2275
        %v2277 = vpop.f32.mrb[0].mxu0
        %v2278 = vadd.f32 0.0, %v2277
        %v2279 = vpop.f32.mrb[0].mxu0
        %v2280 = vadd.f32 0.0, %v2279
        %v2281 = vpop.f32.mrb[0].mxu0
        %v2282 = vadd.f32 0.0, %v2281
        %2283 = vmatprep.mubr.bf16.mxu0 0
        %2284 = vmatmul.mubr.bf16.gmra.mrb[0].mxu0 %v2233
        %v2285 = vpop.f32.mrb[0].mxu0
        %v2286 = vadd.f32 0.0, %v2285
        %v2287 = vpop.f32.mrb[0].mxu0
        %v2288 = vadd.f32 0.0, %v2287
        %v2289 = vpop.f32.mrb[0].mxu0
        %v2290 = vadd.f32 0.0, %v2289
        %v2291 = vpop.f32.mrb[0].mxu0
        %v2292 = vadd.f32 0.0, %v2291
        %2293 = vmatprep.mubr.bf16.mxu0 0
        %2294 = vmatmul.mubr.bf16.gmra.mrb[0].mxu0 %v2236
        %v2295 = vpop.f32.mrb[0].mxu0
        %v2296 = vadd.f32 0.0, %v2295
        %v2297 = vpop.f32.mrb[0].mxu0
        %v2298 = vadd.f32 0.0, %v2297
        %v2299 = vpop.f32.mrb[0].mxu0
        %v2300 = vadd.f32 0.0, %v2299
        %v2301 = vpop.f32.mrb[0].mxu0
        %v2302 = vadd.f32 0.0, %v2301
        %2303 = vmatprep.mubr.bf16.mxu0 0
        %2304 = vmatmul.mubr.bf16.gmra.mrb[0].mxu0 %v2239
        %v2305 = vpop.f32.mrb[0].mxu0
        %v2306 = vadd.f32 0.0, %v2305
        %v2307 = vpop.f32.mrb[0].mxu0
        %v2308 = vadd.f32 0.0, %v2307
        %v2309 = vpop.f32.mrb[0].mxu0
        %v2310 = vadd.f32 0.0, %v2309
        %v2311 = vpop.f32.mrb[0].mxu0
        %v2312 = vadd.f32 0.0, %v2311
        %2313 = vdwg.mxu0
        %v2314 = vadd.f32 %v2177, %v2276
        %v2315 = vadd.f32 %v2178, %v2278
        %v2316 = vadd.f32 %v2179, %v2280
        %v2317 = vadd.f32 %v2180, %v2282
        %v2318 = vadd.f32 %v2181, %v2286
        %v2319 = vadd.f32 %v2182, %v2288
        %v2320 = vadd.f32 %v2183, %v2290
        %v2321 = vadd.f32 %v2184, %v2292
        %v2322 = vadd.f32 %v2185, %v2296
        %v2323 = vadd.f32 %v2186, %v2298
        %v2324 = vadd.f32 %v2187, %v2300
        %v2325 = vadd.f32 %v2188, %v2302
        %v2326 = vadd.f32 %v2189, %v2306
        %v2327 = vadd.f32 %v2190, %v2308
        %v2328 = vadd.f32 %v2191, %v2310
        %v2329 = vadd.f32 %v2192, %v2312
        %v2330 = vmax.f32 %v2314, %v2315
        %v2331 = vmax.f32 %v2316, %v2317
        %v2332 = vmax.f32 %v2318, %v2319
        %v2333 = vmax.f32 %v2320, %v2321
        %v2334 = vmax.f32 %v2322, %v2323
        %v2335 = vmax.f32 %v2324, %v2325
        %v2336 = vmax.f32 %v2326, %v2327
        %v2337 = vmax.f32 %v2328, %v2329
        %v2338 = vmax.f32 %v2330, %v2331
        %v2339 = vadd.f32 %v2338, %v997
        %v2340 = vmax.f32 %v2339, 0.0
        %2341 = vst [vmem:[#allocation2 + $0x40] sm:$0xff] %v2340
        %v2342 = vmax.f32 %v2332, %v2333
        %v2343 = vadd.f32 %v2342, %v997
        %v2344 = vmax.f32 %v2343, 0.0
        %2345 = vst [vmem:[#allocation2 + $0x48] sm:$0xff] %v2344
        %v2346 = vmax.f32 %v2334, %v2335
        %v2347 = vadd.f32 %v2346, %v997
        %v2348 = vmax.f32 %v2347, 0.0
        %2349 = vst [vmem:[#allocation2 + $0x50] sm:$0xff] %v2348
        %v2350 = vmax.f32 %v2336, %v2337
        %v2351 = vadd.f32 %v2350, %v997
        %v2352 = vmax.f32 %v2351, 0.0
        %2353 = vst [vmem:[#allocation2 + $0x58] sm:$0xff] %v2352
        %v2354 = vld [vmem:[#allocation2] sm:$0xff]
        %v2355 = vld [vmem:[#allocation2 + $0x8] sm:$0xff]
        %v2356 = vld [vmem:[#allocation2 + $0x10] sm:$0xff]
        %v2357 = vld [vmem:[#allocation2 + $0x18] sm:$0xff]
        %v2358 = vld [vmem:[#allocation2 + $0x20] sm:$0xff]
        %v2359 = vld [vmem:[#allocation2 + $0x28] sm:$0xff]
        %v2360 = vld [vmem:[#allocation2 + $0x30] sm:$0xff]
        %v2361 = vld [vmem:[#allocation2 + $0x38] sm:$0xff]
        %v2362 = vpack.c.bf16 %v2355, %v2354
        %v2363 = vpack.c.bf16 %v2357, %v2356
        %v2364 = vpack.c.bf16 %v2359, %v2358
        %v2365 = vpack.c.bf16 %v2361, %v2360
        %v2366 = vld [vmem:[%s3] sm:$0xff]
        %v2367 = vld [vmem:[%s3 + $0x8] sm:$0xff]
        %v2368 = vld [vmem:[%s3 + $0x10] sm:$0xff]
        %v2369 = vld [vmem:[%s3 + $0x18] sm:$0xff]
        %v2370 = vld [vmem:[%s3 + $0x20] sm:$0xff]
        %v2371 = vld [vmem:[%s3 + $0x28] sm:$0xff]
        %v2372 = vld [vmem:[%s3 + $0x30] sm:$0xff]
        %v2373 = vld [vmem:[%s3 + $0x38] sm:$0xff]
        %v2374 = vld [vmem:[%s3 + $0x40] sm:$0xff]
        %v2375 = vld [vmem:[%s3 + $0x48] sm:$0xff]
        %v2376 = vld [vmem:[%s3 + $0x50] sm:$0xff]
        %v2377 = vld [vmem:[%s3 + $0x58] sm:$0xff]
        %v2378 = vld [vmem:[%s3 + $0x60] sm:$0xff]
        %v2379 = vld [vmem:[%s3 + $0x68] sm:$0xff]
        %v2380 = vld [vmem:[%s3 + $0x70] sm:$0xff]
        %v2381 = vld [vmem:[%s3 + $0x78] sm:$0xff]
        %v2382 = vld [vmem:[#allocation2 + $0x40] sm:$0xff]
        %v2383 = vpack.c.bf16 %v2356, %v2355
        %v2384 = vpack.c.bf16 %v2358, %v2357
        %v2385 = vpack.c.bf16 %v2360, %v2359
        %v2386 = vpack.c.bf16 %v2382, %v2361
        %s2387 = scalar_lea.vmem %s3, 128
        %v2388 = vld [vmem:[%s2387] sm:$0xff]
        %v2389 = vld [vmem:[%s2387 + $0x8] sm:$0xff]
        %v2390 = vld [vmem:[%s2387 + $0x10] sm:$0xff]
        %v2391 = vld [vmem:[%s2387 + $0x18] sm:$0xff]
        %v2392 = vld [vmem:[%s2387 + $0x20] sm:$0xff]
        %v2393 = vld [vmem:[%s2387 + $0x28] sm:$0xff]
        %v2394 = vld [vmem:[%s2387 + $0x30] sm:$0xff]
        %v2395 = vld [vmem:[%s2387 + $0x38] sm:$0xff]
        %v2396 = vld [vmem:[%s2387 + $0x40] sm:$0xff]
        %v2397 = vld [vmem:[%s2387 + $0x48] sm:$0xff]
        %v2398 = vld [vmem:[%s2387 + $0x50] sm:$0xff]
        %v2399 = vld [vmem:[%s2387 + $0x58] sm:$0xff]
        %v2400 = vld [vmem:[%s2387 + $0x60] sm:$0xff]
        %v2401 = vld [vmem:[%s2387 + $0x68] sm:$0xff]
        %v2402 = vld [vmem:[%s2387 + $0x70] sm:$0xff]
        %v2403 = vld [vmem:[%s2387 + $0x78] sm:$0xff]
        %v2420 = vunpack.c.l.b16 %v2388
        %v2421 = vunpack.c.h.b16 %v2388
        %v2422 = vunpack.c.l.b16 %v2389
        %v2423 = vunpack.c.h.b16 %v2389
        %v2424 = vunpack.c.l.b16 %v2390
        %v2425 = vunpack.c.h.b16 %v2390
        %v2426 = vunpack.c.l.b16 %v2391
        %v2427 = vunpack.c.h.b16 %v2391
        %v2428 = vunpack.c.l.b16 %v2392
        %v2429 = vunpack.c.h.b16 %v2392
        %v2430 = vunpack.c.l.b16 %v2393
        %v2431 = vunpack.c.h.b16 %v2393
        %v2432 = vunpack.c.l.b16 %v2394
        %v2433 = vunpack.c.h.b16 %v2394
        %v2434 = vunpack.c.l.b16 %v2395
        %v2435 = vunpack.c.h.b16 %v2395
        %v2436 = vunpack.c.l.b16 %v2396
        %v2437 = vunpack.c.h.b16 %v2396
        %v2438 = vunpack.c.l.b16 %v2397
        %v2439 = vunpack.c.h.b16 %v2397
        %v2440 = vunpack.c.l.b16 %v2398
        %v2441 = vunpack.c.h.b16 %v2398
        %v2442 = vunpack.c.l.b16 %v2399
        %v2443 = vunpack.c.h.b16 %v2399
        %v2444 = vunpack.c.l.b16 %v2400
        %v2445 = vunpack.c.h.b16 %v2400
        %v2446 = vunpack.c.l.b16 %v2401
        %v2447 = vunpack.c.h.b16 %v2401
        %v2448 = vunpack.c.l.b16 %v2402
        %v2449 = vunpack.c.h.b16 %v2402
        %v2450 = vunpack.c.l.b16 %v2403
        %v2451 = vunpack.c.h.b16 %v2403
        %v2452 = vpack.c.b16 %v2422, %v2420
        %v2453 = vpack.c.b16 %v2423, %v2421
        %v2454 = vpack.c.b16 %v2426, %v2424
        %v2455 = vpack.c.b16 %v2427, %v2425
        %v2456 = vpack.c.b16 %v2430, %v2428
        %v2457 = vpack.c.b16 %v2431, %v2429
        %v2458 = vpack.c.b16 %v2434, %v2432
        %v2459 = vpack.c.b16 %v2435, %v2433
        %v2460 = vpack.c.b16 %v2438, %v2436
        %v2461 = vpack.c.b16 %v2439, %v2437
        %v2462 = vpack.c.b16 %v2442, %v2440
        %v2463 = vpack.c.b16 %v2443, %v2441
        %v2464 = vpack.c.b16 %v2446, %v2444
        %v2465 = vpack.c.b16 %v2447, %v2445
        %v2466 = vpack.c.b16 %v2450, %v2448
        %v2467 = vpack.c.b16 %v2451, %v2449
        %2484 = vmatprep.subr.bf16.mxu0 %v2453
        %2485 = vmatpush1.bf16.msra.mxu0 %v2452
        %2486 = vmatprep.subr.bf16.mxu0 %v2455
        %2487 = vmatpush1.bf16.msra.mxu0 %v2454
        %2488 = vmatprep.subr.bf16.mxu0 %v2457
        %2489 = vmatpush1.bf16.msra.mxu0 %v2456
        %2490 = vmatprep.subr.bf16.mxu0 %v2459
        %2491 = vmatpush1.bf16.msra.mxu0 %v2458
        %2492 = vmatprep.subr.bf16.mxu0 %v2461
        %2493 = vmatpush1.bf16.msra.mxu0 %v2460
        %2494 = vmatprep.subr.bf16.mxu0 %v2463
        %2495 = vmatpush1.bf16.msra.mxu0 %v2462
        %2496 = vmatprep.subr.bf16.mxu0 %v2465
        %2497 = vmatpush1.bf16.msra.mxu0 %v2464
        %2498 = vmatprep.subr.bf16.mxu0 %v2467
        %2499 = vmatpush1.bf16.msra.mxu0 %v2466
        %2500 = vmatprep.subr.bf16.mxu0 0
        %2501 = vmatpush1.bf16.msra.mxu0 0
        %2502 = vmatprep.subr.bf16.mxu0 0
        %2503 = vmatpush1.bf16.msra.mxu0 0
        %2504 = vmatprep.subr.bf16.mxu0 0
        %2505 = vmatpush1.bf16.msra.mxu0 0
        %2506 = vmatprep.subr.bf16.mxu0 0
        %2507 = vmatpush1.bf16.msra.mxu0 0
        %2508 = vmatprep.subr.bf16.mxu0 0
        %2509 = vmatpush1.bf16.msra.mxu0 0
        %2510 = vmatprep.subr.bf16.mxu0 0
        %2511 = vmatpush1.bf16.msra.mxu0 0
        %2512 = vmatprep.subr.bf16.mxu0 0
        %2513 = vmatpush1.bf16.msra.mxu0 0
        %2514 = vmatprep.subr.bf16.mxu0 0
        %2515 = vmatpush1.bf16.msra.mxu0 0
        %2516 = vmatprep.mubr.bf16.mxu0 0
        %2517 = vmatmul.mubr.bf16.gmra.mrb[0].mxu0 %v2383
        %v2518 = vpop.f32.mrb[0].mxu0
        %v2519 = vadd.f32 0.0, %v2518
        %v2520 = vpop.f32.mrb[0].mxu0
        %v2521 = vadd.f32 0.0, %v2520
        %v2522 = vpop.f32.mrb[0].mxu0
        %v2523 = vadd.f32 0.0, %v2522
        %v2524 = vpop.f32.mrb[0].mxu0
        %v2525 = vadd.f32 0.0, %v2524
        %2526 = vmatprep.mubr.bf16.mxu0 0
        %2527 = vmatmul.mubr.bf16.gmra.mrb[0].mxu0 %v2384
        %v2528 = vpop.f32.mrb[0].mxu0
        %v2529 = vadd.f32 0.0, %v2528
        %v2530 = vpop.f32.mrb[0].mxu0
        %v2531 = vadd.f32 0.0, %v2530
        %v2532 = vpop.f32.mrb[0].mxu0
        %v2533 = vadd.f32 0.0, %v2532
        %v2534 = vpop.f32.mrb[0].mxu0
        %v2535 = vadd.f32 0.0, %v2534
        %2536 = vmatprep.mubr.bf16.mxu0 0
        %2537 = vmatmul.mubr.bf16.gmra.mrb[0].mxu0 %v2385
        %v2538 = vpop.f32.mrb[0].mxu0
        %v2539 = vadd.f32 0.0, %v2538
        %v2540 = vpop.f32.mrb[0].mxu0
        %v2541 = vadd.f32 0.0, %v2540
        %v2542 = vpop.f32.mrb[0].mxu0
        %v2543 = vadd.f32 0.0, %v2542
        %v2544 = vpop.f32.mrb[0].mxu0
        %v2545 = vadd.f32 0.0, %v2544
        %2546 = vmatprep.mubr.bf16.mxu0 0
        %2547 = vmatmul.mubr.bf16.gmra.mrb[0].mxu0 %v2386
        %v2548 = vpop.f32.mrb[0].mxu0
        %v2549 = vadd.f32 0.0, %v2548
        %v2550 = vpop.f32.mrb[0].mxu0
        %v2551 = vadd.f32 0.0, %v2550
        %v2552 = vpop.f32.mrb[0].mxu0
        %v2553 = vadd.f32 0.0, %v2552
        %v2554 = vpop.f32.mrb[0].mxu0
        %v2555 = vadd.f32 0.0, %v2554
        %2556 = vdwg.mxu0
        %v2573 = vunpack.c.l.b16 %v2366
        %v2574 = vunpack.c.h.b16 %v2366
        %v2575 = vunpack.c.l.b16 %v2367
        %v2576 = vunpack.c.h.b16 %v2367
        %v2577 = vunpack.c.l.b16 %v2368
        %v2578 = vunpack.c.h.b16 %v2368
        %v2579 = vunpack.c.l.b16 %v2369
        %v2580 = vunpack.c.h.b16 %v2369
        %v2581 = vunpack.c.l.b16 %v2370
        %v2582 = vunpack.c.h.b16 %v2370
        %v2583 = vunpack.c.l.b16 %v2371
        %v2584 = vunpack.c.h.b16 %v2371
        %v2585 = vunpack.c.l.b16 %v2372
        %v2586 = vunpack.c.h.b16 %v2372
        %v2587 = vunpack.c.l.b16 %v2373
        %v2588 = vunpack.c.h.b16 %v2373
        %v2589 = vunpack.c.l.b16 %v2374
        %v2590 = vunpack.c.h.b16 %v2374
        %v2591 = vunpack.c.l.b16 %v2375
        %v2592 = vunpack.c.h.b16 %v2375
        %v2593 = vunpack.c.l.b16 %v2376
        %v2594 = vunpack.c.h.b16 %v2376
        %v2595 = vunpack.c.l.b16 %v2377
        %v2596 = vunpack.c.h.b16 %v2377
        %v2597 = vunpack.c.l.b16 %v2378
        %v2598 = vunpack.c.h.b16 %v2378
        %v2599 = vunpack.c.l.b16 %v2379
        %v2600 = vunpack.c.h.b16 %v2379
        %v2601 = vunpack.c.l.b16 %v2380
        %v2602 = vunpack.c.h.b16 %v2380
        %v2603 = vunpack.c.l.b16 %v2381
        %v2604 = vunpack.c.h.b16 %v2381
        %v2605 = vpack.c.b16 %v2575, %v2573
        %v2606 = vpack.c.b16 %v2576, %v2574
        %v2607 = vpack.c.b16 %v2579, %v2577
        %v2608 = vpack.c.b16 %v2580, %v2578
        %v2609 = vpack.c.b16 %v2583, %v2581
        %v2610 = vpack.c.b16 %v2584, %v2582
        %v2611 = vpack.c.b16 %v2587, %v2585
        %v2612 = vpack.c.b16 %v2588, %v2586
        %v2613 = vpack.c.b16 %v2591, %v2589
        %v2614 = vpack.c.b16 %v2592, %v2590
        %v2615 = vpack.c.b16 %v2595, %v2593
        %v2616 = vpack.c.b16 %v2596, %v2594
        %v2617 = vpack.c.b16 %v2599, %v2597
        %v2618 = vpack.c.b16 %v2600, %v2598
        %v2619 = vpack.c.b16 %v2603, %v2601
        %v2620 = vpack.c.b16 %v2604, %v2602
        %2637 = vmatprep.subr.bf16.mxu0 %v2606
        %2638 = vmatpush1.bf16.msra.mxu0 %v2605
        %2639 = vmatprep.subr.bf16.mxu0 %v2608
        %2640 = vmatpush1.bf16.msra.mxu0 %v2607
        %2641 = vmatprep.subr.bf16.mxu0 %v2610
        %2642 = vmatpush1.bf16.msra.mxu0 %v2609
        %2643 = vmatprep.subr.bf16.mxu0 %v2612
        %2644 = vmatpush1.bf16.msra.mxu0 %v2611
        %2645 = vmatprep.subr.bf16.mxu0 %v2614
        %2646 = vmatpush1.bf16.msra.mxu0 %v2613
        %2647 = vmatprep.subr.bf16.mxu0 %v2616
        %2648 = vmatpush1.bf16.msra.mxu0 %v2615
        %2649 = vmatprep.subr.bf16.mxu0 %v2618
        %2650 = vmatpush1.bf16.msra.mxu0 %v2617
        %2651 = vmatprep.subr.bf16.mxu0 %v2620
        %2652 = vmatpush1.bf16.msra.mxu0 %v2619
        %2653 = vmatprep.subr.bf16.mxu0 0
        %2654 = vmatpush1.bf16.msra.mxu0 0
        %2655 = vmatprep.subr.bf16.mxu0 0
        %2656 = vmatpush1.bf16.msra.mxu0 0
        %2657 = vmatprep.subr.bf16.mxu0 0
        %2658 = vmatpush1.bf16.msra.mxu0 0
        %2659 = vmatprep.subr.bf16.mxu0 0
        %2660 = vmatpush1.bf16.msra.mxu0 0
        %2661 = vmatprep.subr.bf16.mxu0 0
        %2662 = vmatpush1.bf16.msra.mxu0 0
        %2663 = vmatprep.subr.bf16.mxu0 0
        %2664 = vmatpush1.bf16.msra.mxu0 0
        %2665 = vmatprep.subr.bf16.mxu0 0
        %2666 = vmatpush1.bf16.msra.mxu0 0
        %2667 = vmatprep.subr.bf16.mxu0 0
        %2668 = vmatpush1.bf16.msra.mxu0 0
        %2669 = vmatprep.mubr.bf16.mxu0 0
        %2670 = vmatmul.mubr.bf16.gmra.mrb[0].mxu0 %v2362
        %v2671 = vpop.f32.mrb[0].mxu0
        %v2672 = vadd.f32 %v2519, %v2671
        %v2673 = vpop.f32.mrb[0].mxu0
        %v2674 = vadd.f32 %v2521, %v2673
        %v2675 = vpop.f32.mrb[0].mxu0
        %v2676 = vadd.f32 %v2523, %v2675
        %v2677 = vpop.f32.mrb[0].mxu0
        %v2678 = vadd.f32 %v2525, %v2677
        %2679 = vmatprep.mubr.bf16.mxu0 0
        %2680 = vmatmul.mubr.bf16.gmra.mrb[0].mxu0 %v2363
        %v2681 = vpop.f32.mrb[0].mxu0
        %v2682 = vadd.f32 %v2529, %v2681
        %v2683 = vpop.f32.mrb[0].mxu0
        %v2684 = vadd.f32 %v2531, %v2683
        %v2685 = vpop.f32.mrb[0].mxu0
        %v2686 = vadd.f32 %v2533, %v2685
        %v2687 = vpop.f32.mrb[0].mxu0
        %v2688 = vadd.f32 %v2535, %v2687
        %2689 = vmatprep.mubr.bf16.mxu0 0
        %2690 = vmatmul.mubr.bf16.gmra.mrb[0].mxu0 %v2364
        %v2691 = vpop.f32.mrb[0].mxu0
        %v2692 = vadd.f32 %v2539, %v2691
        %v2693 = vpop.f32.mrb[0].mxu0
        %v2694 = vadd.f32 %v2541, %v2693
        %v2695 = vpop.f32.mrb[0].mxu0
        %v2696 = vadd.f32 %v2543, %v2695
        %v2697 = vpop.f32.mrb[0].mxu0
        %v2698 = vadd.f32 %v2545, %v2697
        %2699 = vmatprep.mubr.bf16.mxu0 0
        %2700 = vmatmul.mubr.bf16.gmra.mrb[0].mxu0 %v2365
        %v2701 = vpop.f32.mrb[0].mxu0
        %v2702 = vadd.f32 %v2549, %v2701
        %v2703 = vpop.f32.mrb[0].mxu0
        %v2704 = vadd.f32 %v2551, %v2703
        %v2705 = vpop.f32.mrb[0].mxu0
        %v2706 = vadd.f32 %v2553, %v2705
        %v2707 = vpop.f32.mrb[0].mxu0
        %v2708 = vadd.f32 %v2555, %v2707
        %2709 = vdwg.mxu0
        %v2710 = vld [vmem:[#allocation2 + $0x10] sm:$0xff]
        %v2711 = vld [vmem:[#allocation2 + $0x18] sm:$0xff]
        %v2712 = vld [vmem:[#allocation2 + $0x20] sm:$0xff]
        %v2713 = vld [vmem:[#allocation2 + $0x28] sm:$0xff]
        %v2714 = vld [vmem:[#allocation2 + $0x30] sm:$0xff]
        %v2715 = vld [vmem:[#allocation2 + $0x38] sm:$0xff]
        %v2716 = vld [vmem:[#allocation2 + $0x40] sm:$0xff]
        %v2717 = vld [vmem:[#allocation2 + $0x48] sm:$0xff]
        %v2718 = vpack.c.bf16 %v2711, %v2710
        %v2719 = vpack.c.bf16 %v2713, %v2712
        %v2720 = vpack.c.bf16 %v2715, %v2714
        %v2721 = vpack.c.bf16 %v2717, %v2716
        %s2722 = scalar_lea.vmem %s3, 256
        %v2723 = vld [vmem:[%s2722] sm:$0xff]
        %v2724 = vld [vmem:[%s2722 + $0x8] sm:$0xff]
        %v2725 = vld [vmem:[%s2722 + $0x10] sm:$0xff]
        %v2726 = vld [vmem:[%s2722 + $0x18] sm:$0xff]
        %v2727 = vld [vmem:[%s2722 + $0x20] sm:$0xff]
        %v2728 = vld [vmem:[%s2722 + $0x28] sm:$0xff]
        %v2729 = vld [vmem:[%s2722 + $0x30] sm:$0xff]
        %v2730 = vld [vmem:[%s2722 + $0x38] sm:$0xff]
        %v2731 = vld [vmem:[%s2722 + $0x40] sm:$0xff]
        %v2732 = vld [vmem:[%s2722 + $0x48] sm:$0xff]
        %v2733 = vld [vmem:[%s2722 + $0x50] sm:$0xff]
        %v2734 = vld [vmem:[%s2722 + $0x58] sm:$0xff]
        %v2735 = vld [vmem:[%s2722 + $0x60] sm:$0xff]
        %v2736 = vld [vmem:[%s2722 + $0x68] sm:$0xff]
        %v2737 = vld [vmem:[%s2722 + $0x70] sm:$0xff]
        %v2738 = vld [vmem:[%s2722 + $0x78] sm:$0xff]
        %v2755 = vunpack.c.l.b16 %v2723
        %v2756 = vunpack.c.h.b16 %v2723
        %v2757 = vunpack.c.l.b16 %v2724
        %v2758 = vunpack.c.h.b16 %v2724
        %v2759 = vunpack.c.l.b16 %v2725
        %v2760 = vunpack.c.h.b16 %v2725
        %v2761 = vunpack.c.l.b16 %v2726
        %v2762 = vunpack.c.h.b16 %v2726
        %v2763 = vunpack.c.l.b16 %v2727
        %v2764 = vunpack.c.h.b16 %v2727
        %v2765 = vunpack.c.l.b16 %v2728
        %v2766 = vunpack.c.h.b16 %v2728
        %v2767 = vunpack.c.l.b16 %v2729
        %v2768 = vunpack.c.h.b16 %v2729
        %v2769 = vunpack.c.l.b16 %v2730
        %v2770 = vunpack.c.h.b16 %v2730
        %v2771 = vunpack.c.l.b16 %v2731
        %v2772 = vunpack.c.h.b16 %v2731
        %v2773 = vunpack.c.l.b16 %v2732
        %v2774 = vunpack.c.h.b16 %v2732
        %v2775 = vunpack.c.l.b16 %v2733
        %v2776 = vunpack.c.h.b16 %v2733
        %v2777 = vunpack.c.l.b16 %v2734
        %v2778 = vunpack.c.h.b16 %v2734
        %v2779 = vunpack.c.l.b16 %v2735
        %v2780 = vunpack.c.h.b16 %v2735
        %v2781 = vunpack.c.l.b16 %v2736
        %v2782 = vunpack.c.h.b16 %v2736
        %v2783 = vunpack.c.l.b16 %v2737
        %v2784 = vunpack.c.h.b16 %v2737
        %v2785 = vunpack.c.l.b16 %v2738
        %v2786 = vunpack.c.h.b16 %v2738
        %v2787 = vpack.c.b16 %v2757, %v2755
        %v2788 = vpack.c.b16 %v2758, %v2756
        %v2789 = vpack.c.b16 %v2761, %v2759
        %v2790 = vpack.c.b16 %v2762, %v2760
        %v2791 = vpack.c.b16 %v2765, %v2763
        %v2792 = vpack.c.b16 %v2766, %v2764
        %v2793 = vpack.c.b16 %v2769, %v2767
        %v2794 = vpack.c.b16 %v2770, %v2768
        %v2795 = vpack.c.b16 %v2773, %v2771
        %v2796 = vpack.c.b16 %v2774, %v2772
        %v2797 = vpack.c.b16 %v2777, %v2775
        %v2798 = vpack.c.b16 %v2778, %v2776
        %v2799 = vpack.c.b16 %v2781, %v2779
        %v2800 = vpack.c.b16 %v2782, %v2780
        %v2801 = vpack.c.b16 %v2785, %v2783
        %v2802 = vpack.c.b16 %v2786, %v2784
        %2819 = vmatprep.subr.bf16.mxu0 %v2788
        %2820 = vmatpush1.bf16.msra.mxu0 %v2787
        %2821 = vmatprep.subr.bf16.mxu0 %v2790
        %2822 = vmatpush1.bf16.msra.mxu0 %v2789
        %2823 = vmatprep.subr.bf16.mxu0 %v2792
        %2824 = vmatpush1.bf16.msra.mxu0 %v2791
        %2825 = vmatprep.subr.bf16.mxu0 %v2794
        %2826 = vmatpush1.bf16.msra.mxu0 %v2793
        %2827 = vmatprep.subr.bf16.mxu0 %v2796
        %2828 = vmatpush1.bf16.msra.mxu0 %v2795
        %2829 = vmatprep.subr.bf16.mxu0 %v2798
        %2830 = vmatpush1.bf16.msra.mxu0 %v2797
        %2831 = vmatprep.subr.bf16.mxu0 %v2800
        %2832 = vmatpush1.bf16.msra.mxu0 %v2799
        %2833 = vmatprep.subr.bf16.mxu0 %v2802
        %2834 = vmatpush1.bf16.msra.mxu0 %v2801
        %2835 = vmatprep.subr.bf16.mxu0 0
        %2836 = vmatpush1.bf16.msra.mxu0 0
        %2837 = vmatprep.subr.bf16.mxu0 0
        %2838 = vmatpush1.bf16.msra.mxu0 0
        %2839 = vmatprep.subr.bf16.mxu0 0
        %2840 = vmatpush1.bf16.msra.mxu0 0
        %2841 = vmatprep.subr.bf16.mxu0 0
        %2842 = vmatpush1.bf16.msra.mxu0 0
        %2843 = vmatprep.subr.bf16.mxu0 0
        %2844 = vmatpush1.bf16.msra.mxu0 0
        %2845 = vmatprep.subr.bf16.mxu0 0
        %2846 = vmatpush1.bf16.msra.mxu0 0
        %2847 = vmatprep.subr.bf16.mxu0 0
        %2848 = vmatpush1.bf16.msra.mxu0 0
        %2849 = vmatprep.subr.bf16.mxu0 0
        %2850 = vmatpush1.bf16.msra.mxu0 0
        %2851 = vmatprep.mubr.bf16.mxu0 0
        %2852 = vmatmul.mubr.bf16.gmra.mrb[0].mxu0 %v2718
        %v2853 = vpop.f32.mrb[0].mxu0
        %v2854 = vadd.f32 0.0, %v2853
        %v2855 = vpop.f32.mrb[0].mxu0
        %v2856 = vadd.f32 0.0, %v2855
        %v2857 = vpop.f32.mrb[0].mxu0
        %v2858 = vadd.f32 0.0, %v2857
        %v2859 = vpop.f32.mrb[0].mxu0
        %v2860 = vadd.f32 0.0, %v2859
        %2861 = vmatprep.mubr.bf16.mxu0 0
        %2862 = vmatmul.mubr.bf16.gmra.mrb[0].mxu0 %v2719
        %v2863 = vpop.f32.mrb[0].mxu0
        %v2864 = vadd.f32 0.0, %v2863
        %v2865 = vpop.f32.mrb[0].mxu0
        %v2866 = vadd.f32 0.0, %v2865
        %v2867 = vpop.f32.mrb[0].mxu0
        %v2868 = vadd.f32 0.0, %v2867
        %v2869 = vpop.f32.mrb[0].mxu0
        %v2870 = vadd.f32 0.0, %v2869
        %2871 = vmatprep.mubr.bf16.mxu0 0
        %2872 = vmatmul.mubr.bf16.gmra.mrb[0].mxu0 %v2720
        %v2873 = vpop.f32.mrb[0].mxu0
        %v2874 = vadd.f32 0.0, %v2873
        %v2875 = vpop.f32.mrb[0].mxu0
        %v2876 = vadd.f32 0.0, %v2875
        %v2877 = vpop.f32.mrb[0].mxu0
        %v2878 = vadd.f32 0.0, %v2877
        %v2879 = vpop.f32.mrb[0].mxu0
        %v2880 = vadd.f32 0.0, %v2879
        %2881 = vmatprep.mubr.bf16.mxu0 0
        %2882 = vmatmul.mubr.bf16.gmra.mrb[0].mxu0 %v2721
        %v2883 = vpop.f32.mrb[0].mxu0
        %v2884 = vadd.f32 0.0, %v2883
        %v2885 = vpop.f32.mrb[0].mxu0
        %v2886 = vadd.f32 0.0, %v2885
        %v2887 = vpop.f32.mrb[0].mxu0
        %v2888 = vadd.f32 0.0, %v2887
        %v2889 = vpop.f32.mrb[0].mxu0
        %v2890 = vadd.f32 0.0, %v2889
        %2891 = vdwg.mxu0
        %v2892 = vadd.f32 %v2672, %v2854
        %v2893 = vadd.f32 %v2674, %v2856
        %v2894 = vadd.f32 %v2676, %v2858
        %v2895 = vadd.f32 %v2678, %v2860
        %v2896 = vadd.f32 %v2682, %v2864
        %v2897 = vadd.f32 %v2684, %v2866
        %v2898 = vadd.f32 %v2686, %v2868
        %v2899 = vadd.f32 %v2688, %v2870
        %v2900 = vadd.f32 %v2692, %v2874
        %v2901 = vadd.f32 %v2694, %v2876
        %v2902 = vadd.f32 %v2696, %v2878
        %v2903 = vadd.f32 %v2698, %v2880
        %v2904 = vadd.f32 %v2702, %v2884
        %v2905 = vadd.f32 %v2704, %v2886
        %v2906 = vadd.f32 %v2706, %v2888
        %v2907 = vadd.f32 %v2708, %v2890
        %v2908 = vld [vmem:[#allocation2 + $0x18] sm:$0xff]
        %v2909 = vld [vmem:[#allocation2 + $0x20] sm:$0xff]
        %v2910 = vld [vmem:[#allocation2 + $0x28] sm:$0xff]
        %v2911 = vld [vmem:[#allocation2 + $0x30] sm:$0xff]
        %v2912 = vld [vmem:[#allocation2 + $0x38] sm:$0xff]
        %v2913 = vld [vmem:[#allocation2 + $0x40] sm:$0xff]
        %v2914 = vld [vmem:[#allocation2 + $0x48] sm:$0xff]
        %v2915 = vld [vmem:[#allocation2 + $0x50] sm:$0xff]
        %v2916 = vpack.c.bf16 %v2909, %v2908
        %v2917 = vpack.c.bf16 %v2911, %v2910
        %v2918 = vpack.c.bf16 %v2913, %v2912
        %v2919 = vpack.c.bf16 %v2915, %v2914
        %s2920 = scalar_lea.vmem %s3, 384
        %v2921 = vld [vmem:[%s2920] sm:$0xff]
        %v2922 = vld [vmem:[%s2920 + $0x8] sm:$0xff]
        %v2923 = vld [vmem:[%s2920 + $0x10] sm:$0xff]
        %v2924 = vld [vmem:[%s2920 + $0x18] sm:$0xff]
        %v2925 = vld [vmem:[%s2920 + $0x20] sm:$0xff]
        %v2926 = vld [vmem:[%s2920 + $0x28] sm:$0xff]
        %v2927 = vld [vmem:[%s2920 + $0x30] sm:$0xff]
        %v2928 = vld [vmem:[%s2920 + $0x38] sm:$0xff]
        %v2929 = vld [vmem:[%s2920 + $0x40] sm:$0xff]
        %v2930 = vld [vmem:[%s2920 + $0x48] sm:$0xff]
        %v2931 = vld [vmem:[%s2920 + $0x50] sm:$0xff]
        %v2932 = vld [vmem:[%s2920 + $0x58] sm:$0xff]
        %v2933 = vld [vmem:[%s2920 + $0x60] sm:$0xff]
        %v2934 = vld [vmem:[%s2920 + $0x68] sm:$0xff]
        %v2935 = vld [vmem:[%s2920 + $0x70] sm:$0xff]
        %v2936 = vld [vmem:[%s2920 + $0x78] sm:$0xff]
        %v2953 = vunpack.c.l.b16 %v2921
        %v2954 = vunpack.c.h.b16 %v2921
        %v2955 = vunpack.c.l.b16 %v2922
        %v2956 = vunpack.c.h.b16 %v2922
        %v2957 = vunpack.c.l.b16 %v2923
        %v2958 = vunpack.c.h.b16 %v2923
        %v2959 = vunpack.c.l.b16 %v2924
        %v2960 = vunpack.c.h.b16 %v2924
        %v2961 = vunpack.c.l.b16 %v2925
        %v2962 = vunpack.c.h.b16 %v2925
        %v2963 = vunpack.c.l.b16 %v2926
        %v2964 = vunpack.c.h.b16 %v2926
        %v2965 = vunpack.c.l.b16 %v2927
        %v2966 = vunpack.c.h.b16 %v2927
        %v2967 = vunpack.c.l.b16 %v2928
        %v2968 = vunpack.c.h.b16 %v2928
        %v2969 = vunpack.c.l.b16 %v2929
        %v2970 = vunpack.c.h.b16 %v2929
        %v2971 = vunpack.c.l.b16 %v2930
        %v2972 = vunpack.c.h.b16 %v2930
        %v2973 = vunpack.c.l.b16 %v2931
        %v2974 = vunpack.c.h.b16 %v2931
        %v2975 = vunpack.c.l.b16 %v2932
        %v2976 = vunpack.c.h.b16 %v2932
        %v2977 = vunpack.c.l.b16 %v2933
        %v2978 = vunpack.c.h.b16 %v2933
        %v2979 = vunpack.c.l.b16 %v2934
        %v2980 = vunpack.c.h.b16 %v2934
        %v2981 = vunpack.c.l.b16 %v2935
        %v2982 = vunpack.c.h.b16 %v2935
        %v2983 = vunpack.c.l.b16 %v2936
        %v2984 = vunpack.c.h.b16 %v2936
        %v2985 = vpack.c.b16 %v2955, %v2953
        %v2986 = vpack.c.b16 %v2956, %v2954
        %v2987 = vpack.c.b16 %v2959, %v2957
        %v2988 = vpack.c.b16 %v2960, %v2958
        %v2989 = vpack.c.b16 %v2963, %v2961
        %v2990 = vpack.c.b16 %v2964, %v2962
        %v2991 = vpack.c.b16 %v2967, %v2965
        %v2992 = vpack.c.b16 %v2968, %v2966
        %v2993 = vpack.c.b16 %v2971, %v2969
        %v2994 = vpack.c.b16 %v2972, %v2970
        %v2995 = vpack.c.b16 %v2975, %v2973
        %v2996 = vpack.c.b16 %v2976, %v2974
        %v2997 = vpack.c.b16 %v2979, %v2977
        %v2998 = vpack.c.b16 %v2980, %v2978
        %v2999 = vpack.c.b16 %v2983, %v2981
        %v3000 = vpack.c.b16 %v2984, %v2982
        %3017 = vmatprep.subr.bf16.mxu0 %v2986
        %3018 = vmatpush1.bf16.msra.mxu0 %v2985
        %3019 = vmatprep.subr.bf16.mxu0 %v2988
        %3020 = vmatpush1.bf16.msra.mxu0 %v2987
        %3021 = vmatprep.subr.bf16.mxu0 %v2990
        %3022 = vmatpush1.bf16.msra.mxu0 %v2989
        %3023 = vmatprep.subr.bf16.mxu0 %v2992
        %3024 = vmatpush1.bf16.msra.mxu0 %v2991
        %3025 = vmatprep.subr.bf16.mxu0 %v2994
        %3026 = vmatpush1.bf16.msra.mxu0 %v2993
        %3027 = vmatprep.subr.bf16.mxu0 %v2996
        %3028 = vmatpush1.bf16.msra.mxu0 %v2995
        %3029 = vmatprep.subr.bf16.mxu0 %v2998
        %3030 = vmatpush1.bf16.msra.mxu0 %v2997
        %3031 = vmatprep.subr.bf16.mxu0 %v3000
        %3032 = vmatpush1.bf16.msra.mxu0 %v2999
        %3033 = vmatprep.subr.bf16.mxu0 0
        %3034 = vmatpush1.bf16.msra.mxu0 0
        %3035 = vmatprep.subr.bf16.mxu0 0
        %3036 = vmatpush1.bf16.msra.mxu0 0
        %3037 = vmatprep.subr.bf16.mxu0 0
        %3038 = vmatpush1.bf16.msra.mxu0 0
        %3039 = vmatprep.subr.bf16.mxu0 0
        %3040 = vmatpush1.bf16.msra.mxu0 0
        %3041 = vmatprep.subr.bf16.mxu0 0
        %3042 = vmatpush1.bf16.msra.mxu0 0
        %3043 = vmatprep.subr.bf16.mxu0 0
        %3044 = vmatpush1.bf16.msra.mxu0 0
        %3045 = vmatprep.subr.bf16.mxu0 0
        %3046 = vmatpush1.bf16.msra.mxu0 0
        %3047 = vmatprep.subr.bf16.mxu0 0
        %3048 = vmatpush1.bf16.msra.mxu0 0
        %3049 = vmatprep.mubr.bf16.mxu0 0
        %3050 = vmatmul.mubr.bf16.gmra.mrb[0].mxu0 %v2916
        %v3051 = vpop.f32.mrb[0].mxu0
        %v3052 = vadd.f32 0.0, %v3051
        %v3053 = vpop.f32.mrb[0].mxu0
        %v3054 = vadd.f32 0.0, %v3053
        %v3055 = vpop.f32.mrb[0].mxu0
        %v3056 = vadd.f32 0.0, %v3055
        %v3057 = vpop.f32.mrb[0].mxu0
        %v3058 = vadd.f32 0.0, %v3057
        %3059 = vmatprep.mubr.bf16.mxu0 0
        %3060 = vmatmul.mubr.bf16.gmra.mrb[0].mxu0 %v2917
        %v3061 = vpop.f32.mrb[0].mxu0
        %v3062 = vadd.f32 0.0, %v3061
        %v3063 = vpop.f32.mrb[0].mxu0
        %v3064 = vadd.f32 0.0, %v3063
        %v3065 = vpop.f32.mrb[0].mxu0
        %v3066 = vadd.f32 0.0, %v3065
        %v3067 = vpop.f32.mrb[0].mxu0
        %v3068 = vadd.f32 0.0, %v3067
        %3069 = vmatprep.mubr.bf16.mxu0 0
        %3070 = vmatmul.mubr.bf16.gmra.mrb[0].mxu0 %v2918
        %v3071 = vpop.f32.mrb[0].mxu0
        %v3072 = vadd.f32 0.0, %v3071
        %v3073 = vpop.f32.mrb[0].mxu0
        %v3074 = vadd.f32 0.0, %v3073
        %v3075 = vpop.f32.mrb[0].mxu0
        %v3076 = vadd.f32 0.0, %v3075
        %v3077 = vpop.f32.mrb[0].mxu0
        %v3078 = vadd.f32 0.0, %v3077
        %3079 = vmatprep.mubr.bf16.mxu0 0
        %3080 = vmatmul.mubr.bf16.gmra.mrb[0].mxu0 %v2919
        %v3081 = vpop.f32.mrb[0].mxu0
        %v3082 = vadd.f32 0.0, %v3081
        %v3083 = vpop.f32.mrb[0].mxu0
        %v3084 = vadd.f32 0.0, %v3083
        %v3085 = vpop.f32.mrb[0].mxu0
        %v3086 = vadd.f32 0.0, %v3085
        %v3087 = vpop.f32.mrb[0].mxu0
        %v3088 = vadd.f32 0.0, %v3087
        %3089 = vdwg.mxu0
        %v3090 = vadd.f32 %v2892, %v3052
        %v3091 = vadd.f32 %v2893, %v3054
        %v3092 = vadd.f32 %v2894, %v3056
        %v3093 = vadd.f32 %v2895, %v3058
        %v3094 = vadd.f32 %v2896, %v3062
        %v3095 = vadd.f32 %v2897, %v3064
        %v3096 = vadd.f32 %v2898, %v3066
        %v3097 = vadd.f32 %v2899, %v3068
        %v3098 = vadd.f32 %v2900, %v3072
        %v3099 = vadd.f32 %v2901, %v3074
        %v3100 = vadd.f32 %v2902, %v3076
        %v3101 = vadd.f32 %v2903, %v3078
        %v3102 = vadd.f32 %v2904, %v3082
        %v3103 = vadd.f32 %v2905, %v3084
        %v3104 = vadd.f32 %v2906, %v3086
        %v3105 = vadd.f32 %v2907, %v3088
        %v3106 = vld [vmem:[#allocation2 + $0x20] sm:$0xff]
        %v3107 = vld [vmem:[#allocation2 + $0x28] sm:$0xff]
        %v3108 = vld [vmem:[#allocation2 + $0x30] sm:$0xff]
        %v3109 = vld [vmem:[#allocation2 + $0x38] sm:$0xff]
        %v3110 = vld [vmem:[#allocation2 + $0x40] sm:$0xff]
        %v3111 = vld [vmem:[#allocation2 + $0x48] sm:$0xff]
        %v3112 = vld [vmem:[#allocation2 + $0x50] sm:$0xff]
        %v3113 = vld [vmem:[#allocation2 + $0x58] sm:$0xff]
        %v3114 = vpack.c.bf16 %v3107, %v3106
        %v3115 = vpack.c.bf16 %v3109, %v3108
        %v3116 = vpack.c.bf16 %v3111, %v3110
        %v3117 = vpack.c.bf16 %v3113, %v3112
        %s3118 = scalar_lea.vmem %s3, 512
        %v3119 = vld [vmem:[%s3118] sm:$0xff]
        %v3120 = vld [vmem:[%s3118 + $0x8] sm:$0xff]
        %v3121 = vld [vmem:[%s3118 + $0x10] sm:$0xff]
        %v3122 = vld [vmem:[%s3118 + $0x18] sm:$0xff]
        %v3123 = vld [vmem:[%s3118 + $0x20] sm:$0xff]
        %v3124 = vld [vmem:[%s3118 + $0x28] sm:$0xff]
        %v3125 = vld [vmem:[%s3118 + $0x30] sm:$0xff]
        %v3126 = vld [vmem:[%s3118 + $0x38] sm:$0xff]
        %v3127 = vld [vmem:[%s3118 + $0x40] sm:$0xff]
        %v3128 = vld [vmem:[%s3118 + $0x48] sm:$0xff]
        %v3129 = vld [vmem:[%s3118 + $0x50] sm:$0xff]
        %v3130 = vld [vmem:[%s3118 + $0x58] sm:$0xff]
        %v3131 = vld [vmem:[%s3118 + $0x60] sm:$0xff]
        %v3132 = vld [vmem:[%s3118 + $0x68] sm:$0xff]
        %v3133 = vld [vmem:[%s3118 + $0x70] sm:$0xff]
        %v3134 = vld [vmem:[%s3118 + $0x78] sm:$0xff]
        %v3151 = vunpack.c.l.b16 %v3119
        %v3152 = vunpack.c.h.b16 %v3119
        %v3153 = vunpack.c.l.b16 %v3120
        %v3154 = vunpack.c.h.b16 %v3120
        %v3155 = vunpack.c.l.b16 %v3121
        %v3156 = vunpack.c.h.b16 %v3121
        %v3157 = vunpack.c.l.b16 %v3122
        %v3158 = vunpack.c.h.b16 %v3122
        %v3159 = vunpack.c.l.b16 %v3123
        %v3160 = vunpack.c.h.b16 %v3123
        %v3161 = vunpack.c.l.b16 %v3124
        %v3162 = vunpack.c.h.b16 %v3124
        %v3163 = vunpack.c.l.b16 %v3125
        %v3164 = vunpack.c.h.b16 %v3125
        %v3165 = vunpack.c.l.b16 %v3126
        %v3166 = vunpack.c.h.b16 %v3126
        %v3167 = vunpack.c.l.b16 %v3127
        %v3168 = vunpack.c.h.b16 %v3127
        %v3169 = vunpack.c.l.b16 %v3128
        %v3170 = vunpack.c.h.b16 %v3128
        %v3171 = vunpack.c.l.b16 %v3129
        %v3172 = vunpack.c.h.b16 %v3129
        %v3173 = vunpack.c.l.b16 %v3130
        %v3174 = vunpack.c.h.b16 %v3130
        %v3175 = vunpack.c.l.b16 %v3131
        %v3176 = vunpack.c.h.b16 %v3131
        %v3177 = vunpack.c.l.b16 %v3132
        %v3178 = vunpack.c.h.b16 %v3132
        %v3179 = vunpack.c.l.b16 %v3133
        %v3180 = vunpack.c.h.b16 %v3133
        %v3181 = vunpack.c.l.b16 %v3134
        %v3182 = vunpack.c.h.b16 %v3134
        %v3183 = vpack.c.b16 %v3153, %v3151
        %v3184 = vpack.c.b16 %v3154, %v3152
        %v3185 = vpack.c.b16 %v3157, %v3155
        %v3186 = vpack.c.b16 %v3158, %v3156
        %v3187 = vpack.c.b16 %v3161, %v3159
        %v3188 = vpack.c.b16 %v3162, %v3160
        %v3189 = vpack.c.b16 %v3165, %v3163
        %v3190 = vpack.c.b16 %v3166, %v3164
        %v3191 = vpack.c.b16 %v3169, %v3167
        %v3192 = vpack.c.b16 %v3170, %v3168
        %v3193 = vpack.c.b16 %v3173, %v3171
        %v3194 = vpack.c.b16 %v3174, %v3172
        %v3195 = vpack.c.b16 %v3177, %v3175
        %v3196 = vpack.c.b16 %v3178, %v3176
        %v3197 = vpack.c.b16 %v3181, %v3179
        %v3198 = vpack.c.b16 %v3182, %v3180
        %3215 = vmatprep.subr.bf16.mxu0 %v3184
        %3216 = vmatpush1.bf16.msra.mxu0 %v3183
        %3217 = vmatprep.subr.bf16.mxu0 %v3186
        %3218 = vmatpush1.bf16.msra.mxu0 %v3185
        %3219 = vmatprep.subr.bf16.mxu0 %v3188
        %3220 = vmatpush1.bf16.msra.mxu0 %v3187
        %3221 = vmatprep.subr.bf16.mxu0 %v3190
        %3222 = vmatpush1.bf16.msra.mxu0 %v3189
        %3223 = vmatprep.subr.bf16.mxu0 %v3192
        %3224 = vmatpush1.bf16.msra.mxu0 %v3191
        %3225 = vmatprep.subr.bf16.mxu0 %v3194
        %3226 = vmatpush1.bf16.msra.mxu0 %v3193
        %3227 = vmatprep.subr.bf16.mxu0 %v3196
        %3228 = vmatpush1.bf16.msra.mxu0 %v3195
        %3229 = vmatprep.subr.bf16.mxu0 %v3198
        %3230 = vmatpush1.bf16.msra.mxu0 %v3197
        %3231 = vmatprep.subr.bf16.mxu0 0
        %3232 = vmatpush1.bf16.msra.mxu0 0
        %3233 = vmatprep.subr.bf16.mxu0 0
        %3234 = vmatpush1.bf16.msra.mxu0 0
        %3235 = vmatprep.subr.bf16.mxu0 0
        %3236 = vmatpush1.bf16.msra.mxu0 0
        %3237 = vmatprep.subr.bf16.mxu0 0
        %3238 = vmatpush1.bf16.msra.mxu0 0
        %3239 = vmatprep.subr.bf16.mxu0 0
        %3240 = vmatpush1.bf16.msra.mxu0 0
        %3241 = vmatprep.subr.bf16.mxu0 0
        %3242 = vmatpush1.bf16.msra.mxu0 0
        %3243 = vmatprep.subr.bf16.mxu0 0
        %3244 = vmatpush1.bf16.msra.mxu0 0
        %3245 = vmatprep.subr.bf16.mxu0 0
        %3246 = vmatpush1.bf16.msra.mxu0 0
        %3247 = vmatprep.mubr.bf16.mxu0 0
        %3248 = vmatmul.mubr.bf16.gmra.mrb[0].mxu0 %v3114
        %v3249 = vpop.f32.mrb[0].mxu0
        %v3250 = vadd.f32 0.0, %v3249
        %v3251 = vpop.f32.mrb[0].mxu0
        %v3252 = vadd.f32 0.0, %v3251
        %v3253 = vpop.f32.mrb[0].mxu0
        %v3254 = vadd.f32 0.0, %v3253
        %v3255 = vpop.f32.mrb[0].mxu0
        %v3256 = vadd.f32 0.0, %v3255
        %3257 = vmatprep.mubr.bf16.mxu0 0
        %3258 = vmatmul.mubr.bf16.gmra.mrb[0].mxu0 %v3115
        %v3259 = vpop.f32.mrb[0].mxu0
        %v3260 = vadd.f32 0.0, %v3259
        %v3261 = vpop.f32.mrb[0].mxu0
        %v3262 = vadd.f32 0.0, %v3261
        %v3263 = vpop.f32.mrb[0].mxu0
        %v3264 = vadd.f32 0.0, %v3263
        %v3265 = vpop.f32.mrb[0].mxu0
        %v3266 = vadd.f32 0.0, %v3265
        %3267 = vmatprep.mubr.bf16.mxu0 0
        %3268 = vmatmul.mubr.bf16.gmra.mrb[0].mxu0 %v3116
        %v3269 = vpop.f32.mrb[0].mxu0
        %v3270 = vadd.f32 0.0, %v3269
        %v3271 = vpop.f32.mrb[0].mxu0
        %v3272 = vadd.f32 0.0, %v3271
        %v3273 = vpop.f32.mrb[0].mxu0
        %v3274 = vadd.f32 0.0, %v3273
        %v3275 = vpop.f32.mrb[0].mxu0
        %v3276 = vadd.f32 0.0, %v3275
        %3277 = vmatprep.mubr.bf16.mxu0 0
        %3278 = vmatmul.mubr.bf16.gmra.mrb[0].mxu0 %v3117
        %v3279 = vpop.f32.mrb[0].mxu0
        %v3280 = vadd.f32 0.0, %v3279
        %v3281 = vpop.f32.mrb[0].mxu0
        %v3282 = vadd.f32 0.0, %v3281
        %v3283 = vpop.f32.mrb[0].mxu0
        %v3284 = vadd.f32 0.0, %v3283
        %v3285 = vpop.f32.mrb[0].mxu0
        %v3286 = vadd.f32 0.0, %v3285
        %3287 = vdwg.mxu0
        %v3288 = vadd.f32 %v3090, %v3250
        %v3289 = vadd.f32 %v3091, %v3252
        %v3290 = vadd.f32 %v3092, %v3254
        %v3291 = vadd.f32 %v3093, %v3256
        %v3292 = vadd.f32 %v3094, %v3260
        %v3293 = vadd.f32 %v3095, %v3262
        %v3294 = vadd.f32 %v3096, %v3264
        %v3295 = vadd.f32 %v3097, %v3266
        %v3296 = vadd.f32 %v3098, %v3270
        %v3297 = vadd.f32 %v3099, %v3272
        %v3298 = vadd.f32 %v3100, %v3274
        %v3299 = vadd.f32 %v3101, %v3276
        %v3300 = vadd.f32 %v3102, %v3280
        %v3301 = vadd.f32 %v3103, %v3282
        %v3302 = vadd.f32 %v3104, %v3284
        %v3303 = vadd.f32 %v3105, %v3286
        %v3304 = vmax.f32 %v3288, %v3289
        %v3305 = vmax.f32 %v3290, %v3291
        %v3306 = vmax.f32 %v3292, %v3293
        %v3307 = vmax.f32 %v3294, %v3295
        %v3308 = vmax.f32 %v3296, %v3297
        %v3309 = vmax.f32 %v3298, %v3299
        %v3310 = vmax.f32 %v3300, %v3301
        %v3311 = vmax.f32 %v3302, %v3303
        %v3312 = vld [vmem:[%s4] sm:$0x1]
        %v3313 = vmax.f32 %v3304, %v3305
        %v3315 = vlaneseq
        %v3316 = vshrl.u32 %v3315, 7
        %v3317 = vsub.s32 0, %v3316
        %v3318 = vrot.slane %v3312, %v3317
        %v3320 = vadd.f32 %v3313, %v3318
        %v3321 = vmax.f32 %v3320, 0.0
        %v3322 = vpack.c.bf16 %v3321, %v3321
        %v3323 = vld [vmem:[%s5] sm:$0xf]
        %v3324 = vld [vmem:[%s5 + $0x4] sm:$0xf]
        %v3325 = vld [vmem:[%s5 + $0x8] sm:$0xf]
        %v3326 = vld [vmem:[%s5 + $0xc] sm:$0xf]
        %v3327 = vld [vmem:[%s5 + $0x10] sm:$0xf]
        %v3328 = vld [vmem:[%s5 + $0x14] sm:$0xf]
        %v3329 = vld [vmem:[%s5 + $0x18] sm:$0xf]
        %v3330 = vld [vmem:[%s5 + $0x1c] sm:$0xf]
        %v3331 = vld [vmem:[%s5 + $0x20] sm:$0xf]
        %v3332 = vld [vmem:[%s5 + $0x24] sm:$0xf]
        %v3333 = vld [vmem:[%s5 + $0x28] sm:$0xf]
        %v3334 = vld [vmem:[%s5 + $0x2c] sm:$0xf]
        %v3335 = vld [vmem:[%s5 + $0x30] sm:$0xf]
        %v3336 = vld [vmem:[%s5 + $0x34] sm:$0xf]
        %v3337 = vld [vmem:[%s5 + $0x38] sm:$0xf]
        %v3338 = vld [vmem:[%s5 + $0x3c] sm:$0xf]
        %v3339 = vmax.f32 %v3306, %v3307
        %v3340 = vadd.f32 %v3339, %v3318
        %v3341 = vmax.f32 %v3340, 0.0
        %v3342 = vpack.c.bf16 %v3341, %v3341
        %s3343 = scalar_lea.vmem %s5, 64
        %v3344 = vld [vmem:[%s3343] sm:$0xf]
        %v3345 = vld [vmem:[%s3343 + $0x4] sm:$0xf]
        %v3346 = vld [vmem:[%s3343 + $0x8] sm:$0xf]
        %v3347 = vld [vmem:[%s3343 + $0xc] sm:$0xf]
        %v3348 = vld [vmem:[%s3343 + $0x10] sm:$0xf]
        %v3349 = vld [vmem:[%s3343 + $0x14] sm:$0xf]
        %v3350 = vld [vmem:[%s3343 + $0x18] sm:$0xf]
        %v3351 = vld [vmem:[%s3343 + $0x1c] sm:$0xf]
        %v3352 = vld [vmem:[%s3343 + $0x20] sm:$0xf]
        %v3353 = vld [vmem:[%s3343 + $0x24] sm:$0xf]
        %v3354 = vld [vmem:[%s3343 + $0x28] sm:$0xf]
        %v3355 = vld [vmem:[%s3343 + $0x2c] sm:$0xf]
        %v3356 = vld [vmem:[%s3343 + $0x30] sm:$0xf]
        %v3357 = vld [vmem:[%s3343 + $0x34] sm:$0xf]
        %v3358 = vld [vmem:[%s3343 + $0x38] sm:$0xf]
        %v3359 = vld [vmem:[%s3343 + $0x3c] sm:$0xf]
        %v3376 = vunpack.c.l.b16 %v3344
        %v3377 = vunpack.c.l.b16 %v3345
        %v3378 = vunpack.c.l.b16 %v3346
        %v3379 = vunpack.c.l.b16 %v3347
        %v3380 = vunpack.c.l.b16 %v3348
        %v3381 = vunpack.c.l.b16 %v3349
        %v3382 = vunpack.c.l.b16 %v3350
        %v3383 = vunpack.c.l.b16 %v3351
        %v3384 = vunpack.c.l.b16 %v3352
        %v3385 = vunpack.c.l.b16 %v3353
        %v3386 = vunpack.c.l.b16 %v3354
        %v3387 = vunpack.c.l.b16 %v3355
        %v3388 = vunpack.c.l.b16 %v3356
        %v3389 = vunpack.c.l.b16 %v3357
        %v3390 = vunpack.c.l.b16 %v3358
        %v3391 = vunpack.c.l.b16 %v3359
        %v3392 = vpack.c.b16 %v3377, %v3376
        %v3393 = vpack.c.b16 %v3379, %v3378
        %v3394 = vpack.c.b16 %v3381, %v3380
        %v3395 = vpack.c.b16 %v3383, %v3382
        %v3396 = vpack.c.b16 %v3385, %v3384
        %v3397 = vpack.c.b16 %v3387, %v3386
        %v3398 = vpack.c.b16 %v3389, %v3388
        %v3399 = vpack.c.b16 %v3391, %v3390
        %3408 = vmatprep.subr.bf16.mxu0 0
        %3409 = vmatpush1.bf16.msra.mxu0 %v3392
        %3410 = vmatprep.subr.bf16.mxu0 0
        %3411 = vmatpush1.bf16.msra.mxu0 %v3393
        %3412 = vmatprep.subr.bf16.mxu0 0
        %3413 = vmatpush1.bf16.msra.mxu0 %v3394
        %3414 = vmatprep.subr.bf16.mxu0 0
        %3415 = vmatpush1.bf16.msra.mxu0 %v3395
        %3416 = vmatprep.subr.bf16.mxu0 0
        %3417 = vmatpush1.bf16.msra.mxu0 %v3396
        %3418 = vmatprep.subr.bf16.mxu0 0
        %3419 = vmatpush1.bf16.msra.mxu0 %v3397
        %3420 = vmatprep.subr.bf16.mxu0 0
        %3421 = vmatpush1.bf16.msra.mxu0 %v3398
        %3422 = vmatprep.subr.bf16.mxu0 0
        %3423 = vmatpush1.bf16.msra.mxu0 %v3399
        %3424 = vmatprep.subr.bf16.mxu0 0
        %3425 = vmatpush1.bf16.msra.mxu0 0
        %3426 = vmatprep.subr.bf16.mxu0 0
        %3427 = vmatpush1.bf16.msra.mxu0 0
        %3428 = vmatprep.subr.bf16.mxu0 0
        %3429 = vmatpush1.bf16.msra.mxu0 0
        %3430 = vmatprep.subr.bf16.mxu0 0
        %3431 = vmatpush1.bf16.msra.mxu0 0
        %3432 = vmatprep.subr.bf16.mxu0 0
        %3433 = vmatpush1.bf16.msra.mxu0 0
        %3434 = vmatprep.subr.bf16.mxu0 0
        %3435 = vmatpush1.bf16.msra.mxu0 0
        %3436 = vmatprep.subr.bf16.mxu0 0
        %3437 = vmatpush1.bf16.msra.mxu0 0
        %3438 = vmatprep.subr.bf16.mxu0 0
        %3439 = vmatpush1.bf16.msra.mxu0 0
        %3440 = vmatprep.mubr.bf16.mxu0 0
        %3441 = vmatmul.mubr.bf16.gmra.mrb[0].mxu0 %v3342
        %v3442 = vpop.f32.mrb[0].mxu0
        %v3443 = vadd.f32 0.0, %v3442
        %v3444 = vpop.f32.mrb[0].mxu0
        %v3445 = vpop.f32.mrb[0].mxu0
        %v3446 = vpop.f32.mrb[0].mxu0
        %3447 = vdwg.mxu0
        %v3464 = vunpack.c.l.b16 %v3323
        %v3465 = vunpack.c.l.b16 %v3324
        %v3466 = vunpack.c.l.b16 %v3325
        %v3467 = vunpack.c.l.b16 %v3326
        %v3468 = vunpack.c.l.b16 %v3327
        %v3469 = vunpack.c.l.b16 %v3328
        %v3470 = vunpack.c.l.b16 %v3329
        %v3471 = vunpack.c.l.b16 %v3330
        %v3472 = vunpack.c.l.b16 %v3331
        %v3473 = vunpack.c.l.b16 %v3332
        %v3474 = vunpack.c.l.b16 %v3333
        %v3475 = vunpack.c.l.b16 %v3334
        %v3476 = vunpack.c.l.b16 %v3335
        %v3477 = vunpack.c.l.b16 %v3336
        %v3478 = vunpack.c.l.b16 %v3337
        %v3479 = vunpack.c.l.b16 %v3338
        %v3480 = vpack.c.b16 %v3465, %v3464
        %v3481 = vpack.c.b16 %v3467, %v3466
        %v3482 = vpack.c.b16 %v3469, %v3468
        %v3483 = vpack.c.b16 %v3471, %v3470
        %v3484 = vpack.c.b16 %v3473, %v3472
        %v3485 = vpack.c.b16 %v3475, %v3474
        %v3486 = vpack.c.b16 %v3477, %v3476
        %v3487 = vpack.c.b16 %v3479, %v3478
        %3496 = vmatprep.subr.bf16.mxu0 0
        %3497 = vmatpush1.bf16.msra.mxu0 %v3480
        %3498 = vmatprep.subr.bf16.mxu0 0
        %3499 = vmatpush1.bf16.msra.mxu0 %v3481
        %3500 = vmatprep.subr.bf16.mxu0 0
        %3501 = vmatpush1.bf16.msra.mxu0 %v3482
        %3502 = vmatprep.subr.bf16.mxu0 0
        %3503 = vmatpush1.bf16.msra.mxu0 %v3483
        %3504 = vmatprep.subr.bf16.mxu0 0
        %3505 = vmatpush1.bf16.msra.mxu0 %v3484
        %3506 = vmatprep.subr.bf16.mxu0 0
        %3507 = vmatpush1.bf16.msra.mxu0 %v3485
        %3508 = vmatprep.subr.bf16.mxu0 0
        %3509 = vmatpush1.bf16.msra.mxu0 %v3486
        %3510 = vmatprep.subr.bf16.mxu0 0
        %3511 = vmatpush1.bf16.msra.mxu0 %v3487
        %3512 = vmatprep.subr.bf16.mxu0 0
        %3513 = vmatpush1.bf16.msra.mxu0 0
        %3514 = vmatprep.subr.bf16.mxu0 0
        %3515 = vmatpush1.bf16.msra.mxu0 0
        %3516 = vmatprep.subr.bf16.mxu0 0
        %3517 = vmatpush1.bf16.msra.mxu0 0
        %3518 = vmatprep.subr.bf16.mxu0 0
        %3519 = vmatpush1.bf16.msra.mxu0 0
        %3520 = vmatprep.subr.bf16.mxu0 0
        %3521 = vmatpush1.bf16.msra.mxu0 0
        %3522 = vmatprep.subr.bf16.mxu0 0
        %3523 = vmatpush1.bf16.msra.mxu0 0
        %3524 = vmatprep.subr.bf16.mxu0 0
        %3525 = vmatpush1.bf16.msra.mxu0 0
        %3526 = vmatprep.subr.bf16.mxu0 0
        %3527 = vmatpush1.bf16.msra.mxu0 0
        %3528 = vmatprep.mubr.bf16.mxu0 0
        %3529 = vmatmul.mubr.bf16.gmra.mrb[0].mxu0 %v3322
        %v3530 = vpop.f32.mrb[0].mxu0
        %v3531 = vadd.f32 %v3443, %v3530
        %v3532 = vpop.f32.mrb[0].mxu0
        %v3533 = vpop.f32.mrb[0].mxu0
        %v3534 = vpop.f32.mrb[0].mxu0
        %3535 = vdwg.mxu0
        %v3536 = vmax.f32 %v3308, %v3309
        %v3537 = vadd.f32 %v3536, %v3318
        %v3538 = vmax.f32 %v3537, 0.0
        %v3539 = vpack.c.bf16 %v3538, %v3538
        %s3540 = scalar_lea.vmem %s5, 128
        %v3541 = vld [vmem:[%s3540] sm:$0xf]
        %v3542 = vld [vmem:[%s3540 + $0x4] sm:$0xf]
        %v3543 = vld [vmem:[%s3540 + $0x8] sm:$0xf]
        %v3544 = vld [vmem:[%s3540 + $0xc] sm:$0xf]
        %v3545 = vld [vmem:[%s3540 + $0x10] sm:$0xf]
        %v3546 = vld [vmem:[%s3540 + $0x14] sm:$0xf]
        %v3547 = vld [vmem:[%s3540 + $0x18] sm:$0xf]
        %v3548 = vld [vmem:[%s3540 + $0x1c] sm:$0xf]
        %v3549 = vld [vmem:[%s3540 + $0x20] sm:$0xf]
        %v3550 = vld [vmem:[%s3540 + $0x24] sm:$0xf]
        %v3551 = vld [vmem:[%s3540 + $0x28] sm:$0xf]
        %v3552 = vld [vmem:[%s3540 + $0x2c] sm:$0xf]
        %v3553 = vld [vmem:[%s3540 + $0x30] sm:$0xf]
        %v3554 = vld [vmem:[%s3540 + $0x34] sm:$0xf]
        %v3555 = vld [vmem:[%s3540 + $0x38] sm:$0xf]
        %v3556 = vld [vmem:[%s3540 + $0x3c] sm:$0xf]
        %v3573 = vunpack.c.l.b16 %v3541
        %v3574 = vunpack.c.l.b16 %v3542
        %v3575 = vunpack.c.l.b16 %v3543
        %v3576 = vunpack.c.l.b16 %v3544
        %v3577 = vunpack.c.l.b16 %v3545
        %v3578 = vunpack.c.l.b16 %v3546
        %v3579 = vunpack.c.l.b16 %v3547
        %v3580 = vunpack.c.l.b16 %v3548
        %v3581 = vunpack.c.l.b16 %v3549
        %v3582 = vunpack.c.l.b16 %v3550
        %v3583 = vunpack.c.l.b16 %v3551
        %v3584 = vunpack.c.l.b16 %v3552
        %v3585 = vunpack.c.l.b16 %v3553
        %v3586 = vunpack.c.l.b16 %v3554
        %v3587 = vunpack.c.l.b16 %v3555
        %v3588 = vunpack.c.l.b16 %v3556
        %v3589 = vpack.c.b16 %v3574, %v3573
        %v3590 = vpack.c.b16 %v3576, %v3575
        %v3591 = vpack.c.b16 %v3578, %v3577
        %v3592 = vpack.c.b16 %v3580, %v3579
        %v3593 = vpack.c.b16 %v3582, %v3581
        %v3594 = vpack.c.b16 %v3584, %v3583
        %v3595 = vpack.c.b16 %v3586, %v3585
        %v3596 = vpack.c.b16 %v3588, %v3587
        %3605 = vmatprep.subr.bf16.mxu0 0
        %3606 = vmatpush1.bf16.msra.mxu0 %v3589
        %3607 = vmatprep.subr.bf16.mxu0 0
        %3608 = vmatpush1.bf16.msra.mxu0 %v3590
        %3609 = vmatprep.subr.bf16.mxu0 0
        %3610 = vmatpush1.bf16.msra.mxu0 %v3591
        %3611 = vmatprep.subr.bf16.mxu0 0
        %3612 = vmatpush1.bf16.msra.mxu0 %v3592
        %3613 = vmatprep.subr.bf16.mxu0 0
        %3614 = vmatpush1.bf16.msra.mxu0 %v3593
        %3615 = vmatprep.subr.bf16.mxu0 0
        %3616 = vmatpush1.bf16.msra.mxu0 %v3594
        %3617 = vmatprep.subr.bf16.mxu0 0
        %3618 = vmatpush1.bf16.msra.mxu0 %v3595
        %3619 = vmatprep.subr.bf16.mxu0 0
        %3620 = vmatpush1.bf16.msra.mxu0 %v3596
        %3621 = vmatprep.subr.bf16.mxu0 0
        %3622 = vmatpush1.bf16.msra.mxu0 0
        %3623 = vmatprep.subr.bf16.mxu0 0
        %3624 = vmatpush1.bf16.msra.mxu0 0
        %3625 = vmatprep.subr.bf16.mxu0 0
        %3626 = vmatpush1.bf16.msra.mxu0 0
        %3627 = vmatprep.subr.bf16.mxu0 0
        %3628 = vmatpush1.bf16.msra.mxu0 0
        %3629 = vmatprep.subr.bf16.mxu0 0
        %3630 = vmatpush1.bf16.msra.mxu0 0
        %3631 = vmatprep.subr.bf16.mxu0 0
        %3632 = vmatpush1.bf16.msra.mxu0 0
        %3633 = vmatprep.subr.bf16.mxu0 0
        %3634 = vmatpush1.bf16.msra.mxu0 0
        %3635 = vmatprep.subr.bf16.mxu0 0
        %3636 = vmatpush1.bf16.msra.mxu0 0
        %3637 = vmatprep.mubr.bf16.mxu0 0
        %3638 = vmatmul.mubr.bf16.gmra.mrb[0].mxu0 %v3539
        %v3639 = vpop.f32.mrb[0].mxu0
        %v3640 = vadd.f32 0.0, %v3639
        %v3641 = vpop.f32.mrb[0].mxu0
        %v3642 = vpop.f32.mrb[0].mxu0
        %v3643 = vpop.f32.mrb[0].mxu0
        %3644 = vdwg.mxu0
        %v3645 = vadd.f32 %v3531, %v3640
        %v3646 = vmax.f32 %v3310, %v3311
        %v3647 = vadd.f32 %v3646, %v3318
        %v3648 = vmax.f32 %v3647, 0.0
        %v3649 = vpack.c.bf16 %v3648, %v3648
        %s3650 = scalar_lea.vmem %s5, 192
        %v3651 = vld [vmem:[%s3650] sm:$0xf]
        %v3652 = vld [vmem:[%s3650 + $0x4] sm:$0xf]
        %v3653 = vld [vmem:[%s3650 + $0x8] sm:$0xf]
        %v3654 = vld [vmem:[%s3650 + $0xc] sm:$0xf]
        %v3655 = vld [vmem:[%s3650 + $0x10] sm:$0xf]
        %v3656 = vld [vmem:[%s3650 + $0x14] sm:$0xf]
        %v3657 = vld [vmem:[%s3650 + $0x18] sm:$0xf]
        %v3658 = vld [vmem:[%s3650 + $0x1c] sm:$0xf]
        %v3659 = vld [vmem:[%s3650 + $0x20] sm:$0xf]
        %v3660 = vld [vmem:[%s3650 + $0x24] sm:$0xf]
        %v3661 = vld [vmem:[%s3650 + $0x28] sm:$0xf]
        %v3662 = vld [vmem:[%s3650 + $0x2c] sm:$0xf]
        %v3663 = vld [vmem:[%s3650 + $0x30] sm:$0xf]
        %v3664 = vld [vmem:[%s3650 + $0x34] sm:$0xf]
        %v3665 = vld [vmem:[%s3650 + $0x38] sm:$0xf]
        %v3666 = vld [vmem:[%s3650 + $0x3c] sm:$0xf]
        %v3683 = vunpack.c.l.b16 %v3651
        %v3684 = vunpack.c.l.b16 %v3652
        %v3685 = vunpack.c.l.b16 %v3653
        %v3686 = vunpack.c.l.b16 %v3654
        %v3687 = vunpack.c.l.b16 %v3655
        %v3688 = vunpack.c.l.b16 %v3656
        %v3689 = vunpack.c.l.b16 %v3657
        %v3690 = vunpack.c.l.b16 %v3658
        %v3691 = vunpack.c.l.b16 %v3659
        %v3692 = vunpack.c.l.b16 %v3660
        %v3693 = vunpack.c.l.b16 %v3661
        %v3694 = vunpack.c.l.b16 %v3662
        %v3695 = vunpack.c.l.b16 %v3663
        %v3696 = vunpack.c.l.b16 %v3664
        %v3697 = vunpack.c.l.b16 %v3665
        %v3698 = vunpack.c.l.b16 %v3666
        %v3699 = vpack.c.b16 %v3684, %v3683
        %v3700 = vpack.c.b16 %v3686, %v3685
        %v3701 = vpack.c.b16 %v3688, %v3687
        %v3702 = vpack.c.b16 %v3690, %v3689
        %v3703 = vpack.c.b16 %v3692, %v3691
        %v3704 = vpack.c.b16 %v3694, %v3693
        %v3705 = vpack.c.b16 %v3696, %v3695
        %v3706 = vpack.c.b16 %v3698, %v3697
        %3715 = vmatprep.subr.bf16.mxu0 0
        %3716 = vmatpush1.bf16.msra.mxu0 %v3699
        %3717 = vmatprep.subr.bf16.mxu0 0
        %3718 = vmatpush1.bf16.msra.mxu0 %v3700
        %3719 = vmatprep.subr.bf16.mxu0 0
        %3720 = vmatpush1.bf16.msra.mxu0 %v3701
        %3721 = vmatprep.subr.bf16.mxu0 0
        %3722 = vmatpush1.bf16.msra.mxu0 %v3702
        %3723 = vmatprep.subr.bf16.mxu0 0
        %3724 = vmatpush1.bf16.msra.mxu0 %v3703
        %3725 = vmatprep.subr.bf16.mxu0 0
        %3726 = vmatpush1.bf16.msra.mxu0 %v3704
        %3727 = vmatprep.subr.bf16.mxu0 0
        %3728 = vmatpush1.bf16.msra.mxu0 %v3705
        %3729 = vmatprep.subr.bf16.mxu0 0
        %3730 = vmatpush1.bf16.msra.mxu0 %v3706
        %3731 = vmatprep.subr.bf16.mxu0 0
        %3732 = vmatpush1.bf16.msra.mxu0 0
        %3733 = vmatprep.subr.bf16.mxu0 0
        %3734 = vmatpush1.bf16.msra.mxu0 0
        %3735 = vmatprep.subr.bf16.mxu0 0
        %3736 = vmatpush1.bf16.msra.mxu0 0
        %3737 = vmatprep.subr.bf16.mxu0 0
        %3738 = vmatpush1.bf16.msra.mxu0 0
        %3739 = vmatprep.subr.bf16.mxu0 0
        %3740 = vmatpush1.bf16.msra.mxu0 0
        %3741 = vmatprep.subr.bf16.mxu0 0
        %3742 = vmatpush1.bf16.msra.mxu0 0
        %3743 = vmatprep.subr.bf16.mxu0 0
        %3744 = vmatpush1.bf16.msra.mxu0 0
        %3745 = vmatprep.subr.bf16.mxu0 0
        %3746 = vmatpush1.bf16.msra.mxu0 0
        %3747 = vmatprep.mubr.bf16.mxu0 0
        %3748 = vmatmul.mubr.bf16.gmra.mrb[0].mxu0 %v3649
        %v3749 = vpop.f32.mrb[0].mxu0
        %v3750 = vadd.f32 0.0, %v3749
        %v3751 = vpop.f32.mrb[0].mxu0
        %v3752 = vpop.f32.mrb[0].mxu0
        %v3753 = vpop.f32.mrb[0].mxu0
        %3754 = vdwg.mxu0
        %v3755 = vadd.f32 %v3645, %v3750
        %v3756 = vld [vmem:[%s6] sm:$0x1]
        %v3758 = vlaneseq
        %v3759 = vshrl.u32 %v3758, 7
        %v3760 = vsub.s32 0, %v3759
        %v3761 = vrot.slane %v3756, %v3760
        %v3763 = vadd.f32 %v3755, %v3761
        %v3764 = vmax.f32 %v3763, 0.0
        %v3765 = vpack.c.bf16 %v3764, %v3764
        %v3766 = vld [vmem:[%s7] sm:$0xf]
        %v3767 = vld [vmem:[%s7 + $0x4] sm:$0xf]
        %v3768 = vld [vmem:[%s7 + $0x8] sm:$0xf]
        %v3769 = vld [vmem:[%s7 + $0xc] sm:$0xf]
        %v3770 = vld [vmem:[%s7 + $0x10] sm:$0xf]
        %v3771 = vld [vmem:[%s7 + $0x14] sm:$0xf]
        %v3772 = vld [vmem:[%s7 + $0x18] sm:$0xf]
        %v3773 = vld [vmem:[%s7 + $0x1c] sm:$0xf]
        %v3774 = vld [vmem:[%s7 + $0x20] sm:$0xf]
        %v3775 = vld [vmem:[%s7 + $0x24] sm:$0xf]
        %v3776 = vld [vmem:[%s7 + $0x28] sm:$0xf]
        %v3777 = vld [vmem:[%s7 + $0x2c] sm:$0xf]
        %v3778 = vld [vmem:[%s7 + $0x30] sm:$0xf]
        %v3779 = vld [vmem:[%s7 + $0x34] sm:$0xf]
        %v3780 = vld [vmem:[%s7 + $0x38] sm:$0xf]
        %v3781 = vld [vmem:[%s7 + $0x3c] sm:$0xf]
        %v3782 = vld [vmem:[%s8] sm:$0x1]
        %v3784 = vlaneseq
        %v3785 = vshrl.u32 %v3784, 7
        %v3786 = vsub.s32 0, %v3785
        %v3787 = vrot.slane %v3782, %v3786
        %v3805 = vunpack.c.l.b16 %v3766
        %v3806 = vunpack.c.l.b16 %v3767
        %v3807 = vunpack.c.l.b16 %v3768
        %v3808 = vunpack.c.l.b16 %v3769
        %v3809 = vunpack.c.l.b16 %v3770
        %v3810 = vunpack.c.l.b16 %v3771
        %v3811 = vunpack.c.l.b16 %v3772
        %v3812 = vunpack.c.l.b16 %v3773
        %v3813 = vunpack.c.l.b16 %v3774
        %v3814 = vunpack.c.l.b16 %v3775
        %v3815 = vunpack.c.l.b16 %v3776
        %v3816 = vunpack.c.l.b16 %v3777
        %v3817 = vunpack.c.l.b16 %v3778
        %v3818 = vunpack.c.l.b16 %v3779
        %v3819 = vunpack.c.l.b16 %v3780
        %v3820 = vunpack.c.l.b16 %v3781
        %v3821 = vpack.c.b16 %v3806, %v3805
        %v3822 = vpack.c.b16 %v3808, %v3807
        %v3823 = vpack.c.b16 %v3810, %v3809
        %v3824 = vpack.c.b16 %v3812, %v3811
        %v3825 = vpack.c.b16 %v3814, %v3813
        %v3826 = vpack.c.b16 %v3816, %v3815
        %v3827 = vpack.c.b16 %v3818, %v3817
        %v3828 = vpack.c.b16 %v3820, %v3819
        %3837 = vmatprep.subr.bf16.mxu0 0
        %3838 = vmatpush1.bf16.msra.mxu0 %v3821
        %3839 = vmatprep.subr.bf16.mxu0 0
        %3840 = vmatpush1.bf16.msra.mxu0 %v3822
        %3841 = vmatprep.subr.bf16.mxu0 0
        %3842 = vmatpush1.bf16.msra.mxu0 %v3823
        %3843 = vmatprep.subr.bf16.mxu0 0
        %3844 = vmatpush1.bf16.msra.mxu0 %v3824
        %3845 = vmatprep.subr.bf16.mxu0 0
        %3846 = vmatpush1.bf16.msra.mxu0 %v3825
        %3847 = vmatprep.subr.bf16.mxu0 0
        %3848 = vmatpush1.bf16.msra.mxu0 %v3826
        %3849 = vmatprep.subr.bf16.mxu0 0
        %3850 = vmatpush1.bf16.msra.mxu0 %v3827
        %3851 = vmatprep.subr.bf16.mxu0 0
        %3852 = vmatpush1.bf16.msra.mxu0 %v3828
        %3853 = vmatprep.subr.bf16.mxu0 0
        %3854 = vmatpush1.bf16.msra.mxu0 0
        %3855 = vmatprep.subr.bf16.mxu0 0
        %3856 = vmatpush1.bf16.msra.mxu0 0
        %3857 = vmatprep.subr.bf16.mxu0 0
        %3858 = vmatpush1.bf16.msra.mxu0 0
        %3859 = vmatprep.subr.bf16.mxu0 0
        %3860 = vmatpush1.bf16.msra.mxu0 0
        %3861 = vmatprep.subr.bf16.mxu0 0
        %3862 = vmatpush1.bf16.msra.mxu0 0
        %3863 = vmatprep.subr.bf16.mxu0 0
        %3864 = vmatpush1.bf16.msra.mxu0 0
        %3865 = vmatprep.subr.bf16.mxu0 0
        %3866 = vmatpush1.bf16.msra.mxu0 0
        %3867 = vmatprep.subr.bf16.mxu0 0
        %3868 = vmatpush1.bf16.msra.mxu0 0
        %3869 = vmatprep.mubr.bf16.mxu0 0
        %3870 = vmatmul.mubr.bf16.gmra.mrb[0].mxu0 %v3765
        %v3871 = vpop.f32.mrb[0].mxu0
        %v3872 = vadd.f32 %v3787, %v3871
        %v3873 = vpop.f32.mrb[0].mxu0
        %v3874 = vpop.f32.mrb[0].mxu0
        %v3875 = vpop.f32.mrb[0].mxu0
        %3876 = vdwg.mxu0
        %3877 = vmax.xlane.f32.xlu0 %v3872
        %v3878 = vpop.xlane.xlu0 %3877
        %v3879 = vsub.f32 %v3872, %v3878
        %v3880 = vmul.f32 %v3879, 1.442695
        %v3881 = vpow.pop %v3880
        %3882 = vadd.xlane.f32.xlu0 %v3881
        %v3883 = vpop.xlane.xlu0 %3882
        %v3884 = vlog2.pop %v3883
        %v3885 = vmul.f32 %v3884, 0.6931472
        %v3886 = vsub.f32 %v3879, %v3885
        %3887 = vst [vmem:[%s325] sm:$0xff] %v3886
        %s3888 = sand.u32 %s225, 1
        %s3889 = scalar_lea.sflag [#allocation4], %s3888
        %s3890 = sand.u32 %s225, 1
        %s3891 = smul.addr %s3890, 8
        %s3892 = scalar_lea.vmem [#allocation3], %s3891
        // Predicated region
        $region57: #{net_forward.1} parent=55 // pred_check
          %p3893 = pneg %p235
        $region58: #{net_forward.1} parent=55 // pred_check_branch
          %3895 = sbr.rel (%p3893) target = $region60
        $region59: #{net_forward.1} parent=55 // pred_region
          %s3897 = ssub.s32 128, 128
          %3898 = vsyncadd %s3889, %s3897
          %s3899 = smul.addr %s23, 128
          %s3900 = scalar_lea.hbm %s9, %s3899
          %s3902 = sshll.u32 %s3892, 4
          %s3903 = int_to_ptr.vmem [resolvable:$true] %s3902
          %3905 = dma.vmem_to_hbm [thread:$0]  %s3903, 128, %s3900, %s3889
        $region60: #{net_forward.1} parent=55 // pred_fallthru
          _
      $region56: #{net_forward.1} parent=5 // pred_fallthru
        _
      %p3906 = scmp.le.s32.totalorder 2, %s18
      // Predicated region
      $region61: #{net_forward.1} parent=5 // pred_check
        %p3907 = pneg %p3906
      $region62: #{net_forward.1} parent=5 // pred_check_branch
        %3909 = sbr.rel (%p3907) target = $region64
      $region63: #{net_forward.1} parent=5 // pred_region
        %s3910 = ssub.s32 %s18, 2
        // Predicated region
        $region65: #{net_forward.1} parent=63 // pred_check
          %p3911 = pneg %p241
        $region66: #{net_forward.1} parent=63 // pred_check_branch
          %3913 = sbr.rel (%p3911) target = $region68
        $region67: #{net_forward.1} parent=63 // pred_region
          %s3914 = sand.u32 %s226, 1
          %s3915 = scalar_lea.sflag [#allocation4], %s3914
          %s3916 = sand.u32 %s226, 1
          %s3917 = smul.addr %s3916, 8
          %s3918 = scalar_lea.vmem [#allocation3], %s3917
          %3919 = dma.done %s3915, 128
        $region68: #{net_forward.1} parent=63 // pred_fallthru
          _
      $region64: #{net_forward.1} parent=5 // pred_fallthru
        _
    $region6: #{net_forward.1} parent=1 // loop_footer
      %s22 = sadd.s32 1, %s18
    $region7: #{net_forward.1} parent=1 // loop_footer_branch
      %17 = sbr.rel target = $region3
    $region8: #{net_forward.1} parent=1 // loop_exit
      _
    %3920 = vsyncpa [#allocation4], 1
    %s3921 = scalar_lea.sflag [#allocation4], 1
    %3922 = vsyncpa %s3921, 1

</llo_original>
